<compile_context>
chip_gen: v6e
topology: v6e:2x2x1
jax: 0.10.0
libtpu: 0.0.40
codegen_flags: <defaults>
</compile_context>

<pallas_src>
import functools
import math

import jax
import jax.numpy as jnp
from jax import lax
from jax.experimental import pallas as pl
from jax.experimental.pallas import tpu as pltpu

C_PAD = 128                      # lane-dense padded channel width
MXU_DTYPE = jnp.bfloat16         # operand dtype for heavy MXU matmuls (f32 accumulate)

_CPARAMS = pltpu.CompilerParams(vmem_limit_bytes=32 * 1024 * 1024)


def _vmem():
    return pl.BlockSpec(memory_space=pltpu.MemorySpace.VMEM)


# ---------------------------------------------------------------------------
# In-kernel math helpers (pure jnp, traced inside the Pallas kernels)
# ---------------------------------------------------------------------------
def _diag_mask(n):
    return (lax.broadcasted_iota(jnp.int32, (n, n), 0) ==
            lax.broadcasted_iota(jnp.int32, (n, n), 1))


def _mm(a, b):
    """a @ b on the MXU, bf16 operands, f32 accumulation."""
    return jnp.dot(a.astype(MXU_DTYPE), b.astype(MXU_DTYPE),
                   preferred_element_type=jnp.float32)


def _mm_t(a, b):
    """a^T @ b (contract leading dims) on the MXU, bf16 operands, f32 accumulate."""
    return lax.dot_general(a.astype(MXU_DTYPE), b.astype(MXU_DTYPE),
                           (((0,), (0,)), ((), ())),
                           preferred_element_type=jnp.float32)


def _one_hot_select(perm, n):
    """(k, n) one-hot selection matrix: sel[r, c] = (c == perm[r]); perm is (k, 1)."""
    k = perm.shape[0]
    return (lax.broadcasted_iota(jnp.int32, (k, n), 1) == perm).astype(jnp.float32)


def _gcn_block(A, x, eye, w1, b1, w2, b2, *, final_relu):
    """GCNBlock(block_depth=2, norm=False): GCNConv -> ReLU -> GCNConv (+ReLU).

    GCNConv semantics: gcn_norm (add remaining self loops w=1, symmetric D^-1/2
    over the in-degree), then out[j] = sum_i norm[i, j] * (X @ W)[i] + b.
    The normalization is folded into the feature path, so no (N, N) a_norm temp
    is ever materialized and the degree is computed exactly once (MXU col-sum).
    """
    at = jnp.where(jnp.logical_and(eye, A == 0.0), 1.0, A)     # add remaining self loops
    ones = jnp.ones((A.shape[0], 1), jnp.float32)
    deg = lax.dot_general(at, ones, (((0,), (0,)), ((), ())),
                          preferred_element_type=jnp.float32)   # (n,1) in-degree (col sums)
    d = jnp.where(deg > 0.0, lax.rsqrt(deg), 0.0)               # f32 rsqrt

    def conv(h, w, b):
        hw = _mm(h, w)                    # (n, C)  X @ W
        agg = _mm_t(at, hw * d)           # (n, C)  sum_i at[i, j] * d[i] * hw[i, :]
        return agg * d + b                # scale rows by d[j], add bias

    h = jnp.maximum(conv(x, w1, b1), 0.0)     # GCNConv -> ReLU
    out = conv(h, w2, b2)                      # GCNConv
    if final_relu:
        out = jnp.maximum(out, 0.0)
    return out


def _pool_score(x, p):
    """TopKPooling attention score tanh((x . p) / ||p||): VPU mul + lane reduce + rsqrt."""
    inv_norm = lax.rsqrt(jnp.sum(p * p, axis=-1, keepdims=True))        # (1, 1)
    return jnp.tanh(jnp.sum(x * p, axis=-1, keepdims=True) * inv_norm)  # (n, 1)


# ---------------------------------------------------------------------------
# Pallas kernels (one fused kernel per U-Net level)
# ---------------------------------------------------------------------------
def _gcn0_kernel(a_ref, x_ref, w1_ref, b1_ref, w2_ref, b2_ref, p_ref,
                 xo_ref, so_ref):
    """First down conv (+ outer ReLU), fused with the level-1 pooling score."""
    n = a_ref.shape[0]
    out = _gcn_block(a_ref[...], x_ref[...], _diag_mask(n),
                     w1_ref[...], b1_ref[...], w2_ref[...], b2_ref[...],
                     final_relu=True)
    xo_ref[...] = out
    so_ref[...] = _pool_score(out, p_ref[...])


def _down_level_kernel(perm_ref, a_ref, x_ref, s_ref,
                       w1_ref, b1_ref, w2_ref, b2_ref, p_ref,
                       xo_ref, ao_ref, so_ref):
    """One full down level, fused."""
    n = a_ref.shape[0]
    k = perm_ref.shape[0]
    sel = _one_hot_select(perm_ref[...], n)                     # (k, n) one-hot

    # --- TopKPooling: x[perm] * score[perm] (in-kernel gather, exact in f32) ----
    xg = jnp.dot(sel, x_ref[...], preferred_element_type=jnp.float32)   # x[perm]
    sg = jnp.dot(sel, s_ref[...], preferred_element_type=jnp.float32)   # score[perm]
    xp = xg * sg

    # --- augment_adj restricted to the kept nodes -------------------------------
    # remove + add self loops -> A1 (diag forced to 1);
    # (A1 @ A1)[perm][:, perm] == A1[perm, :] @ A1[:, perm]   (k x k result)
    a1 = jnp.where(_diag_mask(n), 1.0, a_ref[...])
    a_rows = _mm(sel, a1)                                       # (k, n) = A1[perm, :]
    a_cols = lax.dot_general(a1.astype(MXU_DTYPE), sel.astype(MXU_DTYPE),
                             (((1,), (1,)), ((), ())),
                             preferred_element_type=jnp.float32)  # (n, k) = A1[:, perm]
    eye_k = _diag_mask(k)
    a_pool = jnp.where(eye_k, 0.0, _mm(a_rows, a_cols))         # remove self loops
    ao_ref[...] = a_pool

    # --- down conv (+ outer ReLU) and next level's pooling score ----------------
    out = _gcn_block(a_pool, xp, eye_k,
                     w1_ref[...], b1_ref[...], w2_ref[...], b2_ref[...],
                     final_relu=True)
    xo_ref[...] = out
    so_ref[...] = _pool_score(out, p_ref[...])


def _up_level_kernel(perm_ref, a_ref, res_ref, xc_ref,
                     w1_ref, b1_ref, w2_ref, b2_ref, xo_ref, *, final_relu):
    """One full up level, fused: scatter coarse features to `perm` rows, add the
    skip connection, run the up GCNBlock (+ ReLU except on the last level)."""
    n = a_ref.shape[0]
    sel = _one_hot_select(perm_ref[...], n)                     # (k, n)
    # up = zeros.at[perm].set(x_coarse)  ==  sel^T @ x_coarse  (perm rows are unique)
    up = lax.dot_general(sel, xc_ref[...], (((0,), (0,)), ((), ())),
                         preferred_element_type=jnp.float32)     # (n, C)
    h = res_ref[...] + up
    xo_ref[...] = _gcn_block(a_ref[...], h, _diag_mask(n),
                             w1_ref[...], b1_ref[...], w2_ref[...], b2_ref[...],
                             final_relu=final_relu)


# ---------------------------------------------------------------------------
# pallas_call wrappers (whole-array VMEM blocks at these shapes)
# ---------------------------------------------------------------------------
def gcn0_call(A, x, blk, p):
    n, c = x.shape
    return pl.pallas_call(
        _gcn0_kernel,
        out_shape=(jax.ShapeDtypeStruct((n, c), jnp.float32),
                   jax.ShapeDtypeStruct((n, 1), jnp.float32)),
        in_specs=[_vmem()] * 7,
        out_specs=(_vmem(), _vmem()),
        compiler_params=_CPARAMS,
    )(A, x, blk["w1"], blk["b1"], blk["w2"], blk["b2"], p)


def down_level_call(perm, A, x, score, blk, p_next):
    n, c = x.shape
    k = perm.shape[0]
    return pl.pallas_call(
        _down_level_kernel,
        out_shape=(jax.ShapeDtypeStruct((k, c), jnp.float32),
                   jax.ShapeDtypeStruct((k, k), jnp.float32),
                   jax.ShapeDtypeStruct((k, 1), jnp.float32)),
        in_specs=[_vmem()] * 9,
        out_specs=(_vmem(), _vmem(), _vmem()),
        compiler_params=_CPARAMS,
    )(perm, A, x, score, blk["w1"], blk["b1"], blk["w2"], blk["b2"], p_next)


def up_level_call(perm, A, res, x_coarse, blk, *, final_relu):
    n, c = res.shape
    kern = functools.partial(_up_level_kernel, final_relu=final_relu)
    return pl.pallas_call(
        kern,
        out_shape=jax.ShapeDtypeStruct((n, c), jnp.float32),
        in_specs=[_vmem()] * 8,
        out_specs=_vmem(),
        compiler_params=_CPARAMS,
    )(perm, A, res, x_coarse, blk["w1"], blk["b1"], blk["w2"], blk["b2"])


# ---------------------------------------------------------------------------
# GraphUNetv2 forward (top-k selection stays in plain JAX; everything else Pallas)
# ---------------------------------------------------------------------------
def graph_unet_v2_forward(x_in, A, params, *, depth, pool_ratio, sum_res=True):
    assert sum_res, "only sum_res=True (the module default) is implemented"
    c_pad = params["down"][0]["w1"].shape[0]
    # zero-pad channels to the lane-dense width (exact: padded weights/bias are zero)
    x = jnp.pad(x_in.astype(jnp.float32), ((0, 0), (0, c_pad - x_in.shape[1])))

    # down_convs[0] + outer act, fused with the level-1 pooling score
    x, score = gcn0_call(A, x, params["down"][0], params["pool"][0])

    xs, adjs, perms = [x], [A], []
    A_cur = A
    for i in range(1, depth + 1):
        n_cur = x.shape[0]
        k = int(math.ceil(pool_ratio * n_cur))
        _, perm = lax.top_k(score[:, 0], k)            # data-dependent: stays in JAX
        perm = perm.astype(jnp.int32)[:, None]          # (k, 1) for one-hot compare
        p_next = params["pool"][i] if i < depth else params["pool"][depth - 1]
        x, A_cur, score = down_level_call(perm, A_cur, x, score,
                                          params["down"][i], p_next)
        if i < depth:
            xs.append(x)
            adjs.append(A_cur)
        perms.append(perm)

    for i in range(depth):
        j = depth - 1 - i
        x = up_level_call(perms[j], adjs[j], xs[j], x, params["up"][i],
                          final_relu=(i < depth - 1))
    return x


# ---------------------------------------------------------------------------
# Deterministic parameter init (shapes follow the PyTorch __init__, zero-padded)
# ---------------------------------------------------------------------------
def _pad2(a, rows, cols):
    return jnp.pad(a, ((0, rows - a.shape[0]), (0, cols - a.shape[1])))


def _init_block(key, c_in, c_out, c_pad):
    k1, k2, k3, k4 = jax.random.split(key, 4)
    w1 = jax.random.normal(k1, (c_in, c_out), jnp.float32) / math.sqrt(c_in)
    b1 = 0.05 * jax.random.normal(k2, (1, c_out), jnp.float32)
    w2 = jax.random.normal(k3, (c_out, c_out), jnp.float32) / math.sqrt(c_out)
    b2 = 0.05 * jax.random.normal(k4, (1, c_out), jnp.float32)
    return {"w1": _pad2(w1, c_pad, c_pad), "b1": _pad2(b1, 1, c_pad),
            "w2": _pad2(w2, c_pad, c_pad), "b2": _pad2(b2, 1, c_pad)}


def init_params(key, in_channels, hidden, out_channels, depth,
                sum_res=True, c_pad=C_PAD):
    keys = jax.random.split(key, 3 * depth + 2)
    ki = iter(keys)
    params = {"down": [], "pool": [], "up": []}
    params["down"].append(_init_block(next(ki), in_channels, hidden, c_pad))
    for _ in range(depth):
        p = jax.random.normal(next(ki), (1, hidden), jnp.float32) / math.sqrt(hidden)
        params["pool"].append(_pad2(p, 1, c_pad))
        params["down"].append(_init_block(next(ki), hidden, hidden, c_pad))
    up_in = hidden if sum_res else 2 * hidden
    for _ in range(depth - 1):
        params["up"].append(_init_block(next(ki), up_in, hidden, c_pad))
    params["up"].append(_init_block(next(ki), up_in, out_channels, c_pad))
    return params


# ---------------------------------------------------------------------------
if __name__ == "__main__":
    key = jax.random.PRNGKey(0)

    N = 16
    in_channels, hidden_channels, out_channels = 4, 16, 4
    depth = 2
    pool_ratio = 0.5

    # Small symmetric graph (ring + a few chords), no self loops, edge_weight = 1
    # (matches `x.new_ones(edge_index.size(1))`).
    A = jnp.zeros((N, N), jnp.float32)
    src = jnp.arange(N)
    dst = (src + 1) % N
    A = A.at[src, dst].set(1.0).at[dst, src].set(1.0)
    for i, j in [(0, 5), (3, 10), (7, 12)]:
        A = A.at[i, j].set(1.0).at[j, i].set(1.0)

    k_x, k_p = jax.random.split(key)
    x = jax.random.normal(k_x, (N, in_channels), jnp.float32)
    params = init_params(k_p, in_channels, hidden_channels, out_channels, depth)

    fwd = jax.jit(functools.partial(graph_unet_v2_forward,
                                    depth=depth, pool_ratio=pool_ratio,
                                    sum_res=True))
    out_pad = jax.block_until_ready(fwd(x, A, params))
    out = out_pad[:, :out_channels]

    assert out.shape == (N, out_channels), out.shape
    assert bool(jnp.all(jnp.isfinite(out)))
    # padded channels must have stayed exactly zero (padding is exact)
    assert bool(jnp.all(out_pad[:, out_channels:] == 0.0))
    print("KERNEL_OK")
</pallas_src>

<mosaic_0001>
module attributes {stable_mosaic.version = 11 : i64} {
  func.func @_gcn0_kernel(%arg0: memref<16x16xf32, #tpu.memory_space<vmem>>, %arg1: memref<16x128xf32, #tpu.memory_space<vmem>>, %arg2: memref<128x128xf32, #tpu.memory_space<vmem>>, %arg3: memref<1x128xf32, #tpu.memory_space<vmem>>, %arg4: memref<128x128xf32, #tpu.memory_space<vmem>>, %arg5: memref<1x128xf32, #tpu.memory_space<vmem>>, %arg6: memref<1x128xf32, #tpu.memory_space<vmem>>, %arg7: memref<16x128xf32, #tpu.memory_space<vmem>>, %arg8: memref<16x1xf32, #tpu.memory_space<vmem>>) attributes {dimension_semantics = [], scalar_prefetch = 0 : i64, scratch_operands = 0 : i64, tpu.core_type = #tpu.core_type<tc>} {
    %c0 = arith.constant 0 : index
    %c0_0 = arith.constant 0 : index
    %0 = vector.load %arg0[%c0, %c0_0] : memref<16x16xf32, #tpu.memory_space<vmem>>, vector<16x16xf32>
    %c0_1 = arith.constant 0 : index
    %c0_2 = arith.constant 0 : index
    %1 = vector.load %arg1[%c0_1, %c0_2] : memref<16x128xf32, #tpu.memory_space<vmem>>, vector<16x128xf32>
    %2 = tpu.iota {dimensions = array<i32: 0>} : vector<16x16xi32>
    %3 = tpu.iota {dimensions = array<i32: 1>} : vector<16x16xi32>
    %4 = arith.cmpi eq, %2, %3 : vector<16x16xi32>
    %c0_3 = arith.constant 0 : index
    %c0_4 = arith.constant 0 : index
    %5 = vector.load %arg2[%c0_3, %c0_4] : memref<128x128xf32, #tpu.memory_space<vmem>>, vector<128x128xf32>
    %c0_5 = arith.constant 0 : index
    %c0_6 = arith.constant 0 : index
    %6 = vector.load %arg3[%c0_5, %c0_6] : memref<1x128xf32, #tpu.memory_space<vmem>>, vector<1x128xf32>
    %c0_7 = arith.constant 0 : index
    %c0_8 = arith.constant 0 : index
    %7 = vector.load %arg4[%c0_7, %c0_8] : memref<128x128xf32, #tpu.memory_space<vmem>>, vector<128x128xf32>
    %c0_9 = arith.constant 0 : index
    %c0_10 = arith.constant 0 : index
    %8 = vector.load %arg5[%c0_9, %c0_10] : memref<1x128xf32, #tpu.memory_space<vmem>>, vector<1x128xf32>
    %cst = arith.constant 0.000000e+00 : f32
    %9 = vector.broadcast %cst : f32 to vector<16x16xf32>
    %10 = arith.cmpf oeq, %0, %9 : vector<16x16xf32>
    %11 = arith.andi %4, %10 : vector<16x16xi1>
    %cst_11 = arith.constant 1.000000e+00 : f32
    %12 = vector.broadcast %cst_11 : f32 to vector<16x16xf32>
    %13 = arith.select %11, %12, %0 : vector<16x16xi1>, vector<16x16xf32>
    %cst_12 = arith.constant 1.000000e+00 : f32
    %14 = vector.broadcast %cst_12 : f32 to vector<16x1xf32>
    %cst_13 = arith.constant dense<0.000000e+00> : vector<16x1xf32>
    %15 = tpu.matmul %13, %14, %cst_13 {dimension_numbers = #tpu.dot_dimension_numbers<[0], [0], [1], [1], [0, 1, 1, 1], [], []>} : vector<16x16xf32>, vector<16x1xf32>, vector<16x1xf32> -> vector<16x1xf32>
    %cst_14 = arith.constant 0.000000e+00 : f32
    %16 = vector.broadcast %cst_14 : f32 to vector<16x1xf32>
    %17 = arith.cmpf ogt, %15, %16 : vector<16x1xf32>
    %18 = math.rsqrt %15 : vector<16x1xf32>
    %cst_15 = arith.constant 0.000000e+00 : f32
    %19 = vector.broadcast %cst_15 : f32 to vector<16x1xf32>
    %20 = arith.select %17, %18, %19 : vector<16x1xi1>, vector<16x1xf32>
    %21 = arith.truncf %1 : vector<16x128xf32> to vector<16x128xbf16>
    %22 = arith.truncf %5 : vector<128x128xf32> to vector<128x128xbf16>
    %cst_16 = arith.constant dense<0.000000e+00> : vector<16x128xf32>
    %23 = tpu.matmul %21, %22, %cst_16 {dimension_numbers = #tpu.dot_dimension_numbers<[1], [0], [0], [1], [0, 0, 1, 1], [], []>} : vector<16x128xbf16>, vector<128x128xbf16>, vector<16x128xf32> -> vector<16x128xf32>
    %24 = vector.broadcast %20 : vector<16x1xf32> to vector<16x128xf32>
    %25 = arith.mulf %23, %24 : vector<16x128xf32>
    %26 = arith.truncf %13 : vector<16x16xf32> to vector<16x16xbf16>
    %27 = arith.truncf %25 : vector<16x128xf32> to vector<16x128xbf16>
    %cst_17 = arith.constant dense<0.000000e+00> : vector<16x128xf32>
    %28 = tpu.matmul %26, %27, %cst_17 {dimension_numbers = #tpu.dot_dimension_numbers<[0], [0], [1], [1], [0, 1, 1, 1], [], []>} : vector<16x16xbf16>, vector<16x128xbf16>, vector<16x128xf32> -> vector<16x128xf32>
    %29 = vector.broadcast %20 : vector<16x1xf32> to vector<16x128xf32>
    %30 = arith.mulf %28, %29 : vector<16x128xf32>
    %31 = vector.broadcast %6 : vector<1x128xf32> to vector<16x128xf32>
    %32 = arith.addf %30, %31 : vector<16x128xf32>
    %cst_18 = arith.constant 0.000000e+00 : f32
    %33 = vector.broadcast %cst_18 : f32 to vector<16x128xf32>
    %34 = arith.maximumf %32, %33 : vector<16x128xf32>
    %35 = arith.truncf %34 : vector<16x128xf32> to vector<16x128xbf16>
    %36 = arith.truncf %7 : vector<128x128xf32> to vector<128x128xbf16>
    %cst_19 = arith.constant dense<0.000000e+00> : vector<16x128xf32>
    %37 = tpu.matmul %35, %36, %cst_19 {dimension_numbers = #tpu.dot_dimension_numbers<[1], [0], [0], [1], [0, 0, 1, 1], [], []>} : vector<16x128xbf16>, vector<128x128xbf16>, vector<16x128xf32> -> vector<16x128xf32>
    %38 = vector.broadcast %20 : vector<16x1xf32> to vector<16x128xf32>
    %39 = arith.mulf %37, %38 : vector<16x128xf32>
    %40 = arith.truncf %13 : vector<16x16xf32> to vector<16x16xbf16>
    %41 = arith.truncf %39 : vector<16x128xf32> to vector<16x128xbf16>
    %cst_20 = arith.constant dense<0.000000e+00> : vector<16x128xf32>
    %42 = tpu.matmul %40, %41, %cst_20 {dimension_numbers = #tpu.dot_dimension_numbers<[0], [0], [1], [1], [0, 1, 1, 1], [], []>} : vector<16x16xbf16>, vector<16x128xbf16>, vector<16x128xf32> -> vector<16x128xf32>
    %43 = vector.broadcast %20 : vector<16x1xf32> to vector<16x128xf32>
    %44 = arith.mulf %42, %43 : vector<16x128xf32>
    %45 = vector.broadcast %8 : vector<1x128xf32> to vector<16x128xf32>
    %46 = arith.addf %44, %45 : vector<16x128xf32>
    %cst_21 = arith.constant 0.000000e+00 : f32
    %47 = vector.broadcast %cst_21 : f32 to vector<16x128xf32>
    %48 = arith.maximumf %46, %47 : vector<16x128xf32>
    %c0_22 = arith.constant 0 : index
    %c0_23 = arith.constant 0 : index
    %49 = vector.load %arg7[%c0_22, %c0_23] : memref<16x128xf32, #tpu.memory_space<vmem>>, vector<16x128xf32>
    tpu.vector_store %arg7[%c0_22, %c0_23], %48 {strides = array<i32>} : memref<16x128xf32, #tpu.memory_space<vmem>>, vector<16x128xf32>,
    %c0_24 = arith.constant 0 : index
    %c0_25 = arith.constant 0 : index
    %50 = vector.load %arg6[%c0_24, %c0_25] : memref<1x128xf32, #tpu.memory_space<vmem>>, vector<1x128xf32>
    %51 = arith.mulf %50, %50 : vector<1x128xf32>
    %cst_26 = arith.constant dense<0.000000e+00> : vector<1xf32>
    %52 = vector.multi_reduction <add>, %51, %cst_26 [1] : vector<1x128xf32> to vector<1xf32>
    %53 = vector.shape_cast %52 : vector<1xf32> to vector<1x1xf32>
    %54 = math.rsqrt %53 : vector<1x1xf32>
    %55 = vector.broadcast %50 : vector<1x128xf32> to vector<16x128xf32>
    %56 = arith.mulf %48, %55 : vector<16x128xf32>
    %cst_27 = arith.constant dense<0.000000e+00> : vector<16xf32>
    %57 = vector.multi_reduction <add>, %56, %cst_27 [1] : vector<16x128xf32> to vector<16xf32>
    %58 = vector.shape_cast %57 : vector<16xf32> to vector<16x1xf32>
    %59 = vector.broadcast %54 : vector<1x1xf32> to vector<16x1xf32>
    %60 = arith.mulf %58, %59 : vector<16x1xf32>
    %61 = math.tanh %60 : vector<16x1xf32>
    %c0_28 = arith.constant 0 : index
    %c0_29 = arith.constant 0 : index
    %62 = vector.load %arg8[%c0_28, %c0_29] : memref<16x1xf32, #tpu.memory_space<vmem>>, vector<16x1xf32>
    tpu.vector_store %arg8[%c0_28, %c0_29], %61 {strides = array<i32>} : memref<16x1xf32, #tpu.memory_space<vmem>>, vector<16x1xf32>,
    return
  }
}

module attributes {stable_mosaic.version = 11 : i64} {
  func.func @_down_level_kernel(%arg0: memref<8x1xi32, #tpu.memory_space<vmem>>, %arg1: memref<16x16xf32, #tpu.memory_space<vmem>>, %arg2: memref<16x128xf32, #tpu.memory_space<vmem>>, %arg3: memref<16x1xf32, #tpu.memory_space<vmem>>, %arg4: memref<128x128xf32, #tpu.memory_space<vmem>>, %arg5: memref<1x128xf32, #tpu.memory_space<vmem>>, %arg6: memref<128x128xf32, #tpu.memory_space<vmem>>, %arg7: memref<1x128xf32, #tpu.memory_space<vmem>>, %arg8: memref<1x128xf32, #tpu.memory_space<vmem>>, %arg9: memref<8x128xf32, #tpu.memory_space<vmem>>, %arg10: memref<8x8xf32, #tpu.memory_space<vmem>>, %arg11: memref<8x1xf32, #tpu.memory_space<vmem>>) attributes {dimension_semantics = [], scalar_prefetch = 0 : i64, scratch_operands = 0 : i64, tpu.core_type = #tpu.core_type<tc>} {
    %c0 = arith.constant 0 : index
    %c0_0 = arith.constant 0 : index
    %0 = vector.load %arg0[%c0, %c0_0] : memref<8x1xi32, #tpu.memory_space<vmem>>, vector<8x1xi32>
    %1 = tpu.iota {dimensions = array<i32: 1>} : vector<8x16xi32>
    %2 = vector.broadcast %0 : vector<8x1xi32> to vector<8x16xi32>
    %3 = arith.cmpi eq, %1, %2 : vector<8x16xi32>
    %4 = arith.extui %3 : vector<8x16xi1> to vector<8x16xi32>
    %5 = arith.sitofp %4 : vector<8x16xi32> to vector<8x16xf32>
    %c0_1 = arith.constant 0 : index
    %c0_2 = arith.constant 0 : index
    %6 = vector.load %arg2[%c0_1, %c0_2] : memref<16x128xf32, #tpu.memory_space<vmem>>, vector<16x128xf32>
    %cst = arith.constant dense<0.000000e+00> : vector<8x128xf32>
    %7 = tpu.matmul %5, %6, %cst {dimension_numbers = #tpu.dot_dimension_numbers<[1], [0], [0], [1], [0, 0, 1, 1], [], []>} : vector<8x16xf32>, vector<16x128xf32>, vector<8x128xf32> -> vector<8x128xf32>
    %c0_3 = arith.constant 0 : index
    %c0_4 = arith.constant 0 : index
    %8 = vector.load %arg3[%c0_3, %c0_4] : memref<16x1xf32, #tpu.memory_space<vmem>>, vector<16x1xf32>
    %cst_5 = arith.constant dense<0.000000e+00> : vector<8x1xf32>
    %9 = tpu.matmul %5, %8, %cst_5 {dimension_numbers = #tpu.dot_dimension_numbers<[1], [0], [0], [1], [0, 0, 1, 1], [], []>} : vector<8x16xf32>, vector<16x1xf32>, vector<8x1xf32> -> vector<8x1xf32>
    %10 = vector.broadcast %9 : vector<8x1xf32> to vector<8x128xf32>
    %11 = arith.mulf %7, %10 : vector<8x128xf32>
    %12 = tpu.iota {dimensions = array<i32: 0>} : vector<16x16xi32>
    %13 = tpu.iota {dimensions = array<i32: 1>} : vector<16x16xi32>
    %14 = arith.cmpi eq, %12, %13 : vector<16x16xi32>
    %c0_6 = arith.constant 0 : index
    %c0_7 = arith.constant 0 : index
    %15 = vector.load %arg1[%c0_6, %c0_7] : memref<16x16xf32, #tpu.memory_space<vmem>>, vector<16x16xf32>
    %cst_8 = arith.constant 1.000000e+00 : f32
    %16 = vector.broadcast %cst_8 : f32 to vector<16x16xf32>
    %17 = arith.select %14, %16, %15 : vector<16x16xi1>, vector<16x16xf32>
    %18 = arith.truncf %5 : vector<8x16xf32> to vector<8x16xbf16>
    %19 = arith.truncf %17 : vector<16x16xf32> to vector<16x16xbf16>
    %cst_9 = arith.constant dense<0.000000e+00> : vector<8x16xf32>
    %20 = tpu.matmul %18, %19, %cst_9 {dimension_numbers = #tpu.dot_dimension_numbers<[1], [0], [0], [1], [0, 0, 1, 1], [], []>} : vector<8x16xbf16>, vector<16x16xbf16>, vector<8x16xf32> -> vector<8x16xf32>
    %21 = arith.truncf %17 : vector<16x16xf32> to vector<16x16xbf16>
    %22 = arith.truncf %5 : vector<8x16xf32> to vector<8x16xbf16>
    %cst_10 = arith.constant dense<0.000000e+00> : vector<16x8xf32>
    %23 = tpu.matmul %21, %22, %cst_10 {dimension_numbers = #tpu.dot_dimension_numbers<[1], [1], [0], [0], [0, 0, 1, 0], [], []>} : vector<16x16xbf16>, vector<8x16xbf16>, vector<16x8xf32> -> vector<16x8xf32>
    %24 = tpu.iota {dimensions = array<i32: 0>} : vector<8x8xi32>
    %25 = tpu.iota {dimensions = array<i32: 1>} : vector<8x8xi32>
    %26 = arith.cmpi eq, %24, %25 : vector<8x8xi32>
    %27 = arith.truncf %20 : vector<8x16xf32> to vector<8x16xbf16>
    %28 = arith.truncf %23 : vector<16x8xf32> to vector<16x8xbf16>
    %cst_11 = arith.constant dense<0.000000e+00> : vector<8x8xf32>
    %29 = tpu.matmul %27, %28, %cst_11 {dimension_numbers = #tpu.dot_dimension_numbers<[1], [0], [0], [1], [0, 0, 1, 1], [], []>} : vector<8x16xbf16>, vector<16x8xbf16>, vector<8x8xf32> -> vector<8x8xf32>
    %cst_12 = arith.constant 0.000000e+00 : f32
    %30 = vector.broadcast %cst_12 : f32 to vector<8x8xf32>
    %31 = arith.select %26, %30, %29 : vector<8x8xi1>, vector<8x8xf32>
    %c0_13 = arith.constant 0 : index
    %c0_14 = arith.constant 0 : index
    %32 = vector.load %arg10[%c0_13, %c0_14] : memref<8x8xf32, #tpu.memory_space<vmem>>, vector<8x8xf32>
    tpu.vector_store %arg10[%c0_13, %c0_14], %31 {strides = array<i32>} : memref<8x8xf32, #tpu.memory_space<vmem>>, vector<8x8xf32>,
    %c0_15 = arith.constant 0 : index
    %c0_16 = arith.constant 0 : index
    %33 = vector.load %arg4[%c0_15, %c0_16] : memref<128x128xf32, #tpu.memory_space<vmem>>, vector<128x128xf32>
    %c0_17 = arith.constant 0 : index
    %c0_18 = arith.constant 0 : index
    %34 = vector.load %arg5[%c0_17, %c0_18] : memref<1x128xf32, #tpu.memory_space<vmem>>, vector<1x128xf32>
    %c0_19 = arith.constant 0 : index
    %c0_20 = arith.constant 0 : index
    %35 = vector.load %arg6[%c0_19, %c0_20] : memref<128x128xf32, #tpu.memory_space<vmem>>, vector<128x128xf32>
    %c0_21 = arith.constant 0 : index
    %c0_22 = arith.constant 0 : index
    %36 = vector.load %arg7[%c0_21, %c0_22] : memref<1x128xf32, #tpu.memory_space<vmem>>, vector<1x128xf32>
    %cst_23 = arith.constant 0.000000e+00 : f32
    %37 = vector.broadcast %cst_23 : f32 to vector<8x8xf32>
    %38 = arith.cmpf oeq, %31, %37 : vector<8x8xf32>
    %39 = arith.andi %26, %38 : vector<8x8xi1>
    %cst_24 = arith.constant 1.000000e+00 : f32
    %40 = vector.broadcast %cst_24 : f32 to vector<8x8xf32>
    %41 = arith.select %39, %40, %31 : vector<8x8xi1>, vector<8x8xf32>
    %cst_25 = arith.constant 1.000000e+00 : f32
    %42 = vector.broadcast %cst_25 : f32 to vector<8x1xf32>
    %cst_26 = arith.constant dense<0.000000e+00> : vector<8x1xf32>
    %43 = tpu.matmul %41, %42, %cst_26 {dimension_numbers = #tpu.dot_dimension_numbers<[0], [0], [1], [1], [0, 1, 1, 1], [], []>} : vector<8x8xf32>, vector<8x1xf32>, vector<8x1xf32> -> vector<8x1xf32>
    %cst_27 = arith.constant 0.000000e+00 : f32
    %44 = vector.broadcast %cst_27 : f32 to vector<8x1xf32>
    %45 = arith.cmpf ogt, %43, %44 : vector<8x1xf32>
    %46 = math.rsqrt %43 : vector<8x1xf32>
    %cst_28 = arith.constant 0.000000e+00 : f32
    %47 = vector.broadcast %cst_28 : f32 to vector<8x1xf32>
    %48 = arith.select %45, %46, %47 : vector<8x1xi1>, vector<8x1xf32>
    %49 = arith.truncf %11 : vector<8x128xf32> to vector<8x128xbf16>
    %50 = arith.truncf %33 : vector<128x128xf32> to vector<128x128xbf16>
    %cst_29 = arith.constant dense<0.000000e+00> : vector<8x128xf32>
    %51 = tpu.matmul %49, %50, %cst_29 {dimension_numbers = #tpu.dot_dimension_numbers<[1], [0], [0], [1], [0, 0, 1, 1], [], []>} : vector<8x128xbf16>, vector<128x128xbf16>, vector<8x128xf32> -> vector<8x128xf32>
    %52 = vector.broadcast %48 : vector<8x1xf32> to vector<8x128xf32>
    %53 = arith.mulf %51, %52 : vector<8x128xf32>
    %54 = arith.truncf %41 : vector<8x8xf32> to vector<8x8xbf16>
    %55 = arith.truncf %53 : vector<8x128xf32> to vector<8x128xbf16>
    %cst_30 = arith.constant dense<0.000000e+00> : vector<8x128xf32>
    %56 = tpu.matmul %54, %55, %cst_30 {dimension_numbers = #tpu.dot_dimension_numbers<[0], [0], [1], [1], [0, 1, 1, 1], [], []>} : vector<8x8xbf16>, vector<8x128xbf16>, vector<8x128xf32> -> vector<8x128xf32>
    %57 = vector.broadcast %48 : vector<8x1xf32> to vector<8x128xf32>
    %58 = arith.mulf %56, %57 : vector<8x128xf32>
    %59 = vector.broadcast %34 : vector<1x128xf32> to vector<8x128xf32>
    %60 = arith.addf %58, %59 : vector<8x128xf32>
    %cst_31 = arith.constant 0.000000e+00 : f32
    %61 = vector.broadcast %cst_31 : f32 to vector<8x128xf32>
    %62 = arith.maximumf %60, %61 : vector<8x128xf32>
    %63 = arith.truncf %62 : vector<8x128xf32> to vector<8x128xbf16>
    %64 = arith.truncf %35 : vector<128x128xf32> to vector<128x128xbf16>
    %cst_32 = arith.constant dense<0.000000e+00> : vector<8x128xf32>
    %65 = tpu.matmul %63, %64, %cst_32 {dimension_numbers = #tpu.dot_dimension_numbers<[1], [0], [0], [1], [0, 0, 1, 1], [], []>} : vector<8x128xbf16>, vector<128x128xbf16>, vector<8x128xf32> -> vector<8x128xf32>
    %66 = vector.broadcast %48 : vector<8x1xf32> to vector<8x128xf32>
    %67 = arith.mulf %65, %66 : vector<8x128xf32>
    %68 = arith.truncf %41 : vector<8x8xf32> to vector<8x8xbf16>
    %69 = arith.truncf %67 : vector<8x128xf32> to vector<8x128xbf16>
    %cst_33 = arith.constant dense<0.000000e+00> : vector<8x128xf32>
    %70 = tpu.matmul %68, %69, %cst_33 {dimension_numbers = #tpu.dot_dimension_numbers<[0], [0], [1], [1], [0, 1, 1, 1], [], []>} : vector<8x8xbf16>, vector<8x128xbf16>, vector<8x128xf32> -> vector<8x128xf32>
    %71 = vector.broadcast %48 : vector<8x1xf32> to vector<8x128xf32>
    %72 = arith.mulf %70, %71 : vector<8x128xf32>
    %73 = vector.broadcast %36 : vector<1x128xf32> to vector<8x128xf32>
    %74 = arith.addf %72, %73 : vector<8x128xf32>
    %cst_34 = arith.constant 0.000000e+00 : f32
    %75 = vector.broadcast %cst_34 : f32 to vector<8x128xf32>
    %76 = arith.maximumf %74, %75 : vector<8x128xf32>
    %c0_35 = arith.constant 0 : index
    %c0_36 = arith.constant 0 : index
    %77 = vector.load %arg9[%c0_35, %c0_36] : memref<8x128xf32, #tpu.memory_space<vmem>>, vector<8x128xf32>
    tpu.vector_store %arg9[%c0_35, %c0_36], %76 {strides = array<i32>} : memref<8x128xf32, #tpu.memory_space<vmem>>, vector<8x128xf32>,
    %c0_37 = arith.constant 0 : index
    %c0_38 = arith.constant 0 : index
    %78 = vector.load %arg8[%c0_37, %c0_38] : memref<1x128xf32, #tpu.memory_space<vmem>>, vector<1x128xf32>
    %79 = arith.mulf %78, %78 : vector<1x128xf32>
    %cst_39 = arith.constant dense<0.000000e+00> : vector<1xf32>
    %80 = vector.multi_reduction <add>, %79, %cst_39 [1] : vector<1x128xf32> to vector<1xf32>
    %81 = vector.shape_cast %80 : vector<1xf32> to vector<1x1xf32>
    %82 = math.rsqrt %81 : vector<1x1xf32>
    %83 = vector.broadcast %78 : vector<1x128xf32> to vector<8x128xf32>
    %84 = arith.mulf %76, %83 : vector<8x128xf32>
    %cst_40 = arith.constant dense<0.000000e+00> : vector<8xf32>
    %85 = vector.multi_reduction <add>, %84, %cst_40 [1] : vector<8x128xf32> to vector<8xf32>
    %86 = vector.shape_cast %85 : vector<8xf32> to vector<8x1xf32>
    %87 = vector.broadcast %82 : vector<1x1xf32> to vector<8x1xf32>
    %88 = arith.mulf %86, %87 : vector<8x1xf32>
    %89 = math.tanh %88 : vector<8x1xf32>
    %c0_41 = arith.constant 0 : index
    %c0_42 = arith.constant 0 : index
    %90 = vector.load %arg11[%c0_41, %c0_42] : memref<8x1xf32, #tpu.memory_space<vmem>>, vector<8x1xf32>
    tpu.vector_store %arg11[%c0_41, %c0_42], %89 {strides = array<i32>} : memref<8x1xf32, #tpu.memory_space<vmem>>, vector<8x1xf32>,
    return
  }
}

module attributes {stable_mosaic.version = 11 : i64} {
  func.func @_down_level_kernel(%arg0: memref<4x1xi32, #tpu.memory_space<vmem>>, %arg1: memref<8x8xf32, #tpu.memory_space<vmem>>, %arg2: memref<8x128xf32, #tpu.memory_space<vmem>>, %arg3: memref<8x1xf32, #tpu.memory_space<vmem>>, %arg4: memref<128x128xf32, #tpu.memory_space<vmem>>, %arg5: memref<1x128xf32, #tpu.memory_space<vmem>>, %arg6: memref<128x128xf32, #tpu.memory_space<vmem>>, %arg7: memref<1x128xf32, #tpu.memory_space<vmem>>, %arg8: memref<1x128xf32, #tpu.memory_space<vmem>>, %arg9: memref<4x128xf32, #tpu.memory_space<vmem>>, %arg10: memref<4x4xf32, #tpu.memory_space<vmem>>, %arg11: memref<4x1xf32, #tpu.memory_space<vmem>>) attributes {dimension_semantics = [], scalar_prefetch = 0 : i64, scratch_operands = 0 : i64, tpu.core_type = #tpu.core_type<tc>} {
    %c0 = arith.constant 0 : index
    %c0_0 = arith.constant 0 : index
    %0 = vector.load %arg0[%c0, %c0_0] : memref<4x1xi32, #tpu.memory_space<vmem>>, vector<4x1xi32>
    %1 = tpu.iota {dimensions = array<i32: 1>} : vector<4x8xi32>
    %2 = vector.broadcast %0 : vector<4x1xi32> to vector<4x8xi32>
    %3 = arith.cmpi eq, %1, %2 : vector<4x8xi32>
    %4 = arith.extui %3 : vector<4x8xi1> to vector<4x8xi32>
    %5 = arith.sitofp %4 : vector<4x8xi32> to vector<4x8xf32>
    %c0_1 = arith.constant 0 : index
    %c0_2 = arith.constant 0 : index
    %6 = vector.load %arg2[%c0_1, %c0_2] : memref<8x128xf32, #tpu.memory_space<vmem>>, vector<8x128xf32>
    %cst = arith.constant dense<0.000000e+00> : vector<4x128xf32>
    %7 = tpu.matmul %5, %6, %cst {dimension_numbers = #tpu.dot_dimension_numbers<[1], [0], [0], [1], [0, 0, 1, 1], [], []>} : vector<4x8xf32>, vector<8x128xf32>, vector<4x128xf32> -> vector<4x128xf32>
    %c0_3 = arith.constant 0 : index
    %c0_4 = arith.constant 0 : index
    %8 = vector.load %arg3[%c0_3, %c0_4] : memref<8x1xf32, #tpu.memory_space<vmem>>, vector<8x1xf32>
    %cst_5 = arith.constant dense<0.000000e+00> : vector<4x1xf32>
    %9 = tpu.matmul %5, %8, %cst_5 {dimension_numbers = #tpu.dot_dimension_numbers<[1], [0], [0], [1], [0, 0, 1, 1], [], []>} : vector<4x8xf32>, vector<8x1xf32>, vector<4x1xf32> -> vector<4x1xf32>
    %10 = vector.broadcast %9 : vector<4x1xf32> to vector<4x128xf32>
    %11 = arith.mulf %7, %10 : vector<4x128xf32>
    %12 = tpu.iota {dimensions = array<i32: 0>} : vector<8x8xi32>
    %13 = tpu.iota {dimensions = array<i32: 1>} : vector<8x8xi32>
    %14 = arith.cmpi eq, %12, %13 : vector<8x8xi32>
    %c0_6 = arith.constant 0 : index
    %c0_7 = arith.constant 0 : index
    %15 = vector.load %arg1[%c0_6, %c0_7] : memref<8x8xf32, #tpu.memory_space<vmem>>, vector<8x8xf32>
    %cst_8 = arith.constant 1.000000e+00 : f32
    %16 = vector.broadcast %cst_8 : f32 to vector<8x8xf32>
    %17 = arith.select %14, %16, %15 : vector<8x8xi1>, vector<8x8xf32>
    %18 = arith.truncf %5 : vector<4x8xf32> to vector<4x8xbf16>
    %19 = arith.truncf %17 : vector<8x8xf32> to vector<8x8xbf16>
    %cst_9 = arith.constant dense<0.000000e+00> : vector<4x8xf32>
    %20 = tpu.matmul %18, %19, %cst_9 {dimension_numbers = #tpu.dot_dimension_numbers<[1], [0], [0], [1], [0, 0, 1, 1], [], []>} : vector<4x8xbf16>, vector<8x8xbf16>, vector<4x8xf32> -> vector<4x8xf32>
    %21 = arith.truncf %17 : vector<8x8xf32> to vector<8x8xbf16>
    %22 = arith.truncf %5 : vector<4x8xf32> to vector<4x8xbf16>
    %cst_10 = arith.constant dense<0.000000e+00> : vector<8x4xf32>
    %23 = tpu.matmul %21, %22, %cst_10 {dimension_numbers = #tpu.dot_dimension_numbers<[1], [1], [0], [0], [0, 0, 1, 0], [], []>} : vector<8x8xbf16>, vector<4x8xbf16>, vector<8x4xf32> -> vector<8x4xf32>
    %24 = tpu.iota {dimensions = array<i32: 0>} : vector<4x4xi32>
    %25 = tpu.iota {dimensions = array<i32: 1>} : vector<4x4xi32>
    %26 = arith.cmpi eq, %24, %25 : vector<4x4xi32>
    %27 = arith.truncf %20 : vector<4x8xf32> to vector<4x8xbf16>
    %28 = arith.truncf %23 : vector<8x4xf32> to vector<8x4xbf16>
    %cst_11 = arith.constant dense<0.000000e+00> : vector<4x4xf32>
    %29 = tpu.matmul %27, %28, %cst_11 {dimension_numbers = #tpu.dot_dimension_numbers<[1], [0], [0], [1], [0, 0, 1, 1], [], []>} : vector<4x8xbf16>, vector<8x4xbf16>, vector<4x4xf32> -> vector<4x4xf32>
    %cst_12 = arith.constant 0.000000e+00 : f32
    %30 = vector.broadcast %cst_12 : f32 to vector<4x4xf32>
    %31 = arith.select %26, %30, %29 : vector<4x4xi1>, vector<4x4xf32>
    %c0_13 = arith.constant 0 : index
    %c0_14 = arith.constant 0 : index
    %32 = vector.load %arg10[%c0_13, %c0_14] : memref<4x4xf32, #tpu.memory_space<vmem>>, vector<4x4xf32>
    tpu.vector_store %arg10[%c0_13, %c0_14], %31 {strides = array<i32>} : memref<4x4xf32, #tpu.memory_space<vmem>>, vector<4x4xf32>,
    %c0_15 = arith.constant 0 : index
    %c0_16 = arith.constant 0 : index
    %33 = vector.load %arg4[%c0_15, %c0_16] : memref<128x128xf32, #tpu.memory_space<vmem>>, vector<128x128xf32>
    %c0_17 = arith.constant 0 : index
    %c0_18 = arith.constant 0 : index
    %34 = vector.load %arg5[%c0_17, %c0_18] : memref<1x128xf32, #tpu.memory_space<vmem>>, vector<1x128xf32>
    %c0_19 = arith.constant 0 : index
    %c0_20 = arith.constant 0 : index
    %35 = vector.load %arg6[%c0_19, %c0_20] : memref<128x128xf32, #tpu.memory_space<vmem>>, vector<128x128xf32>
    %c0_21 = arith.constant 0 : index
    %c0_22 = arith.constant 0 : index
    %36 = vector.load %arg7[%c0_21, %c0_22] : memref<1x128xf32, #tpu.memory_space<vmem>>, vector<1x128xf32>
    %cst_23 = arith.constant 0.000000e+00 : f32
    %37 = vector.broadcast %cst_23 : f32 to vector<4x4xf32>
    %38 = arith.cmpf oeq, %31, %37 : vector<4x4xf32>
    %39 = arith.andi %26, %38 : vector<4x4xi1>
    %cst_24 = arith.constant 1.000000e+00 : f32
    %40 = vector.broadcast %cst_24 : f32 to vector<4x4xf32>
    %41 = arith.select %39, %40, %31 : vector<4x4xi1>, vector<4x4xf32>
    %cst_25 = arith.constant 1.000000e+00 : f32
    %42 = vector.broadcast %cst_25 : f32 to vector<4x1xf32>
    %cst_26 = arith.constant dense<0.000000e+00> : vector<4x1xf32>
    %43 = tpu.matmul %41, %42, %cst_26 {dimension_numbers = #tpu.dot_dimension_numbers<[0], [0], [1], [1], [0, 1, 1, 1], [], []>} : vector<4x4xf32>, vector<4x1xf32>, vector<4x1xf32> -> vector<4x1xf32>
    %cst_27 = arith.constant 0.000000e+00 : f32
    %44 = vector.broadcast %cst_27 : f32 to vector<4x1xf32>
    %45 = arith.cmpf ogt, %43, %44 : vector<4x1xf32>
    %46 = math.rsqrt %43 : vector<4x1xf32>
    %cst_28 = arith.constant 0.000000e+00 : f32
    %47 = vector.broadcast %cst_28 : f32 to vector<4x1xf32>
    %48 = arith.select %45, %46, %47 : vector<4x1xi1>, vector<4x1xf32>
    %49 = arith.truncf %11 : vector<4x128xf32> to vector<4x128xbf16>
    %50 = arith.truncf %33 : vector<128x128xf32> to vector<128x128xbf16>
    %cst_29 = arith.constant dense<0.000000e+00> : vector<4x128xf32>
    %51 = tpu.matmul %49, %50, %cst_29 {dimension_numbers = #tpu.dot_dimension_numbers<[1], [0], [0], [1], [0, 0, 1, 1], [], []>} : vector<4x128xbf16>, vector<128x128xbf16>, vector<4x128xf32> -> vector<4x128xf32>
    %52 = vector.broadcast %48 : vector<4x1xf32> to vector<4x128xf32>
    %53 = arith.mulf %51, %52 : vector<4x128xf32>
    %54 = arith.truncf %41 : vector<4x4xf32> to vector<4x4xbf16>
    %55 = arith.truncf %53 : vector<4x128xf32> to vector<4x128xbf16>
    %cst_30 = arith.constant dense<0.000000e+00> : vector<4x128xf32>
    %56 = tpu.matmul %54, %55, %cst_30 {dimension_numbers = #tpu.dot_dimension_numbers<[0], [0], [1], [1], [0, 1, 1, 1], [], []>} : vector<4x4xbf16>, vector<4x128xbf16>, vector<4x128xf32> -> vector<4x128xf32>
    %57 = vector.broadcast %48 : vector<4x1xf32> to vector<4x128xf32>
    %58 = arith.mulf %56, %57 : vector<4x128xf32>
    %59 = vector.broadcast %34 : vector<1x128xf32> to vector<4x128xf32>
    %60 = arith.addf %58, %59 : vector<4x128xf32>
    %cst_31 = arith.constant 0.000000e+00 : f32
    %61 = vector.broadcast %cst_31 : f32 to vector<4x128xf32>
    %62 = arith.maximumf %60, %61 : vector<4x128xf32>
    %63 = arith.truncf %62 : vector<4x128xf32> to vector<4x128xbf16>
    %64 = arith.truncf %35 : vector<128x128xf32> to vector<128x128xbf16>
    %cst_32 = arith.constant dense<0.000000e+00> : vector<4x128xf32>
    %65 = tpu.matmul %63, %64, %cst_32 {dimension_numbers = #tpu.dot_dimension_numbers<[1], [0], [0], [1], [0, 0, 1, 1], [], []>} : vector<4x128xbf16>, vector<128x128xbf16>, vector<4x128xf32> -> vector<4x128xf32>
    %66 = vector.broadcast %48 : vector<4x1xf32> to vector<4x128xf32>
    %67 = arith.mulf %65, %66 : vector<4x128xf32>
    %68 = arith.truncf %41 : vector<4x4xf32> to vector<4x4xbf16>
    %69 = arith.truncf %67 : vector<4x128xf32> to vector<4x128xbf16>
    %cst_33 = arith.constant dense<0.000000e+00> : vector<4x128xf32>
    %70 = tpu.matmul %68, %69, %cst_33 {dimension_numbers = #tpu.dot_dimension_numbers<[0], [0], [1], [1], [0, 1, 1, 1], [], []>} : vector<4x4xbf16>, vector<4x128xbf16>, vector<4x128xf32> -> vector<4x128xf32>
    %71 = vector.broadcast %48 : vector<4x1xf32> to vector<4x128xf32>
    %72 = arith.mulf %70, %71 : vector<4x128xf32>
    %73 = vector.broadcast %36 : vector<1x128xf32> to vector<4x128xf32>
    %74 = arith.addf %72, %73 : vector<4x128xf32>
    %cst_34 = arith.constant 0.000000e+00 : f32
    %75 = vector.broadcast %cst_34 : f32 to vector<4x128xf32>
    %76 = arith.maximumf %74, %75 : vector<4x128xf32>
    %c0_35 = arith.constant 0 : index
    %c0_36 = arith.constant 0 : index
    %77 = vector.load %arg9[%c0_35, %c0_36] : memref<4x128xf32, #tpu.memory_space<vmem>>, vector<4x128xf32>
    tpu.vector_store %arg9[%c0_35, %c0_36], %76 {strides = array<i32>} : memref<4x128xf32, #tpu.memory_space<vmem>>, vector<4x128xf32>,
    %c0_37 = arith.constant 0 : index
    %c0_38 = arith.constant 0 : index
    %78 = vector.load %arg8[%c0_37, %c0_38] : memref<1x128xf32, #tpu.memory_space<vmem>>, vector<1x128xf32>
    %79 = arith.mulf %78, %78 : vector<1x128xf32>
    %cst_39 = arith.constant dense<0.000000e+00> : vector<1xf32>
    %80 = vector.multi_reduction <add>, %79, %cst_39 [1] : vector<1x128xf32> to vector<1xf32>
    %81 = vector.shape_cast %80 : vector<1xf32> to vector<1x1xf32>
    %82 = math.rsqrt %81 : vector<1x1xf32>
    %83 = vector.broadcast %78 : vector<1x128xf32> to vector<4x128xf32>
    %84 = arith.mulf %76, %83 : vector<4x128xf32>
    %cst_40 = arith.constant dense<0.000000e+00> : vector<4xf32>
    %85 = vector.multi_reduction <add>, %84, %cst_40 [1] : vector<4x128xf32> to vector<4xf32>
    %86 = vector.shape_cast %85 : vector<4xf32> to vector<4x1xf32>
    %87 = vector.broadcast %82 : vector<1x1xf32> to vector<4x1xf32>
    %88 = arith.mulf %86, %87 : vector<4x1xf32>
    %89 = math.tanh %88 : vector<4x1xf32>
    %c0_41 = arith.constant 0 : index
    %c0_42 = arith.constant 0 : index
    %90 = vector.load %arg11[%c0_41, %c0_42] : memref<4x1xf32, #tpu.memory_space<vmem>>, vector<4x1xf32>
    tpu.vector_store %arg11[%c0_41, %c0_42], %89 {strides = array<i32>} : memref<4x1xf32, #tpu.memory_space<vmem>>, vector<4x1xf32>,
    return
  }
}

module attributes {stable_mosaic.version = 11 : i64} {
  func.func @_up_level_kernel(%arg0: memref<4x1xi32, #tpu.memory_space<vmem>>, %arg1: memref<8x8xf32, #tpu.memory_space<vmem>>, %arg2: memref<8x128xf32, #tpu.memory_space<vmem>>, %arg3: memref<4x128xf32, #tpu.memory_space<vmem>>, %arg4: memref<128x128xf32, #tpu.memory_space<vmem>>, %arg5: memref<1x128xf32, #tpu.memory_space<vmem>>, %arg6: memref<128x128xf32, #tpu.memory_space<vmem>>, %arg7: memref<1x128xf32, #tpu.memory_space<vmem>>, %arg8: memref<8x128xf32, #tpu.memory_space<vmem>>) attributes {dimension_semantics = [], scalar_prefetch = 0 : i64, scratch_operands = 0 : i64, tpu.core_type = #tpu.core_type<tc>} {
    %c0 = arith.constant 0 : index
    %c0_0 = arith.constant 0 : index
    %0 = vector.load %arg0[%c0, %c0_0] : memref<4x1xi32, #tpu.memory_space<vmem>>, vector<4x1xi32>
    %1 = tpu.iota {dimensions = array<i32: 1>} : vector<4x8xi32>
    %2 = vector.broadcast %0 : vector<4x1xi32> to vector<4x8xi32>
    %3 = arith.cmpi eq, %1, %2 : vector<4x8xi32>
    %4 = arith.extui %3 : vector<4x8xi1> to vector<4x8xi32>
    %5 = arith.sitofp %4 : vector<4x8xi32> to vector<4x8xf32>
    %c0_1 = arith.constant 0 : index
    %c0_2 = arith.constant 0 : index
    %6 = vector.load %arg3[%c0_1, %c0_2] : memref<4x128xf32, #tpu.memory_space<vmem>>, vector<4x128xf32>
    %cst = arith.constant dense<0.000000e+00> : vector<8x128xf32>
    %7 = tpu.matmul %5, %6, %cst {dimension_numbers = #tpu.dot_dimension_numbers<[0], [0], [1], [1], [0, 1, 1, 1], [], []>} : vector<4x8xf32>, vector<4x128xf32>, vector<8x128xf32> -> vector<8x128xf32>
    %c0_3 = arith.constant 0 : index
    %c0_4 = arith.constant 0 : index
    %8 = vector.load %arg2[%c0_3, %c0_4] : memref<8x128xf32, #tpu.memory_space<vmem>>, vector<8x128xf32>
    %9 = arith.addf %8, %7 : vector<8x128xf32>
    %c0_5 = arith.constant 0 : index
    %c0_6 = arith.constant 0 : index
    %10 = vector.load %arg1[%c0_5, %c0_6] : memref<8x8xf32, #tpu.memory_space<vmem>>, vector<8x8xf32>
    %11 = tpu.iota {dimensions = array<i32: 0>} : vector<8x8xi32>
    %12 = tpu.iota {dimensions = array<i32: 1>} : vector<8x8xi32>
    %13 = arith.cmpi eq, %11, %12 : vector<8x8xi32>
    %c0_7 = arith.constant 0 : index
    %c0_8 = arith.constant 0 : index
    %14 = vector.load %arg4[%c0_7, %c0_8] : memref<128x128xf32, #tpu.memory_space<vmem>>, vector<128x128xf32>
    %c0_9 = arith.constant 0 : index
    %c0_10 = arith.constant 0 : index
    %15 = vector.load %arg5[%c0_9, %c0_10] : memref<1x128xf32, #tpu.memory_space<vmem>>, vector<1x128xf32>
    %c0_11 = arith.constant 0 : index
    %c0_12 = arith.constant 0 : index
    %16 = vector.load %arg6[%c0_11, %c0_12] : memref<128x128xf32, #tpu.memory_space<vmem>>, vector<128x128xf32>
    %c0_13 = arith.constant 0 : index
    %c0_14 = arith.constant 0 : index
    %17 = vector.load %arg7[%c0_13, %c0_14] : memref<1x128xf32, #tpu.memory_space<vmem>>, vector<1x128xf32>
    %cst_15 = arith.constant 0.000000e+00 : f32
    %18 = vector.broadcast %cst_15 : f32 to vector<8x8xf32>
    %19 = arith.cmpf oeq, %10, %18 : vector<8x8xf32>
    %20 = arith.andi %13, %19 : vector<8x8xi1>
    %cst_16 = arith.constant 1.000000e+00 : f32
    %21 = vector.broadcast %cst_16 : f32 to vector<8x8xf32>
    %22 = arith.select %20, %21, %10 : vector<8x8xi1>, vector<8x8xf32>
    %cst_17 = arith.constant 1.000000e+00 : f32
    %23 = vector.broadcast %cst_17 : f32 to vector<8x1xf32>
    %cst_18 = arith.constant dense<0.000000e+00> : vector<8x1xf32>
    %24 = tpu.matmul %22, %23, %cst_18 {dimension_numbers = #tpu.dot_dimension_numbers<[0], [0], [1], [1], [0, 1, 1, 1], [], []>} : vector<8x8xf32>, vector<8x1xf32>, vector<8x1xf32> -> vector<8x1xf32>
    %cst_19 = arith.constant 0.000000e+00 : f32
    %25 = vector.broadcast %cst_19 : f32 to vector<8x1xf32>
    %26 = arith.cmpf ogt, %24, %25 : vector<8x1xf32>
    %27 = math.rsqrt %24 : vector<8x1xf32>
    %cst_20 = arith.constant 0.000000e+00 : f32
    %28 = vector.broadcast %cst_20 : f32 to vector<8x1xf32>
    %29 = arith.select %26, %27, %28 : vector<8x1xi1>, vector<8x1xf32>
    %30 = arith.truncf %9 : vector<8x128xf32> to vector<8x128xbf16>
    %31 = arith.truncf %14 : vector<128x128xf32> to vector<128x128xbf16>
    %cst_21 = arith.constant dense<0.000000e+00> : vector<8x128xf32>
    %32 = tpu.matmul %30, %31, %cst_21 {dimension_numbers = #tpu.dot_dimension_numbers<[1], [0], [0], [1], [0, 0, 1, 1], [], []>} : vector<8x128xbf16>, vector<128x128xbf16>, vector<8x128xf32> -> vector<8x128xf32>
    %33 = vector.broadcast %29 : vector<8x1xf32> to vector<8x128xf32>
    %34 = arith.mulf %32, %33 : vector<8x128xf32>
    %35 = arith.truncf %22 : vector<8x8xf32> to vector<8x8xbf16>
    %36 = arith.truncf %34 : vector<8x128xf32> to vector<8x128xbf16>
    %cst_22 = arith.constant dense<0.000000e+00> : vector<8x128xf32>
    %37 = tpu.matmul %35, %36, %cst_22 {dimension_numbers = #tpu.dot_dimension_numbers<[0], [0], [1], [1], [0, 1, 1, 1], [], []>} : vector<8x8xbf16>, vector<8x128xbf16>, vector<8x128xf32> -> vector<8x128xf32>
    %38 = vector.broadcast %29 : vector<8x1xf32> to vector<8x128xf32>
    %39 = arith.mulf %37, %38 : vector<8x128xf32>
    %40 = vector.broadcast %15 : vector<1x128xf32> to vector<8x128xf32>
    %41 = arith.addf %39, %40 : vector<8x128xf32>
    %cst_23 = arith.constant 0.000000e+00 : f32
    %42 = vector.broadcast %cst_23 : f32 to vector<8x128xf32>
    %43 = arith.maximumf %41, %42 : vector<8x128xf32>
    %44 = arith.truncf %43 : vector<8x128xf32> to vector<8x128xbf16>
    %45 = arith.truncf %16 : vector<128x128xf32> to vector<128x128xbf16>
    %cst_24 = arith.constant dense<0.000000e+00> : vector<8x128xf32>
    %46 = tpu.matmul %44, %45, %cst_24 {dimension_numbers = #tpu.dot_dimension_numbers<[1], [0], [0], [1], [0, 0, 1, 1], [], []>} : vector<8x128xbf16>, vector<128x128xbf16>, vector<8x128xf32> -> vector<8x128xf32>
    %47 = vector.broadcast %29 : vector<8x1xf32> to vector<8x128xf32>
    %48 = arith.mulf %46, %47 : vector<8x128xf32>
    %49 = arith.truncf %22 : vector<8x8xf32> to vector<8x8xbf16>
    %50 = arith.truncf %48 : vector<8x128xf32> to vector<8x128xbf16>
    %cst_25 = arith.constant dense<0.000000e+00> : vector<8x128xf32>
    %51 = tpu.matmul %49, %50, %cst_25 {dimension_numbers = #tpu.dot_dimension_numbers<[0], [0], [1], [1], [0, 1, 1, 1], [], []>} : vector<8x8xbf16>, vector<8x128xbf16>, vector<8x128xf32> -> vector<8x128xf32>
    %52 = vector.broadcast %29 : vector<8x1xf32> to vector<8x128xf32>
    %53 = arith.mulf %51, %52 : vector<8x128xf32>
    %54 = vector.broadcast %17 : vector<1x128xf32> to vector<8x128xf32>
    %55 = arith.addf %53, %54 : vector<8x128xf32>
    %cst_26 = arith.constant 0.000000e+00 : f32
    %56 = vector.broadcast %cst_26 : f32 to vector<8x128xf32>
    %57 = arith.maximumf %55, %56 : vector<8x128xf32>
    %c0_27 = arith.constant 0 : index
    %c0_28 = arith.constant 0 : index
    %58 = vector.load %arg8[%c0_27, %c0_28] : memref<8x128xf32, #tpu.memory_space<vmem>>, vector<8x128xf32>
    tpu.vector_store %arg8[%c0_27, %c0_28], %57 {strides = array<i32>} : memref<8x128xf32, #tpu.memory_space<vmem>>, vector<8x128xf32>,
    return
  }
}

module attributes {stable_mosaic.version = 11 : i64} {
  func.func @_up_level_kernel(%arg0: memref<8x1xi32, #tpu.memory_space<vmem>>, %arg1: memref<16x16xf32, #tpu.memory_space<vmem>>, %arg2: memref<16x128xf32, #tpu.memory_space<vmem>>, %arg3: memref<8x128xf32, #tpu.memory_space<vmem>>, %arg4: memref<128x128xf32, #tpu.memory_space<vmem>>, %arg5: memref<1x128xf32, #tpu.memory_space<vmem>>, %arg6: memref<128x128xf32, #tpu.memory_space<vmem>>, %arg7: memref<1x128xf32, #tpu.memory_space<vmem>>, %arg8: memref<16x128xf32, #tpu.memory_space<vmem>>) attributes {dimension_semantics = [], scalar_prefetch = 0 : i64, scratch_operands = 0 : i64, tpu.core_type = #tpu.core_type<tc>} {
    %c0 = arith.constant 0 : index
    %c0_0 = arith.constant 0 : index
    %0 = vector.load %arg0[%c0, %c0_0] : memref<8x1xi32, #tpu.memory_space<vmem>>, vector<8x1xi32>
    %1 = tpu.iota {dimensions = array<i32: 1>} : vector<8x16xi32>
    %2 = vector.broadcast %0 : vector<8x1xi32> to vector<8x16xi32>
    %3 = arith.cmpi eq, %1, %2 : vector<8x16xi32>
    %4 = arith.extui %3 : vector<8x16xi1> to vector<8x16xi32>
    %5 = arith.sitofp %4 : vector<8x16xi32> to vector<8x16xf32>
    %c0_1 = arith.constant 0 : index
    %c0_2 = arith.constant 0 : index
    %6 = vector.load %arg3[%c0_1, %c0_2] : memref<8x128xf32, #tpu.memory_space<vmem>>, vector<8x128xf32>
    %cst = arith.constant dense<0.000000e+00> : vector<16x128xf32>
    %7 = tpu.matmul %5, %6, %cst {dimension_numbers = #tpu.dot_dimension_numbers<[0], [0], [1], [1], [0, 1, 1, 1], [], []>} : vector<8x16xf32>, vector<8x128xf32>, vector<16x128xf32> -> vector<16x128xf32>
    %c0_3 = arith.constant 0 : index
    %c0_4 = arith.constant 0 : index
    %8 = vector.load %arg2[%c0_3, %c0_4] : memref<16x128xf32, #tpu.memory_space<vmem>>, vector<16x128xf32>
    %9 = arith.addf %8, %7 : vector<16x128xf32>
    %c0_5 = arith.constant 0 : index
    %c0_6 = arith.constant 0 : index
    %10 = vector.load %arg1[%c0_5, %c0_6] : memref<16x16xf32, #tpu.memory_space<vmem>>, vector<16x16xf32>
    %11 = tpu.iota {dimensions = array<i32: 0>} : vector<16x16xi32>
    %12 = tpu.iota {dimensions = array<i32: 1>} : vector<16x16xi32>
    %13 = arith.cmpi eq, %11, %12 : vector<16x16xi32>
    %c0_7 = arith.constant 0 : index
    %c0_8 = arith.constant 0 : index
    %14 = vector.load %arg4[%c0_7, %c0_8] : memref<128x128xf32, #tpu.memory_space<vmem>>, vector<128x128xf32>
    %c0_9 = arith.constant 0 : index
    %c0_10 = arith.constant 0 : index
    %15 = vector.load %arg5[%c0_9, %c0_10] : memref<1x128xf32, #tpu.memory_space<vmem>>, vector<1x128xf32>
    %c0_11 = arith.constant 0 : index
    %c0_12 = arith.constant 0 : index
    %16 = vector.load %arg6[%c0_11, %c0_12] : memref<128x128xf32, #tpu.memory_space<vmem>>, vector<128x128xf32>
    %c0_13 = arith.constant 0 : index
    %c0_14 = arith.constant 0 : index
    %17 = vector.load %arg7[%c0_13, %c0_14] : memref<1x128xf32, #tpu.memory_space<vmem>>, vector<1x128xf32>
    %cst_15 = arith.constant 0.000000e+00 : f32
    %18 = vector.broadcast %cst_15 : f32 to vector<16x16xf32>
    %19 = arith.cmpf oeq, %10, %18 : vector<16x16xf32>
    %20 = arith.andi %13, %19 : vector<16x16xi1>
    %cst_16 = arith.constant 1.000000e+00 : f32
    %21 = vector.broadcast %cst_16 : f32 to vector<16x16xf32>
    %22 = arith.select %20, %21, %10 : vector<16x16xi1>, vector<16x16xf32>
    %cst_17 = arith.constant 1.000000e+00 : f32
    %23 = vector.broadcast %cst_17 : f32 to vector<16x1xf32>
    %cst_18 = arith.constant dense<0.000000e+00> : vector<16x1xf32>
    %24 = tpu.matmul %22, %23, %cst_18 {dimension_numbers = #tpu.dot_dimension_numbers<[0], [0], [1], [1], [0, 1, 1, 1], [], []>} : vector<16x16xf32>, vector<16x1xf32>, vector<16x1xf32> -> vector<16x1xf32>
    %cst_19 = arith.constant 0.000000e+00 : f32
    %25 = vector.broadcast %cst_19 : f32 to vector<16x1xf32>
    %26 = arith.cmpf ogt, %24, %25 : vector<16x1xf32>
    %27 = math.rsqrt %24 : vector<16x1xf32>
    %cst_20 = arith.constant 0.000000e+00 : f32
    %28 = vector.broadcast %cst_20 : f32 to vector<16x1xf32>
    %29 = arith.select %26, %27, %28 : vector<16x1xi1>, vector<16x1xf32>
    %30 = arith.truncf %9 : vector<16x128xf32> to vector<16x128xbf16>
    %31 = arith.truncf %14 : vector<128x128xf32> to vector<128x128xbf16>
    %cst_21 = arith.constant dense<0.000000e+00> : vector<16x128xf32>
    %32 = tpu.matmul %30, %31, %cst_21 {dimension_numbers = #tpu.dot_dimension_numbers<[1], [0], [0], [1], [0, 0, 1, 1], [], []>} : vector<16x128xbf16>, vector<128x128xbf16>, vector<16x128xf32> -> vector<16x128xf32>
    %33 = vector.broadcast %29 : vector<16x1xf32> to vector<16x128xf32>
    %34 = arith.mulf %32, %33 : vector<16x128xf32>
    %35 = arith.truncf %22 : vector<16x16xf32> to vector<16x16xbf16>
    %36 = arith.truncf %34 : vector<16x128xf32> to vector<16x128xbf16>
    %cst_22 = arith.constant dense<0.000000e+00> : vector<16x128xf32>
    %37 = tpu.matmul %35, %36, %cst_22 {dimension_numbers = #tpu.dot_dimension_numbers<[0], [0], [1], [1], [0, 1, 1, 1], [], []>} : vector<16x16xbf16>, vector<16x128xbf16>, vector<16x128xf32> -> vector<16x128xf32>
    %38 = vector.broadcast %29 : vector<16x1xf32> to vector<16x128xf32>
    %39 = arith.mulf %37, %38 : vector<16x128xf32>
    %40 = vector.broadcast %15 : vector<1x128xf32> to vector<16x128xf32>
    %41 = arith.addf %39, %40 : vector<16x128xf32>
    %cst_23 = arith.constant 0.000000e+00 : f32
    %42 = vector.broadcast %cst_23 : f32 to vector<16x128xf32>
    %43 = arith.maximumf %41, %42 : vector<16x128xf32>
    %44 = arith.truncf %43 : vector<16x128xf32> to vector<16x128xbf16>
    %45 = arith.truncf %16 : vector<128x128xf32> to vector<128x128xbf16>
    %cst_24 = arith.constant dense<0.000000e+00> : vector<16x128xf32>
    %46 = tpu.matmul %44, %45, %cst_24 {dimension_numbers = #tpu.dot_dimension_numbers<[1], [0], [0], [1], [0, 0, 1, 1], [], []>} : vector<16x128xbf16>, vector<128x128xbf16>, vector<16x128xf32> -> vector<16x128xf32>
    %47 = vector.broadcast %29 : vector<16x1xf32> to vector<16x128xf32>
    %48 = arith.mulf %46, %47 : vector<16x128xf32>
    %49 = arith.truncf %22 : vector<16x16xf32> to vector<16x16xbf16>
    %50 = arith.truncf %48 : vector<16x128xf32> to vector<16x128xbf16>
    %cst_25 = arith.constant dense<0.000000e+00> : vector<16x128xf32>
    %51 = tpu.matmul %49, %50, %cst_25 {dimension_numbers = #tpu.dot_dimension_numbers<[0], [0], [1], [1], [0, 1, 1, 1], [], []>} : vector<16x16xbf16>, vector<16x128xbf16>, vector<16x128xf32> -> vector<16x128xf32>
    %52 = vector.broadcast %29 : vector<16x1xf32> to vector<16x128xf32>
    %53 = arith.mulf %51, %52 : vector<16x128xf32>
    %54 = vector.broadcast %17 : vector<1x128xf32> to vector<16x128xf32>
    %55 = arith.addf %53, %54 : vector<16x128xf32>
    %c0_26 = arith.constant 0 : index
    %c0_27 = arith.constant 0 : index
    %56 = vector.load %arg8[%c0_26, %c0_27] : memref<16x128xf32, #tpu.memory_space<vmem>>, vector<16x128xf32>
    tpu.vector_store %arg8[%c0_26, %c0_27], %55 {strides = array<i32>} : memref<16x128xf32, #tpu.memory_space<vmem>>, vector<16x128xf32>,
    return
  }
}

</mosaic_0001>

<llo_original>
// kernel: graph_unet_v2_forward.5
$region0: #{graph_unet_v2_forward.5}
  #allocation0 [shape = 'u32[]', space=smem, size = 0x4, offset = 0x4, fixed_abs, tag = 'smem constant byte address 0x4 - core index']
  #allocation1 [shape = 'u32[144,128]{1,0:T(1,128)}', space=vmem, size = 0x12000, scoped, tag = 'internal scratch']
  %s0 = inlined_call_operand.vmem [shape: f32[16,16], index: 0, kind: input, shape index: {}]
  %s1 = inlined_call_operand.vmem [shape: f32[16,128], index: 1, kind: input, shape index: {}]
  %s2 = inlined_call_operand.hbm [shape: f32[128,128], index: 2, kind: input, shape index: {}]
  %s3 = inlined_call_operand.vmem [shape: f32[1,128], index: 3, kind: input, shape index: {}]
  %s4 = inlined_call_operand.hbm [shape: f32[128,128], index: 4, kind: input, shape index: {}]
  %s5 = inlined_call_operand.vmem [shape: f32[1,128], index: 5, kind: input, shape index: {}]
  %s6 = inlined_call_operand.vmem [shape: f32[1,128], index: 6, kind: input, shape index: {}]
  %s7 = inlined_call_operand.vmem [shape: f32[16,128], index: 7, kind: output, shape index: {0}]
  %s8 = inlined_call_operand.vmem [shape: f32[16,1], index: 8, kind: output, shape index: {1}]
  %9 = xla_tuple %s7, %s8
  %s10 = sld [smem:[#allocation0]]
  $region54: #{graph_unet_v2_forward.5} parent=0
    _
  %s12 = ssub.s32 1, %s10
  %s13 = scalar_select 0, %s12, %s10
  $region1: #{graph_unet_v2_forward.5} parent=0
    #allocation2 [shape = 'u8[65536]{0}', space=vmem, size = 0x10000, scoped, tag = 'input window, operand 2, single buffered']
    #allocation3 [shape = 's32[1]{0}', space=sflag, size = 0x4, scoped, tag = 'scoped memory for graph_unet_v2_forward.5']
    #allocation4 [shape = 'u8[65536]{0}', space=vmem, size = 0x10000, scoped, tag = 'input window, operand 4, single buffered']
    #allocation5 [shape = 's32[1]{0}', space=sflag, size = 0x4, scoped, tag = 'scoped memory for graph_unet_v2_forward.5']
    %14 = vsyncpa [#allocation3], 0
    %15 = vsyncpa [#allocation5], 0
    // Predicated region
    $region2: #{graph_unet_v2_forward.5} parent=1 // pred_check
      _
    $region3: #{graph_unet_v2_forward.5} parent=1 // pred_check_branch
      %17 = sbr.rel (0) target = $region5
    $region4: #{graph_unet_v2_forward.5} parent=1 // pred_region
      _
    $region5: #{graph_unet_v2_forward.5} parent=1 // pred_fallthru
      _
    // Predicated region
    $region6: #{graph_unet_v2_forward.5} parent=1 // pred_check
      _
    $region7: #{graph_unet_v2_forward.5} parent=1 // pred_check_branch
      %19 = sbr.rel (0) target = $region9
    $region8: #{graph_unet_v2_forward.5} parent=1 // pred_region
      _
    $region9: #{graph_unet_v2_forward.5} parent=1 // pred_fallthru
      _
    // Predicated region
    $region10: #{graph_unet_v2_forward.5} parent=1 // pred_check
      _
    $region11: #{graph_unet_v2_forward.5} parent=1 // pred_check_branch
      %21 = sbr.rel (0) target = $region13
    $region12: #{graph_unet_v2_forward.5} parent=1 // pred_region
      %s23 = ssub.s32 2048, 2048
      %24 = vsyncadd [#allocation3], %s23
      %s25 = sshll.u32 [#allocation2], 4
      %s26 = int_to_ptr.vmem [resolvable:$true] %s25
      %31 = dma.hbm_to_vmem [thread:$0]  %s2, 2048, %s26, [#allocation3], 128, 128, 8
    $region13: #{graph_unet_v2_forward.5} parent=1 // pred_fallthru
      _
    // Predicated region
    $region14: #{graph_unet_v2_forward.5} parent=1 // pred_check
      _
    $region15: #{graph_unet_v2_forward.5} parent=1 // pred_check_branch
      %33 = sbr.rel (0) target = $region17
    $region16: #{graph_unet_v2_forward.5} parent=1 // pred_region
      _
    $region17: #{graph_unet_v2_forward.5} parent=1 // pred_fallthru
      _
    // Predicated region
    $region18: #{graph_unet_v2_forward.5} parent=1 // pred_check
      _
    $region19: #{graph_unet_v2_forward.5} parent=1 // pred_check_branch
      %35 = sbr.rel (0) target = $region21
    $region20: #{graph_unet_v2_forward.5} parent=1 // pred_region
      %s37 = ssub.s32 2048, 2048
      %38 = vsyncadd [#allocation5], %s37
      %s39 = sshll.u32 [#allocation4], 4
      %s40 = int_to_ptr.vmem [resolvable:$true] %s39
      %45 = dma.hbm_to_vmem [thread:$0]  %s4, 2048, %s40, [#allocation5], 128, 128, 8
    $region21: #{graph_unet_v2_forward.5} parent=1 // pred_fallthru
      _
    // Predicated region
    $region22: #{graph_unet_v2_forward.5} parent=1 // pred_check
      _
    $region23: #{graph_unet_v2_forward.5} parent=1 // pred_check_branch
      %47 = sbr.rel (0) target = $region25
    $region24: #{graph_unet_v2_forward.5} parent=1 // pred_region
      _
    $region25: #{graph_unet_v2_forward.5} parent=1 // pred_fallthru
      _
    // Predicated region
    $region26: #{graph_unet_v2_forward.5} parent=1 // pred_check
      _
    $region27: #{graph_unet_v2_forward.5} parent=1 // pred_check_branch
      %49 = sbr.rel (0) target = $region29
    $region28: #{graph_unet_v2_forward.5} parent=1 // pred_region
      _
    $region29: #{graph_unet_v2_forward.5} parent=1 // pred_fallthru
      _
    // Predicated region
    $region30: #{graph_unet_v2_forward.5} parent=1 // pred_check
      _
    $region31: #{graph_unet_v2_forward.5} parent=1 // pred_check_branch
      %51 = sbr.rel (0) target = $region33
    $region32: #{graph_unet_v2_forward.5} parent=1 // pred_region
      %52 = dma.done [#allocation3], 2048
    $region33: #{graph_unet_v2_forward.5} parent=1 // pred_fallthru
      _
    // Predicated region
    $region34: #{graph_unet_v2_forward.5} parent=1 // pred_check
      _
    $region35: #{graph_unet_v2_forward.5} parent=1 // pred_check_branch
      %54 = sbr.rel (0) target = $region37
    $region36: #{graph_unet_v2_forward.5} parent=1 // pred_region
      %55 = dma.done [#allocation5], 2048
    $region37: #{graph_unet_v2_forward.5} parent=1 // pred_fallthru
      _
    %v57 = vld [vmem:[%s0] sm:$0xff]
    %v58 = vld [vmem:[%s0 + $0x8] sm:$0xff]
    %v59 = vld [vmem:[%s1] sm:$0xff]
    %v60 = vld [vmem:[%s1 + $0x8] sm:$0xff]
    %v61 = vlaneseq
    %v62 = vshrl.u32 %v61, 7
    %v63 = vadd.s32 %v62, 8
    %v64 = vlaneseq
    %v65 = vand.u32 %v64, 127
    %vm66 = vcmp.eq.s32.totalorder %v62, %v65
    %vm67 = vcmp.eq.s32.totalorder %v63, %v65
    %v68 = vld [vmem:[#allocation2] sm:$0xff]
    %v69 = vld [vmem:[#allocation2 + $0x8] sm:$0xff]
    %v70 = vld [vmem:[#allocation2 + $0x10] sm:$0xff]
    %v71 = vld [vmem:[#allocation2 + $0x18] sm:$0xff]
    %v72 = vld [vmem:[#allocation2 + $0x20] sm:$0xff]
    %v73 = vld [vmem:[#allocation2 + $0x28] sm:$0xff]
    %v74 = vld [vmem:[#allocation2 + $0x30] sm:$0xff]
    %v75 = vld [vmem:[#allocation2 + $0x38] sm:$0xff]
    %v76 = vld [vmem:[#allocation2 + $0x40] sm:$0xff]
    %v77 = vld [vmem:[#allocation2 + $0x48] sm:$0xff]
    %v78 = vld [vmem:[#allocation2 + $0x50] sm:$0xff]
    %v79 = vld [vmem:[#allocation2 + $0x58] sm:$0xff]
    %v80 = vld [vmem:[#allocation2 + $0x60] sm:$0xff]
    %v81 = vld [vmem:[#allocation2 + $0x68] sm:$0xff]
    %v82 = vld [vmem:[#allocation2 + $0x70] sm:$0xff]
    %v83 = vld [vmem:[#allocation2 + $0x78] sm:$0xff]
    %v84 = vld [vmem:[%s3] sm:$0x1]
    %v85 = vld [vmem:[#allocation4] sm:$0xff]
    %v86 = vld [vmem:[#allocation4 + $0x8] sm:$0xff]
    %v87 = vld [vmem:[#allocation4 + $0x10] sm:$0xff]
    %v88 = vld [vmem:[#allocation4 + $0x18] sm:$0xff]
    %v89 = vld [vmem:[#allocation4 + $0x20] sm:$0xff]
    %v90 = vld [vmem:[#allocation4 + $0x28] sm:$0xff]
    %v91 = vld [vmem:[#allocation4 + $0x30] sm:$0xff]
    %v92 = vld [vmem:[#allocation4 + $0x38] sm:$0xff]
    %v93 = vld [vmem:[#allocation4 + $0x40] sm:$0xff]
    %v94 = vld [vmem:[#allocation4 + $0x48] sm:$0xff]
    %v95 = vld [vmem:[#allocation4 + $0x50] sm:$0xff]
    %v96 = vld [vmem:[#allocation4 + $0x58] sm:$0xff]
    %v97 = vld [vmem:[#allocation4 + $0x60] sm:$0xff]
    %v98 = vld [vmem:[#allocation4 + $0x68] sm:$0xff]
    %v99 = vld [vmem:[#allocation4 + $0x70] sm:$0xff]
    %v100 = vld [vmem:[#allocation4 + $0x78] sm:$0xff]
    %v101 = vld [vmem:[%s5] sm:$0x1]
    %vm102 = vcmp.eq.f32.partialorder %v57, 0.0
    %vm103 = vcmp.eq.f32.partialorder %v58, 0.0
    %vm104 = vmand %vm66, %vm102
    %vm105 = vmand %vm67, %vm103
    %v106 = vsel %vm104, 1.0, %v57
    %v107 = vsel %vm105, 1.0, %v58
    %108 = vxpose.xlu0.b32.start [1/16] %v106, 128
    %109 = vxpose.xlu0.b32.cont [2/16] %v107, 128
    %110 = vxpose.xlu0.b32.cont [3/16] 0.0, 128
    %111 = vxpose.xlu0.b32.cont [4/16] 0.0, 128
    %112 = vxpose.xlu0.b32.cont [5/16] 0.0, 128
    %113 = vxpose.xlu0.b32.cont [6/16] 0.0, 128
    %114 = vxpose.xlu0.b32.cont [7/16] 0.0, 128
    %115 = vxpose.xlu0.b32.cont [8/16] 0.0, 128
    %116 = vxpose.xlu0.b32.cont [9/16] 0.0, 128
    %117 = vxpose.xlu0.b32.cont [10/16] 0.0, 128
    %118 = vxpose.xlu0.b32.cont [11/16] 0.0, 128
    %119 = vxpose.xlu0.b32.cont [12/16] 0.0, 128
    %120 = vxpose.xlu0.b32.cont [13/16] 0.0, 128
    %121 = vxpose.xlu0.b32.cont [14/16] 0.0, 128
    %122 = vxpose.xlu0.b32.cont [15/16] 0.0, 128
    %123 = vxpose.xlu0.b32.end [16/16] 0.0, 128
    %v124 = vpop.trf.xlu0
    %v125 = vpop.trf.xlu0
    %v126 = vpop.trf.xlu0
    %v127 = vpop.trf.xlu0
    %v128 = vpop.trf.xlu0
    %v129 = vpop.trf.xlu0
    %v130 = vpop.trf.xlu0
    %v131 = vpop.trf.xlu0
    %v132 = vpop.trf.xlu0
    %v133 = vpop.trf.xlu0
    %v134 = vpop.trf.xlu0
    %v135 = vpop.trf.xlu0
    %v136 = vpop.trf.xlu0
    %v137 = vpop.trf.xlu0
    %v138 = vpop.trf.xlu0
    %v139 = vpop.trf.xlu0
    %vm140 = vcmask 130048
    %v142 = vsel %vm140, %v124, 0
    %v145 = vsel %vm140, %v125, 0
    %147 = vmatprep.subr.mxu0 0.0
    %148 = vmatpush1.msra.mxu0 0.0
    %149 = vmatprep.subr.mxu0 0.0
    %150 = vmatpush1.msra.mxu0 0.0
    %151 = vmatprep.subr.mxu0 0.0
    %152 = vmatpush1.msra.mxu0 0.0
    %153 = vmatprep.subr.mxu0 0.0
    %154 = vmatpush1.msra.mxu0 0.0
    %155 = vmatprep.subr.mxu0 0.0
    %156 = vmatpush1.msra.mxu0 0.0
    %157 = vmatprep.subr.mxu0 0.0
    %158 = vmatpush1.msra.mxu0 0.0
    %159 = vmatprep.subr.mxu0 0.0
    %160 = vmatpush1.msra.mxu0 0.0
    %161 = vmatprep.subr.mxu0 0.0
    %162 = vmatpush1.msra.mxu0 0.0
    %163 = vmatprep.subr.mxu0 0.0
    %164 = vmatpush1.msra.mxu0 0.0
    %165 = vmatprep.subr.mxu0 0.0
    %166 = vmatpush1.msra.mxu0 0.0
    %167 = vmatprep.subr.mxu0 0.0
    %168 = vmatpush1.msra.mxu0 0.0
    %169 = vmatprep.subr.mxu0 0.0
    %170 = vmatpush1.msra.mxu0 0.0
    %171 = vmatprep.subr.mxu0 0.0
    %172 = vmatpush1.msra.mxu0 0.0
    %173 = vmatprep.subr.mxu0 0.0
    %174 = vmatpush1.msra.mxu0 0.0
    %175 = vmatprep.subr.mxu0 0.0
    %176 = vmatpush1.msra.mxu0 1.0
    %177 = vmatprep.subr.mxu0 0.0
    %178 = vmatpush1.msra.mxu0 1.0
    %179 = vmatprep.subr.mxu0 0.0
    %180 = vmatpush2.msra.mxu0 0.0
    %181 = vmatprep.subr.mxu0 0.0
    %182 = vmatpush2.msra.mxu0 0.0
    %183 = vmatprep.subr.mxu0 0.0
    %184 = vmatpush2.msra.mxu0 0.0
    %185 = vmatprep.subr.mxu0 0.0
    %186 = vmatpush2.msra.mxu0 0.0
    %187 = vmatprep.subr.mxu0 0.0
    %188 = vmatpush2.msra.mxu0 0.0
    %189 = vmatprep.subr.mxu0 0.0
    %190 = vmatpush2.msra.mxu0 0.0
    %191 = vmatprep.subr.mxu0 0.0
    %192 = vmatpush2.msra.mxu0 0.0
    %193 = vmatprep.subr.mxu0 0.0
    %194 = vmatpush2.msra.mxu0 0.0
    %195 = vmatprep.subr.mxu0 0.0
    %196 = vmatpush2.msra.mxu0 0.0
    %197 = vmatprep.subr.mxu0 0.0
    %198 = vmatpush2.msra.mxu0 0.0
    %199 = vmatprep.subr.mxu0 0.0
    %200 = vmatpush2.msra.mxu0 0.0
    %201 = vmatprep.subr.mxu0 0.0
    %202 = vmatpush2.msra.mxu0 0.0
    %203 = vmatprep.subr.mxu0 0.0
    %204 = vmatpush2.msra.mxu0 0.0
    %205 = vmatprep.subr.mxu0 0.0
    %206 = vmatpush2.msra.mxu0 0.0
    %207 = vmatprep.subr.mxu0 0.0
    %208 = vmatpush2.msra.mxu0 0.0
    %209 = vmatprep.subr.mxu0 0.0
    %210 = vmatpush2.msra.mxu0 0.0
    %211 = vmatprep.mubr.f32.mxu0 0.0
    %212 = vmatmul.mubr.f32.gmra.mxu0 %v142
    %v213 = vpop.f32.mrf.mxu0
    %v214 = vadd.f32 0.0, %v213
    %v215 = vpop.f32.mrf.mxu0
    %216 = vmatprep.mubr.f32.mxu0 0.0
    %217 = vmatmul.mubr.f32.gmra.mxu0 %v145
    %v218 = vpop.f32.mrf.mxu0
    %v219 = vadd.f32 0.0, %v218
    %v220 = vpop.f32.mrf.mxu0
    %221 = vdwg.mxu0
    %vm222 = vcmp.gt.f32.partialorder %v214, 0.0
    %vm223 = vcmp.gt.f32.partialorder %v219, 0.0
    %v224 = vrsqrt.pop %v214
    %v225 = vrsqrt.pop %v219
    %v226 = vsel %vm222, %v224, 0.0
    %v227 = vsel %vm223, %v225, 0.0
    %v228 = vpack.c.bf16 %v60, %v59
    %v229 = vpack.c.bf16 %v69, %v68
    %v230 = vpack.c.bf16 %v71, %v70
    %v231 = vpack.c.bf16 %v73, %v72
    %v232 = vpack.c.bf16 %v75, %v74
    %v233 = vpack.c.bf16 %v77, %v76
    %v234 = vpack.c.bf16 %v79, %v78
    %v235 = vpack.c.bf16 %v81, %v80
    %v236 = vpack.c.bf16 %v83, %v82
    %237 = vmatprep.subr.bf16.mxu0 0
    %238 = vmatpush1.bf16.msra.mxu0 %v236
    %239 = vmatprep.subr.bf16.mxu0 0
    %240 = vmatpush1.bf16.msra.mxu0 %v235
    %241 = vmatprep.subr.bf16.mxu0 0
    %242 = vmatpush1.bf16.msra.mxu0 %v234
    %243 = vmatprep.subr.bf16.mxu0 0
    %244 = vmatpush1.bf16.msra.mxu0 %v233
    %245 = vmatprep.subr.bf16.mxu0 0
    %246 = vmatpush1.bf16.msra.mxu0 %v232
    %247 = vmatprep.subr.bf16.mxu0 0
    %248 = vmatpush1.bf16.msra.mxu0 %v231
    %249 = vmatprep.subr.bf16.mxu0 0
    %250 = vmatpush1.bf16.msra.mxu0 %v230
    %251 = vmatprep.subr.bf16.mxu0 0
    %252 = vmatpush1.bf16.msra.mxu0 %v229
    %253 = vmatprep.subr.bf16.mxu0 0
    %254 = vmatpush2.bf16.msra.mxu0 0
    %255 = vmatprep.subr.bf16.mxu0 0
    %256 = vmatpush2.bf16.msra.mxu0 0
    %257 = vmatprep.subr.bf16.mxu0 0
    %258 = vmatpush2.bf16.msra.mxu0 0
    %259 = vmatprep.subr.bf16.mxu0 0
    %260 = vmatpush2.bf16.msra.mxu0 0
    %261 = vmatprep.subr.bf16.mxu0 0
    %262 = vmatpush2.bf16.msra.mxu0 0
    %263 = vmatprep.subr.bf16.mxu0 0
    %264 = vmatpush2.bf16.msra.mxu0 0
    %265 = vmatprep.subr.bf16.mxu0 0
    %266 = vmatpush2.bf16.msra.mxu0 0
    %267 = vmatprep.subr.bf16.mxu0 0
    %268 = vmatpush2.bf16.msra.mxu0 0
    %269 = vmatprep.mubr.bf16.mxu0 0
    %270 = vmatmul.mubr.bf16.gmra.mxu0 %v228
    %v271 = vpop.f32.mrf.mxu0
    %v272 = vadd.f32 0.0, %v271
    %v273 = vpop.f32.mrf.mxu0
    %v274 = vpop.f32.mrf.mxu0
    %v275 = vadd.f32 0.0, %v274
    %v276 = vpop.f32.mrf.mxu0
    %277 = vdwg.mxu0
    %279 = vset.pattern.permute.xlu0 0
    %280 = vperm.xlu0 %279, %v226
    %v281 = vpop.permute.xlu0 %280
    %284 = vset.pattern.permute.xlu0 0
    %285 = vperm.xlu0 %284, %v227
    %v286 = vpop.permute.xlu0 %285
    %v288 = vmul.f32 %v272, %v281
    %v289 = vmul.f32 %v275, %v286
    %v290 = vpack.c.bf16 %v107, %v106
    %v291 = vpack.c.bf16 %v289, %v288
    %292 = vxpose.xlu0.c.b16.start [1/8] %v290, 128
    %293 = vxpose.xlu0.c.b16.cont [2/8] 0, 128
    %294 = vxpose.xlu0.c.b16.cont [3/8] 0, 128
    %295 = vxpose.xlu0.c.b16.cont [4/8] 0, 128
    %296 = vxpose.xlu0.c.b16.cont [5/8] 0, 128
    %297 = vxpose.xlu0.c.b16.cont [6/8] 0, 128
    %298 = vxpose.xlu0.c.b16.cont [7/8] 0, 128
    %299 = vxpose.xlu0.c.b16.end [8/8] 0, 128
    %v300 = vpop.trf.xlu0
    %v301 = vpop.trf.xlu0
    %v302 = vpop.trf.xlu0
    %v303 = vpop.trf.xlu0
    %v304 = vpop.trf.xlu0
    %v305 = vpop.trf.xlu0
    %v306 = vpop.trf.xlu0
    %v307 = vpop.trf.xlu0
    %v309 = vsel %vm140, %v300, 0
    %311 = vmatprep.subr.bf16.mxu0 0
    %312 = vmatpush1.bf16.msra.mxu0 0
    %313 = vmatprep.subr.bf16.mxu0 0
    %314 = vmatpush1.bf16.msra.mxu0 0
    %315 = vmatprep.subr.bf16.mxu0 0
    %316 = vmatpush1.bf16.msra.mxu0 0
    %317 = vmatprep.subr.bf16.mxu0 0
    %318 = vmatpush1.bf16.msra.mxu0 0
    %319 = vmatprep.subr.bf16.mxu0 0
    %320 = vmatpush1.bf16.msra.mxu0 0
    %321 = vmatprep.subr.bf16.mxu0 0
    %322 = vmatpush1.bf16.msra.mxu0 0
    %323 = vmatprep.subr.bf16.mxu0 0
    %324 = vmatpush1.bf16.msra.mxu0 0
    %325 = vmatprep.subr.bf16.mxu0 0
    %326 = vmatpush1.bf16.msra.mxu0 %v291
    %327 = vmatprep.subr.bf16.mxu0 0
    %328 = vmatpush2.bf16.msra.mxu0 0
    %329 = vmatprep.subr.bf16.mxu0 0
    %330 = vmatpush2.bf16.msra.mxu0 0
    %331 = vmatprep.subr.bf16.mxu0 0
    %332 = vmatpush2.bf16.msra.mxu0 0
    %333 = vmatprep.subr.bf16.mxu0 0
    %334 = vmatpush2.bf16.msra.mxu0 0
    %335 = vmatprep.subr.bf16.mxu0 0
    %336 = vmatpush2.bf16.msra.mxu0 0
    %337 = vmatprep.subr.bf16.mxu0 0
    %338 = vmatpush2.bf16.msra.mxu0 0
    %339 = vmatprep.subr.bf16.mxu0 0
    %340 = vmatpush2.bf16.msra.mxu0 0
    %341 = vmatprep.subr.bf16.mxu0 0
    %342 = vmatpush2.bf16.msra.mxu0 0
    %343 = vmatprep.mubr.bf16.mxu0 0
    %344 = vmatmul.mubr.bf16.gmra.mxu0 %v309
    %v345 = vpop.f32.mrf.mxu0
    %v346 = vadd.f32 0.0, %v345
    %v347 = vpop.f32.mrf.mxu0
    %v348 = vpop.f32.mrf.mxu0
    %v349 = vadd.f32 0.0, %v348
    %v350 = vpop.f32.mrf.mxu0
    %351 = vdwg.mxu0
    %v352 = vmul.f32 %v346, %v281
    %v353 = vmul.f32 %v349, %v286
    %v355 = vlaneseq
    %v356 = vshrl.u32 %v355, 7
    %v357 = vsub.s32 0, %v356
    %v358 = vrot.slane %v84, %v357
    %v360 = vadd.f32 %v352, %v358
    %v361 = vadd.f32 %v353, %v358
    %v362 = vmax.f32 %v360, 0.0
    %v363 = vmax.f32 %v361, 0.0
    %v364 = vpack.c.bf16 %v363, %v362
    %v365 = vpack.c.bf16 %v86, %v85
    %v366 = vpack.c.bf16 %v88, %v87
    %v367 = vpack.c.bf16 %v90, %v89
    %v368 = vpack.c.bf16 %v92, %v91
    %v369 = vpack.c.bf16 %v94, %v93
    %v370 = vpack.c.bf16 %v96, %v95
    %v371 = vpack.c.bf16 %v98, %v97
    %v372 = vpack.c.bf16 %v100, %v99
    %373 = vmatprep.subr.bf16.mxu0 0
    %374 = vmatpush1.bf16.msra.mxu0 %v372
    %375 = vmatprep.subr.bf16.mxu0 0
    %376 = vmatpush1.bf16.msra.mxu0 %v371
    %377 = vmatprep.subr.bf16.mxu0 0
    %378 = vmatpush1.bf16.msra.mxu0 %v370
    %379 = vmatprep.subr.bf16.mxu0 0
    %380 = vmatpush1.bf16.msra.mxu0 %v369
    %381 = vmatprep.subr.bf16.mxu0 0
    %382 = vmatpush1.bf16.msra.mxu0 %v368
    %383 = vmatprep.subr.bf16.mxu0 0
    %384 = vmatpush1.bf16.msra.mxu0 %v367
    %385 = vmatprep.subr.bf16.mxu0 0
    %386 = vmatpush1.bf16.msra.mxu0 %v366
    %387 = vmatprep.subr.bf16.mxu0 0
    %388 = vmatpush1.bf16.msra.mxu0 %v365
    %389 = vmatprep.subr.bf16.mxu0 0
    %390 = vmatpush2.bf16.msra.mxu0 0
    %391 = vmatprep.subr.bf16.mxu0 0
    %392 = vmatpush2.bf16.msra.mxu0 0
    %393 = vmatprep.subr.bf16.mxu0 0
    %394 = vmatpush2.bf16.msra.mxu0 0
    %395 = vmatprep.subr.bf16.mxu0 0
    %396 = vmatpush2.bf16.msra.mxu0 0
    %397 = vmatprep.subr.bf16.mxu0 0
    %398 = vmatpush2.bf16.msra.mxu0 0
    %399 = vmatprep.subr.bf16.mxu0 0
    %400 = vmatpush2.bf16.msra.mxu0 0
    %401 = vmatprep.subr.bf16.mxu0 0
    %402 = vmatpush2.bf16.msra.mxu0 0
    %403 = vmatprep.subr.bf16.mxu0 0
    %404 = vmatpush2.bf16.msra.mxu0 0
    %405 = vmatprep.mubr.bf16.mxu0 0
    %406 = vmatmul.mubr.bf16.gmra.mxu0 %v364
    %v407 = vpop.f32.mrf.mxu0
    %v408 = vadd.f32 0.0, %v407
    %v409 = vpop.f32.mrf.mxu0
    %v410 = vpop.f32.mrf.mxu0
    %v411 = vadd.f32 0.0, %v410
    %v412 = vpop.f32.mrf.mxu0
    %413 = vdwg.mxu0
    %v414 = vmul.f32 %v408, %v281
    %v415 = vmul.f32 %v411, %v286
    %v416 = vpack.c.bf16 %v415, %v414
    %417 = vmatprep.subr.bf16.mxu0 0
    %418 = vmatpush1.bf16.msra.mxu0 0
    %419 = vmatprep.subr.bf16.mxu0 0
    %420 = vmatpush1.bf16.msra.mxu0 0
    %421 = vmatprep.subr.bf16.mxu0 0
    %422 = vmatpush1.bf16.msra.mxu0 0
    %423 = vmatprep.subr.bf16.mxu0 0
    %424 = vmatpush1.bf16.msra.mxu0 0
    %425 = vmatprep.subr.bf16.mxu0 0
    %426 = vmatpush1.bf16.msra.mxu0 0
    %427 = vmatprep.subr.bf16.mxu0 0
    %428 = vmatpush1.bf16.msra.mxu0 0
    %429 = vmatprep.subr.bf16.mxu0 0
    %430 = vmatpush1.bf16.msra.mxu0 0
    %431 = vmatprep.subr.bf16.mxu0 0
    %432 = vmatpush1.bf16.msra.mxu0 %v416
    %433 = vmatprep.subr.bf16.mxu0 0
    %434 = vmatpush2.bf16.msra.mxu0 0
    %435 = vmatprep.subr.bf16.mxu0 0
    %436 = vmatpush2.bf16.msra.mxu0 0
    %437 = vmatprep.subr.bf16.mxu0 0
    %438 = vmatpush2.bf16.msra.mxu0 0
    %439 = vmatprep.subr.bf16.mxu0 0
    %440 = vmatpush2.bf16.msra.mxu0 0
    %441 = vmatprep.subr.bf16.mxu0 0
    %442 = vmatpush2.bf16.msra.mxu0 0
    %443 = vmatprep.subr.bf16.mxu0 0
    %444 = vmatpush2.bf16.msra.mxu0 0
    %445 = vmatprep.subr.bf16.mxu0 0
    %446 = vmatpush2.bf16.msra.mxu0 0
    %447 = vmatprep.subr.bf16.mxu0 0
    %448 = vmatpush2.bf16.msra.mxu0 0
    %449 = vmatprep.mubr.bf16.mxu0 0
    %450 = vmatmul.mubr.bf16.gmra.mxu0 %v309
    %v451 = vpop.f32.mrf.mxu0
    %v452 = vadd.f32 0.0, %v451
    %v453 = vpop.f32.mrf.mxu0
    %v454 = vpop.f32.mrf.mxu0
    %v455 = vadd.f32 0.0, %v454
    %v456 = vpop.f32.mrf.mxu0
    %457 = vdwg.mxu0
    %v458 = vmul.f32 %v452, %v281
    %v459 = vmul.f32 %v455, %v286
    %v461 = vlaneseq
    %v462 = vshrl.u32 %v461, 7
    %v463 = vsub.s32 0, %v462
    %v464 = vrot.slane %v101, %v463
    %v466 = vadd.f32 %v458, %v464
    %v467 = vadd.f32 %v459, %v464
    %v468 = vmax.f32 %v466, 0.0
    %v469 = vmax.f32 %v467, 0.0
    %470 = vst [vmem:[%s7] sm:$0xff] %v468
    %471 = vst [vmem:[%s7 + $0x8] sm:$0xff] %v469
    %v472 = vld [vmem:[%s6] sm:$0x1]
    %v473 = vmul.f32 %v472, %v472
    %vm474 = vcmask 1040384
    %v475 = vsel %vm474, %v473, 0.0
    %476 = vadd.xlane.f32.xlu0 %v475
    %v477 = vpop.xlane.xlu0 %476
    %v478 = vrsqrt.pop %v477
    %v480 = vlaneseq
    %v481 = vshrl.u32 %v480, 7
    %v482 = vsub.s32 0, %v481
    %v483 = vrot.slane %v472, %v482
    %v485 = vmul.f32 %v468, %v483
    %v486 = vmul.f32 %v469, %v483
    %487 = vadd.xlane.f32.xlu0 %v485
    %v488 = vpop.xlane.xlu0 %487
    %489 = vadd.xlane.f32.xlu0 %v486
    %v490 = vpop.xlane.xlu0 %489
    %v491 = vlaneseq
    %v492 = vshrl.u32 %v491, 7
    %v493 = vsub.s32 0, %v492
    %v494 = vrot.slane %v478, %v493
    %v495 = vmul.f32 %v488, %v494
    %v496 = vmul.f32 %v490, %v494
    %v497 = vtanh.pop %v495
    %v498 = vtanh.pop %v496
    %vm499 = vcmask 7168
    %500 = vst.msk [vmem:[%s8] sm:$0xff] %vm499, %v497
    %501 = vst.msk [vmem:[%s8 + $0x8] sm:$0xff] %vm499, %v498
    // Predicated region
    $region38: #{graph_unet_v2_forward.5} parent=1 // pred_check
      _
    $region39: #{graph_unet_v2_forward.5} parent=1 // pred_check_branch
      %503 = sbr.rel (0) target = $region41
    $region40: #{graph_unet_v2_forward.5} parent=1 // pred_region
      _
    $region41: #{graph_unet_v2_forward.5} parent=1 // pred_fallthru
      _
    // Predicated region
    $region42: #{graph_unet_v2_forward.5} parent=1 // pred_check
      _
    $region43: #{graph_unet_v2_forward.5} parent=1 // pred_check_branch
      %505 = sbr.rel (0) target = $region45
    $region44: #{graph_unet_v2_forward.5} parent=1 // pred_region
      _
    $region45: #{graph_unet_v2_forward.5} parent=1 // pred_fallthru
      _
    // Predicated region
    $region46: #{graph_unet_v2_forward.5} parent=1 // pred_check
      _
    $region47: #{graph_unet_v2_forward.5} parent=1 // pred_check_branch
      %507 = sbr.rel (0) target = $region49
    $region48: #{graph_unet_v2_forward.5} parent=1 // pred_region
      _
    $region49: #{graph_unet_v2_forward.5} parent=1 // pred_fallthru
      _
    // Predicated region
    $region50: #{graph_unet_v2_forward.5} parent=1 // pred_check
      _
    $region51: #{graph_unet_v2_forward.5} parent=1 // pred_check_branch
      %509 = sbr.rel (0) target = $region53
    $region52: #{graph_unet_v2_forward.5} parent=1 // pred_region
      _
    $region53: #{graph_unet_v2_forward.5} parent=1 // pred_fallthru
      _
    %510 = vsyncpa [#allocation3], 1
    %511 = vsyncpa [#allocation5], 1

// kernel: graph_unet_v2_forward.6
$region0: #{graph_unet_v2_forward.6}
  #allocation0 [shape = 'u32[]', space=smem, size = 0x4, offset = 0x4, fixed_abs, tag = 'smem constant byte address 0x4 - core index']
  #allocation1 [shape = 'u32[144,128]{1,0:T(1,128)}', space=vmem, size = 0x12000, scoped, tag = 'internal scratch']
  %s0 = inlined_call_operand.vmem [shape: s32[8,1], index: 0, kind: input, shape index: {}]
  %s1 = inlined_call_operand.vmem [shape: f32[16,16], index: 1, kind: input, shape index: {}]
  %s2 = inlined_call_operand.vmem [shape: f32[16,128], index: 2, kind: input, shape index: {}]
  %s3 = inlined_call_operand.vmem [shape: f32[16,1], index: 3, kind: input, shape index: {}]
  %s4 = inlined_call_operand.vmem [shape: f32[128,128], index: 4, kind: input, shape index: {}]
  %s5 = inlined_call_operand.vmem [shape: f32[1,128], index: 5, kind: input, shape index: {}]
  %s6 = inlined_call_operand.vmem [shape: f32[128,128], index: 6, kind: input, shape index: {}]
  %s7 = inlined_call_operand.vmem [shape: f32[1,128], index: 7, kind: input, shape index: {}]
  %s8 = inlined_call_operand.vmem [shape: f32[1,128], index: 8, kind: input, shape index: {}]
  %s9 = inlined_call_operand.vmem [shape: f32[8,128], index: 9, kind: output, shape index: {0}]
  %s10 = inlined_call_operand.vmem [shape: f32[8,8], index: 10, kind: output, shape index: {1}]
  %s11 = inlined_call_operand.vmem [shape: f32[8,1], index: 11, kind: output, shape index: {2}]
  %12 = xla_tuple %s9, %s10, %s11
  %s13 = sld [smem:[#allocation0]]
  $region62: #{graph_unet_v2_forward.6} parent=0
    _
  %s15 = ssub.s32 1, %s13
  %s16 = scalar_select 0, %s15, %s13
  // Predicated region
  $region2: #{graph_unet_v2_forward.6} parent=0 // pred_check
    _
  $region3: #{graph_unet_v2_forward.6} parent=0 // pred_check_branch
    %18 = sbr.rel (0) target = $region5
  $region4: #{graph_unet_v2_forward.6} parent=0 // pred_region
    _
  $region5: #{graph_unet_v2_forward.6} parent=0 // pred_fallthru
    _
  // Predicated region
  $region6: #{graph_unet_v2_forward.6} parent=0 // pred_check
    _
  $region7: #{graph_unet_v2_forward.6} parent=0 // pred_check_branch
    %20 = sbr.rel (0) target = $region9
  $region8: #{graph_unet_v2_forward.6} parent=0 // pred_region
    _
  $region9: #{graph_unet_v2_forward.6} parent=0 // pred_fallthru
    _
  // Predicated region
  $region10: #{graph_unet_v2_forward.6} parent=0 // pred_check
    _
  $region11: #{graph_unet_v2_forward.6} parent=0 // pred_check_branch
    %22 = sbr.rel (0) target = $region13
  $region12: #{graph_unet_v2_forward.6} parent=0 // pred_region
    _
  $region13: #{graph_unet_v2_forward.6} parent=0 // pred_fallthru
    _
  // Predicated region
  $region14: #{graph_unet_v2_forward.6} parent=0 // pred_check
    _
  $region15: #{graph_unet_v2_forward.6} parent=0 // pred_check_branch
    %24 = sbr.rel (0) target = $region17
  $region16: #{graph_unet_v2_forward.6} parent=0 // pred_region
    _
  $region17: #{graph_unet_v2_forward.6} parent=0 // pred_fallthru
    _
  // Predicated region
  $region18: #{graph_unet_v2_forward.6} parent=0 // pred_check
    _
  $region19: #{graph_unet_v2_forward.6} parent=0 // pred_check_branch
    %26 = sbr.rel (0) target = $region21
  $region20: #{graph_unet_v2_forward.6} parent=0 // pred_region
    _
  $region21: #{graph_unet_v2_forward.6} parent=0 // pred_fallthru
    _
  // Predicated region
  $region22: #{graph_unet_v2_forward.6} parent=0 // pred_check
    _
  $region23: #{graph_unet_v2_forward.6} parent=0 // pred_check_branch
    %28 = sbr.rel (0) target = $region25
  $region24: #{graph_unet_v2_forward.6} parent=0 // pred_region
    _
  $region25: #{graph_unet_v2_forward.6} parent=0 // pred_fallthru
    _
  // Predicated region
  $region26: #{graph_unet_v2_forward.6} parent=0 // pred_check
    _
  $region27: #{graph_unet_v2_forward.6} parent=0 // pred_check_branch
    %30 = sbr.rel (0) target = $region29
  $region28: #{graph_unet_v2_forward.6} parent=0 // pred_region
    _
  $region29: #{graph_unet_v2_forward.6} parent=0 // pred_fallthru
    _
  // Predicated region
  $region30: #{graph_unet_v2_forward.6} parent=0 // pred_check
    _
  $region31: #{graph_unet_v2_forward.6} parent=0 // pred_check_branch
    %32 = sbr.rel (0) target = $region33
  $region32: #{graph_unet_v2_forward.6} parent=0 // pred_region
    _
  $region33: #{graph_unet_v2_forward.6} parent=0 // pred_fallthru
    _
  // Predicated region
  $region34: #{graph_unet_v2_forward.6} parent=0 // pred_check
    _
  $region35: #{graph_unet_v2_forward.6} parent=0 // pred_check_branch
    %34 = sbr.rel (0) target = $region37
  $region36: #{graph_unet_v2_forward.6} parent=0 // pred_region
    _
  $region37: #{graph_unet_v2_forward.6} parent=0 // pred_fallthru
    _
  %v36 = vld [vmem:[%s0] sm:$0xff]
  %v37 = vlaneseq
  %v38 = vand.u32 %v37, 127
  %39 = vset.pattern.permute.xlu0 0
  %40 = vperm.xlu0 %39, %v36
  %v41 = vpop.permute.xlu0 %40
  %vm42 = vcmp.eq.s32.totalorder %v38, %v41
  %v43 = vsel %vm42, 1, 0
  %v44 = vcvt.s32.f32 %v43
  %v45 = vld [vmem:[%s2] sm:$0xff]
  %v46 = vld [vmem:[%s2 + $0x8] sm:$0xff]
  %vm47 = vcmask 130048
  %v49 = vsel %vm47, %v44, 0
  %51 = vmatprep.subr.mxu0 0.0
  %52 = vmatpush1.msra.mxu0 0.0
  %53 = vmatprep.subr.mxu0 0.0
  %54 = vmatpush1.msra.mxu0 0.0
  %55 = vmatprep.subr.mxu0 0.0
  %56 = vmatpush1.msra.mxu0 0.0
  %57 = vmatprep.subr.mxu0 0.0
  %58 = vmatpush1.msra.mxu0 0.0
  %59 = vmatprep.subr.mxu0 0.0
  %60 = vmatpush1.msra.mxu0 0.0
  %61 = vmatprep.subr.mxu0 0.0
  %62 = vmatpush1.msra.mxu0 0.0
  %63 = vmatprep.subr.mxu0 0.0
  %64 = vmatpush1.msra.mxu0 0.0
  %65 = vmatprep.subr.mxu0 0.0
  %66 = vmatpush1.msra.mxu0 0.0
  %67 = vmatprep.subr.mxu0 0.0
  %68 = vmatpush1.msra.mxu0 0.0
  %69 = vmatprep.subr.mxu0 0.0
  %70 = vmatpush1.msra.mxu0 0.0
  %71 = vmatprep.subr.mxu0 0.0
  %72 = vmatpush1.msra.mxu0 0.0
  %73 = vmatprep.subr.mxu0 0.0
  %74 = vmatpush1.msra.mxu0 0.0
  %75 = vmatprep.subr.mxu0 0.0
  %76 = vmatpush1.msra.mxu0 0.0
  %77 = vmatprep.subr.mxu0 0.0
  %78 = vmatpush1.msra.mxu0 0.0
  %79 = vmatprep.subr.mxu0 0.0
  %80 = vmatpush1.msra.mxu0 %v46
  %81 = vmatprep.subr.mxu0 0.0
  %82 = vmatpush1.msra.mxu0 %v45
  %83 = vmatprep.subr.mxu0 0.0
  %84 = vmatpush2.msra.mxu0 0.0
  %85 = vmatprep.subr.mxu0 0.0
  %86 = vmatpush2.msra.mxu0 0.0
  %87 = vmatprep.subr.mxu0 0.0
  %88 = vmatpush2.msra.mxu0 0.0
  %89 = vmatprep.subr.mxu0 0.0
  %90 = vmatpush2.msra.mxu0 0.0
  %91 = vmatprep.subr.mxu0 0.0
  %92 = vmatpush2.msra.mxu0 0.0
  %93 = vmatprep.subr.mxu0 0.0
  %94 = vmatpush2.msra.mxu0 0.0
  %95 = vmatprep.subr.mxu0 0.0
  %96 = vmatpush2.msra.mxu0 0.0
  %97 = vmatprep.subr.mxu0 0.0
  %98 = vmatpush2.msra.mxu0 0.0
  %99 = vmatprep.subr.mxu0 0.0
  %100 = vmatpush2.msra.mxu0 0.0
  %101 = vmatprep.subr.mxu0 0.0
  %102 = vmatpush2.msra.mxu0 0.0
  %103 = vmatprep.subr.mxu0 0.0
  %104 = vmatpush2.msra.mxu0 0.0
  %105 = vmatprep.subr.mxu0 0.0
  %106 = vmatpush2.msra.mxu0 0.0
  %107 = vmatprep.subr.mxu0 0.0
  %108 = vmatpush2.msra.mxu0 0.0
  %109 = vmatprep.subr.mxu0 0.0
  %110 = vmatpush2.msra.mxu0 0.0
  %111 = vmatprep.subr.mxu0 0.0
  %112 = vmatpush2.msra.mxu0 0.0
  %113 = vmatprep.subr.mxu0 0.0
  %114 = vmatpush2.msra.mxu0 0.0
  %115 = vmatprep.mubr.f32.mxu0 0.0
  %116 = vmatmul.mubr.f32.gmra.mxu0 %v49
  %v117 = vpop.f32.mrf.mxu0
  %v118 = vadd.f32 0.0, %v117
  %v119 = vpop.f32.mrf.mxu0
  %120 = vdwg.mxu0
  %v121 = vld [vmem:[%s3] sm:$0xff]
  %v122 = vld [vmem:[%s3 + $0x8] sm:$0xff]
  %123 = vmatprep.subr.mxu0 0.0
  %124 = vmatpush1.msra.mxu0 0.0
  %125 = vmatprep.subr.mxu0 0.0
  %126 = vmatpush1.msra.mxu0 0.0
  %127 = vmatprep.subr.mxu0 0.0
  %128 = vmatpush1.msra.mxu0 0.0
  %129 = vmatprep.subr.mxu0 0.0
  %130 = vmatpush1.msra.mxu0 0.0
  %131 = vmatprep.subr.mxu0 0.0
  %132 = vmatpush1.msra.mxu0 0.0
  %133 = vmatprep.subr.mxu0 0.0
  %134 = vmatpush1.msra.mxu0 0.0
  %135 = vmatprep.subr.mxu0 0.0
  %136 = vmatpush1.msra.mxu0 0.0
  %137 = vmatprep.subr.mxu0 0.0
  %138 = vmatpush1.msra.mxu0 0.0
  %139 = vmatprep.subr.mxu0 0.0
  %140 = vmatpush1.msra.mxu0 0.0
  %141 = vmatprep.subr.mxu0 0.0
  %142 = vmatpush1.msra.mxu0 0.0
  %143 = vmatprep.subr.mxu0 0.0
  %144 = vmatpush1.msra.mxu0 0.0
  %145 = vmatprep.subr.mxu0 0.0
  %146 = vmatpush1.msra.mxu0 0.0
  %147 = vmatprep.subr.mxu0 0.0
  %148 = vmatpush1.msra.mxu0 0.0
  %149 = vmatprep.subr.mxu0 0.0
  %150 = vmatpush1.msra.mxu0 0.0
  %151 = vmatprep.subr.mxu0 0.0
  %152 = vmatpush1.msra.mxu0 %v122
  %153 = vmatprep.subr.mxu0 0.0
  %154 = vmatpush1.msra.mxu0 %v121
  %155 = vmatprep.subr.mxu0 0.0
  %156 = vmatpush2.msra.mxu0 0.0
  %157 = vmatprep.subr.mxu0 0.0
  %158 = vmatpush2.msra.mxu0 0.0
  %159 = vmatprep.subr.mxu0 0.0
  %160 = vmatpush2.msra.mxu0 0.0
  %161 = vmatprep.subr.mxu0 0.0
  %162 = vmatpush2.msra.mxu0 0.0
  %163 = vmatprep.subr.mxu0 0.0
  %164 = vmatpush2.msra.mxu0 0.0
  %165 = vmatprep.subr.mxu0 0.0
  %166 = vmatpush2.msra.mxu0 0.0
  %167 = vmatprep.subr.mxu0 0.0
  %168 = vmatpush2.msra.mxu0 0.0
  %169 = vmatprep.subr.mxu0 0.0
  %170 = vmatpush2.msra.mxu0 0.0
  %171 = vmatprep.subr.mxu0 0.0
  %172 = vmatpush2.msra.mxu0 0.0
  %173 = vmatprep.subr.mxu0 0.0
  %174 = vmatpush2.msra.mxu0 0.0
  %175 = vmatprep.subr.mxu0 0.0
  %176 = vmatpush2.msra.mxu0 0.0
  %177 = vmatprep.subr.mxu0 0.0
  %178 = vmatpush2.msra.mxu0 0.0
  %179 = vmatprep.subr.mxu0 0.0
  %180 = vmatpush2.msra.mxu0 0.0
  %181 = vmatprep.subr.mxu0 0.0
  %182 = vmatpush2.msra.mxu0 0.0
  %183 = vmatprep.subr.mxu0 0.0
  %184 = vmatpush2.msra.mxu0 0.0
  %185 = vmatprep.subr.mxu0 0.0
  %186 = vmatpush2.msra.mxu0 0.0
  %187 = vmatprep.mubr.f32.mxu0 0.0
  %188 = vmatmul.mubr.f32.gmra.mxu0 %v49
  %v189 = vpop.f32.mrf.mxu0
  %v190 = vadd.f32 0.0, %v189
  %v191 = vpop.f32.mrf.mxu0
  %192 = vdwg.mxu0
  %194 = vset.pattern.permute.xlu0 0
  %195 = vperm.xlu0 %194, %v190
  %v196 = vpop.permute.xlu0 %195
  %v198 = vmul.f32 %v118, %v196
  %v199 = vlaneseq
  %v200 = vshrl.u32 %v199, 7
  %v201 = vadd.s32 %v200, 8
  %vm202 = vcmp.eq.s32.totalorder %v200, %v38
  %vm203 = vcmp.eq.s32.totalorder %v201, %v38
  %v204 = vld [vmem:[%s1] sm:$0xff]
  %v205 = vld [vmem:[%s1 + $0x8] sm:$0xff]
  %v206 = vsel %vm202, 1.0, %v204
  %v207 = vsel %vm203, 1.0, %v205
  %v208 = vpack.c.bf16 %v44, %v44
  %v209 = vpack.c.bf16 %v207, %v206
  %v211 = vsel %vm47, %v208, 0
  %213 = vmatprep.subr.bf16.mxu0 0
  %214 = vmatpush1.bf16.msra.mxu0 0
  %215 = vmatprep.subr.bf16.mxu0 0
  %216 = vmatpush1.bf16.msra.mxu0 0
  %217 = vmatprep.subr.bf16.mxu0 0
  %218 = vmatpush1.bf16.msra.mxu0 0
  %219 = vmatprep.subr.bf16.mxu0 0
  %220 = vmatpush1.bf16.msra.mxu0 0
  %221 = vmatprep.subr.bf16.mxu0 0
  %222 = vmatpush1.bf16.msra.mxu0 0
  %223 = vmatprep.subr.bf16.mxu0 0
  %224 = vmatpush1.bf16.msra.mxu0 0
  %225 = vmatprep.subr.bf16.mxu0 0
  %226 = vmatpush1.bf16.msra.mxu0 0
  %227 = vmatprep.subr.bf16.mxu0 0
  %228 = vmatpush1.bf16.msra.mxu0 %v209
  %229 = vmatprep.subr.bf16.mxu0 0
  %230 = vmatpush2.bf16.msra.mxu0 0
  %231 = vmatprep.subr.bf16.mxu0 0
  %232 = vmatpush2.bf16.msra.mxu0 0
  %233 = vmatprep.subr.bf16.mxu0 0
  %234 = vmatpush2.bf16.msra.mxu0 0
  %235 = vmatprep.subr.bf16.mxu0 0
  %236 = vmatpush2.bf16.msra.mxu0 0
  %237 = vmatprep.subr.bf16.mxu0 0
  %238 = vmatpush2.bf16.msra.mxu0 0
  %239 = vmatprep.subr.bf16.mxu0 0
  %240 = vmatpush2.bf16.msra.mxu0 0
  %241 = vmatprep.subr.bf16.mxu0 0
  %242 = vmatpush2.bf16.msra.mxu0 0
  %243 = vmatprep.subr.bf16.mxu0 0
  %244 = vmatpush2.bf16.msra.mxu0 0
  %245 = vmatprep.mubr.bf16.mxu0 0
  %246 = vmatmul.mubr.bf16.gmra.mxu0 %v211
  %v247 = vpop.f32.mrf.mxu0
  %v248 = vadd.f32 0.0, %v247
  %v249 = vpop.f32.mrf.mxu0
  %v250 = vpop.f32.mrf.mxu0
  %v251 = vpop.f32.mrf.mxu0
  %252 = vdwg.mxu0
  %v254 = vsel %vm47, %v209, 0
  %256 = vmatprep.subr.bf16.mxu0 0
  %257 = vmatpush1.bf16.xpose.msra.mxu0 0
  %258 = vmatprep.subr.bf16.mxu0 0
  %259 = vmatpush1.bf16.xpose.msra.mxu0 0
  %260 = vmatprep.subr.bf16.mxu0 0
  %261 = vmatpush1.bf16.xpose.msra.mxu0 0
  %262 = vmatprep.subr.bf16.mxu0 0
  %263 = vmatpush1.bf16.xpose.msra.mxu0 0
  %264 = vmatprep.subr.bf16.mxu0 0
  %265 = vmatpush1.bf16.xpose.msra.mxu0 0
  %266 = vmatprep.subr.bf16.mxu0 0
  %267 = vmatpush1.bf16.xpose.msra.mxu0 0
  %268 = vmatprep.subr.bf16.mxu0 0
  %269 = vmatpush1.bf16.xpose.msra.mxu0 0
  %270 = vmatprep.subr.bf16.mxu0 0
  %271 = vmatpush1.bf16.xpose.msra.mxu0 %v211
  %272 = vmatprep.subr.bf16.mxu0 0
  %273 = vmatpush2.bf16.xpose.msra.mxu0 0
  %274 = vmatprep.subr.bf16.mxu0 0
  %275 = vmatpush2.bf16.xpose.msra.mxu0 0
  %276 = vmatprep.subr.bf16.mxu0 0
  %277 = vmatpush2.bf16.xpose.msra.mxu0 0
  %278 = vmatprep.subr.bf16.mxu0 0
  %279 = vmatpush2.bf16.xpose.msra.mxu0 0
  %280 = vmatprep.subr.bf16.mxu0 0
  %281 = vmatpush2.bf16.xpose.msra.mxu0 0
  %282 = vmatprep.subr.bf16.mxu0 0
  %283 = vmatpush2.bf16.xpose.msra.mxu0 0
  %284 = vmatprep.subr.bf16.mxu0 0
  %285 = vmatpush2.bf16.xpose.msra.mxu0 0
  %286 = vmatprep.subr.bf16.mxu0 0
  %287 = vmatpush2.bf16.xpose.msra.mxu0 0
  %288 = vmatprep.mubr.bf16.mxu0 0
  %289 = vmatmul.mubr.bf16.gmra.mxu0 %v254
  %v290 = vpop.f32.mrf.mxu0
  %v291 = vadd.f32 0.0, %v290
  %v292 = vpop.f32.mrf.mxu0
  %v293 = vpop.f32.mrf.mxu0
  %v294 = vadd.f32 0.0, %v293
  %v295 = vpop.f32.mrf.mxu0
  %296 = vdwg.mxu0
  %v297 = vpack.c.bf16 %v248, %v248
  %v298 = vpack.c.bf16 %v294, %v291
  %v300 = vsel %vm47, %v297, 0
  %302 = vmatprep.subr.bf16.mxu0 0
  %303 = vmatpush1.bf16.msra.mxu0 0
  %304 = vmatprep.subr.bf16.mxu0 0
  %305 = vmatpush1.bf16.msra.mxu0 0
  %306 = vmatprep.subr.bf16.mxu0 0
  %307 = vmatpush1.bf16.msra.mxu0 0
  %308 = vmatprep.subr.bf16.mxu0 0
  %309 = vmatpush1.bf16.msra.mxu0 0
  %310 = vmatprep.subr.bf16.mxu0 0
  %311 = vmatpush1.bf16.msra.mxu0 0
  %312 = vmatprep.subr.bf16.mxu0 0
  %313 = vmatpush1.bf16.msra.mxu0 0
  %314 = vmatprep.subr.bf16.mxu0 0
  %315 = vmatpush1.bf16.msra.mxu0 0
  %316 = vmatprep.subr.bf16.mxu0 0
  %317 = vmatpush1.bf16.msra.mxu0 %v298
  %318 = vmatprep.subr.bf16.mxu0 0
  %319 = vmatpush2.bf16.msra.mxu0 0
  %320 = vmatprep.subr.bf16.mxu0 0
  %321 = vmatpush2.bf16.msra.mxu0 0
  %322 = vmatprep.subr.bf16.mxu0 0
  %323 = vmatpush2.bf16.msra.mxu0 0
  %324 = vmatprep.subr.bf16.mxu0 0
  %325 = vmatpush2.bf16.msra.mxu0 0
  %326 = vmatprep.subr.bf16.mxu0 0
  %327 = vmatpush2.bf16.msra.mxu0 0
  %328 = vmatprep.subr.bf16.mxu0 0
  %329 = vmatpush2.bf16.msra.mxu0 0
  %330 = vmatprep.subr.bf16.mxu0 0
  %331 = vmatpush2.bf16.msra.mxu0 0
  %332 = vmatprep.subr.bf16.mxu0 0
  %333 = vmatpush2.bf16.msra.mxu0 0
  %334 = vmatprep.mubr.bf16.mxu0 0
  %335 = vmatmul.mubr.bf16.gmra.mxu0 %v300
  %v336 = vpop.f32.mrf.mxu0
  %v337 = vadd.f32 0.0, %v336
  %v338 = vpop.f32.mrf.mxu0
  %v339 = vpop.f32.mrf.mxu0
  %v340 = vpop.f32.mrf.mxu0
  %341 = vdwg.mxu0
  %v342 = vsel %vm202, 0.0, %v337
  %vm343 = vcmask 64512
  %344 = vst.msk [vmem:[%s10] sm:$0xff] %vm343, %v342
  %v345 = vld [vmem:[%s4] sm:$0xff]
  %v346 = vld [vmem:[%s4 + $0x8] sm:$0xff]
  %v347 = vld [vmem:[%s4 + $0x10] sm:$0xff]
  %v348 = vld [vmem:[%s4 + $0x18] sm:$0xff]
  %v349 = vld [vmem:[%s4 + $0x20] sm:$0xff]
  %v350 = vld [vmem:[%s4 + $0x28] sm:$0xff]
  %v351 = vld [vmem:[%s4 + $0x30] sm:$0xff]
  %v352 = vld [vmem:[%s4 + $0x38] sm:$0xff]
  %v353 = vld [vmem:[%s4 + $0x40] sm:$0xff]
  %v354 = vld [vmem:[%s4 + $0x48] sm:$0xff]
  %v355 = vld [vmem:[%s4 + $0x50] sm:$0xff]
  %v356 = vld [vmem:[%s4 + $0x58] sm:$0xff]
  %v357 = vld [vmem:[%s4 + $0x60] sm:$0xff]
  %v358 = vld [vmem:[%s4 + $0x68] sm:$0xff]
  %v359 = vld [vmem:[%s4 + $0x70] sm:$0xff]
  %v360 = vld [vmem:[%s4 + $0x78] sm:$0xff]
  %v361 = vld [vmem:[%s5] sm:$0x1]
  %v362 = vld [vmem:[%s6] sm:$0xff]
  %v363 = vld [vmem:[%s6 + $0x8] sm:$0xff]
  %v364 = vld [vmem:[%s6 + $0x10] sm:$0xff]
  %v365 = vld [vmem:[%s6 + $0x18] sm:$0xff]
  %v366 = vld [vmem:[%s6 + $0x20] sm:$0xff]
  %v367 = vld [vmem:[%s6 + $0x28] sm:$0xff]
  %v368 = vld [vmem:[%s6 + $0x30] sm:$0xff]
  %v369 = vld [vmem:[%s6 + $0x38] sm:$0xff]
  %v370 = vld [vmem:[%s6 + $0x40] sm:$0xff]
  %v371 = vld [vmem:[%s6 + $0x48] sm:$0xff]
  %v372 = vld [vmem:[%s6 + $0x50] sm:$0xff]
  %v373 = vld [vmem:[%s6 + $0x58] sm:$0xff]
  %v374 = vld [vmem:[%s6 + $0x60] sm:$0xff]
  %v375 = vld [vmem:[%s6 + $0x68] sm:$0xff]
  %v376 = vld [vmem:[%s6 + $0x70] sm:$0xff]
  %v377 = vld [vmem:[%s6 + $0x78] sm:$0xff]
  %v378 = vld [vmem:[%s7] sm:$0x1]
  %vm379 = vcmp.eq.f32.partialorder %v342, 0.0
  %vm380 = vmand %vm202, %vm379
  %v381 = vsel %vm380, 1.0, %v342
  %382 = vxpose.xlu0.b32.start [1/16] %v381, 128
  %383 = vxpose.xlu0.b32.cont [2/16] 0.0, 128
  %384 = vxpose.xlu0.b32.cont [3/16] 0.0, 128
  %385 = vxpose.xlu0.b32.cont [4/16] 0.0, 128
  %386 = vxpose.xlu0.b32.cont [5/16] 0.0, 128
  %387 = vxpose.xlu0.b32.cont [6/16] 0.0, 128
  %388 = vxpose.xlu0.b32.cont [7/16] 0.0, 128
  %389 = vxpose.xlu0.b32.cont [8/16] 0.0, 128
  %390 = vxpose.xlu0.b32.cont [9/16] 0.0, 128
  %391 = vxpose.xlu0.b32.cont [10/16] 0.0, 128
  %392 = vxpose.xlu0.b32.cont [11/16] 0.0, 128
  %393 = vxpose.xlu0.b32.cont [12/16] 0.0, 128
  %394 = vxpose.xlu0.b32.cont [13/16] 0.0, 128
  %395 = vxpose.xlu0.b32.cont [14/16] 0.0, 128
  %396 = vxpose.xlu0.b32.cont [15/16] 0.0, 128
  %397 = vxpose.xlu0.b32.end [16/16] 0.0, 128
  %v398 = vpop.trf.xlu0
  %v399 = vpop.trf.xlu0
  %v400 = vpop.trf.xlu0
  %v401 = vpop.trf.xlu0
  %v402 = vpop.trf.xlu0
  %v403 = vpop.trf.xlu0
  %v404 = vpop.trf.xlu0
  %v405 = vpop.trf.xlu0
  %v406 = vpop.trf.xlu0
  %v407 = vpop.trf.xlu0
  %v408 = vpop.trf.xlu0
  %v409 = vpop.trf.xlu0
  %v410 = vpop.trf.xlu0
  %v411 = vpop.trf.xlu0
  %v412 = vpop.trf.xlu0
  %v413 = vpop.trf.xlu0
  %v415 = vsel %vm343, %v398, 0
  %417 = vmatprep.subr.mxu0 0.0
  %418 = vmatpush1.msra.mxu0 0.0
  %419 = vmatprep.subr.mxu0 0.0
  %420 = vmatpush1.msra.mxu0 0.0
  %421 = vmatprep.subr.mxu0 0.0
  %422 = vmatpush1.msra.mxu0 0.0
  %423 = vmatprep.subr.mxu0 0.0
  %424 = vmatpush1.msra.mxu0 0.0
  %425 = vmatprep.subr.mxu0 0.0
  %426 = vmatpush1.msra.mxu0 0.0
  %427 = vmatprep.subr.mxu0 0.0
  %428 = vmatpush1.msra.mxu0 0.0
  %429 = vmatprep.subr.mxu0 0.0
  %430 = vmatpush1.msra.mxu0 0.0
  %431 = vmatprep.subr.mxu0 0.0
  %432 = vmatpush1.msra.mxu0 0.0
  %433 = vmatprep.subr.mxu0 0.0
  %434 = vmatpush1.msra.mxu0 0.0
  %435 = vmatprep.subr.mxu0 0.0
  %436 = vmatpush1.msra.mxu0 0.0
  %437 = vmatprep.subr.mxu0 0.0
  %438 = vmatpush1.msra.mxu0 0.0
  %439 = vmatprep.subr.mxu0 0.0
  %440 = vmatpush1.msra.mxu0 0.0
  %441 = vmatprep.subr.mxu0 0.0
  %442 = vmatpush1.msra.mxu0 0.0
  %443 = vmatprep.subr.mxu0 0.0
  %444 = vmatpush1.msra.mxu0 0.0
  %445 = vmatprep.subr.mxu0 0.0
  %446 = vmatpush1.msra.mxu0 0.0
  %447 = vmatprep.subr.mxu0 0.0
  %448 = vmatpush1.msra.mxu0 1.0
  %449 = vmatprep.subr.mxu0 0.0
  %450 = vmatpush2.msra.mxu0 0.0
  %451 = vmatprep.subr.mxu0 0.0
  %452 = vmatpush2.msra.mxu0 0.0
  %453 = vmatprep.subr.mxu0 0.0
  %454 = vmatpush2.msra.mxu0 0.0
  %455 = vmatprep.subr.mxu0 0.0
  %456 = vmatpush2.msra.mxu0 0.0
  %457 = vmatprep.subr.mxu0 0.0
  %458 = vmatpush2.msra.mxu0 0.0
  %459 = vmatprep.subr.mxu0 0.0
  %460 = vmatpush2.msra.mxu0 0.0
  %461 = vmatprep.subr.mxu0 0.0
  %462 = vmatpush2.msra.mxu0 0.0
  %463 = vmatprep.subr.mxu0 0.0
  %464 = vmatpush2.msra.mxu0 0.0
  %465 = vmatprep.subr.mxu0 0.0
  %466 = vmatpush2.msra.mxu0 0.0
  %467 = vmatprep.subr.mxu0 0.0
  %468 = vmatpush2.msra.mxu0 0.0
  %469 = vmatprep.subr.mxu0 0.0
  %470 = vmatpush2.msra.mxu0 0.0
  %471 = vmatprep.subr.mxu0 0.0
  %472 = vmatpush2.msra.mxu0 0.0
  %473 = vmatprep.subr.mxu0 0.0
  %474 = vmatpush2.msra.mxu0 0.0
  %475 = vmatprep.subr.mxu0 0.0
  %476 = vmatpush2.msra.mxu0 0.0
  %477 = vmatprep.subr.mxu0 0.0
  %478 = vmatpush2.msra.mxu0 0.0
  %479 = vmatprep.subr.mxu0 0.0
  %480 = vmatpush2.msra.mxu0 0.0
  %481 = vmatprep.mubr.f32.mxu0 0.0
  %482 = vmatmul.mubr.f32.gmra.mxu0 %v415
  %v483 = vpop.f32.mrf.mxu0
  %v484 = vadd.f32 0.0, %v483
  %v485 = vpop.f32.mrf.mxu0
  %486 = vdwg.mxu0
  %vm487 = vcmp.gt.f32.partialorder %v484, 0.0
  %v488 = vrsqrt.pop %v484
  %v489 = vsel %vm487, %v488, 0.0
  %v490 = vpack.c.bf16 %v198, %v198
  %v491 = vpack.c.bf16 %v346, %v345
  %v492 = vpack.c.bf16 %v348, %v347
  %v493 = vpack.c.bf16 %v350, %v349
  %v494 = vpack.c.bf16 %v352, %v351
  %v495 = vpack.c.bf16 %v354, %v353
  %v496 = vpack.c.bf16 %v356, %v355
  %v497 = vpack.c.bf16 %v358, %v357
  %v498 = vpack.c.bf16 %v360, %v359
  %499 = vmatprep.subr.bf16.mxu0 0
  %500 = vmatpush1.bf16.msra.mxu0 %v498
  %501 = vmatprep.subr.bf16.mxu0 0
  %502 = vmatpush1.bf16.msra.mxu0 %v497
  %503 = vmatprep.subr.bf16.mxu0 0
  %504 = vmatpush1.bf16.msra.mxu0 %v496
  %505 = vmatprep.subr.bf16.mxu0 0
  %506 = vmatpush1.bf16.msra.mxu0 %v495
  %507 = vmatprep.subr.bf16.mxu0 0
  %508 = vmatpush1.bf16.msra.mxu0 %v494
  %509 = vmatprep.subr.bf16.mxu0 0
  %510 = vmatpush1.bf16.msra.mxu0 %v493
  %511 = vmatprep.subr.bf16.mxu0 0
  %512 = vmatpush1.bf16.msra.mxu0 %v492
  %513 = vmatprep.subr.bf16.mxu0 0
  %514 = vmatpush1.bf16.msra.mxu0 %v491
  %515 = vmatprep.subr.bf16.mxu0 0
  %516 = vmatpush2.bf16.msra.mxu0 0
  %517 = vmatprep.subr.bf16.mxu0 0
  %518 = vmatpush2.bf16.msra.mxu0 0
  %519 = vmatprep.subr.bf16.mxu0 0
  %520 = vmatpush2.bf16.msra.mxu0 0
  %521 = vmatprep.subr.bf16.mxu0 0
  %522 = vmatpush2.bf16.msra.mxu0 0
  %523 = vmatprep.subr.bf16.mxu0 0
  %524 = vmatpush2.bf16.msra.mxu0 0
  %525 = vmatprep.subr.bf16.mxu0 0
  %526 = vmatpush2.bf16.msra.mxu0 0
  %527 = vmatprep.subr.bf16.mxu0 0
  %528 = vmatpush2.bf16.msra.mxu0 0
  %529 = vmatprep.subr.bf16.mxu0 0
  %530 = vmatpush2.bf16.msra.mxu0 0
  %531 = vmatprep.mubr.bf16.mxu0 0
  %532 = vmatmul.mubr.bf16.gmra.mxu0 %v490
  %v533 = vpop.f32.mrf.mxu0
  %v534 = vadd.f32 0.0, %v533
  %v535 = vpop.f32.mrf.mxu0
  %v536 = vpop.f32.mrf.mxu0
  %v537 = vpop.f32.mrf.mxu0
  %538 = vdwg.mxu0
  %540 = vset.pattern.permute.xlu0 0
  %541 = vperm.xlu0 %540, %v489
  %v542 = vpop.permute.xlu0 %541
  %v544 = vmul.f32 %v534, %v542
  %v545 = vpack.c.bf16 %v381, %v381
  %v546 = vpack.c.bf16 %v544, %v544
  %547 = vxpose.xlu0.c.b16.start [1/8] %v545, 128
  %548 = vxpose.xlu0.c.b16.cont [2/8] 0, 128
  %549 = vxpose.xlu0.c.b16.cont [3/8] 0, 128
  %550 = vxpose.xlu0.c.b16.cont [4/8] 0, 128
  %551 = vxpose.xlu0.c.b16.cont [5/8] 0, 128
  %552 = vxpose.xlu0.c.b16.cont [6/8] 0, 128
  %553 = vxpose.xlu0.c.b16.cont [7/8] 0, 128
  %554 = vxpose.xlu0.c.b16.end [8/8] 0, 128
  %v555 = vpop.trf.xlu0
  %v556 = vpop.trf.xlu0
  %v557 = vpop.trf.xlu0
  %v558 = vpop.trf.xlu0
  %v559 = vpop.trf.xlu0
  %v560 = vpop.trf.xlu0
  %v561 = vpop.trf.xlu0
  %v562 = vpop.trf.xlu0
  %v564 = vsel %vm343, %v555, 0
  %vm566 = vcmask 1043456
  %v568 = vsel %vm566, %v546, 0
  %570 = vmatprep.subr.bf16.mxu0 0
  %571 = vmatpush1.bf16.msra.mxu0 0
  %572 = vmatprep.subr.bf16.mxu0 0
  %573 = vmatpush1.bf16.msra.mxu0 0
  %574 = vmatprep.subr.bf16.mxu0 0
  %575 = vmatpush1.bf16.msra.mxu0 0
  %576 = vmatprep.subr.bf16.mxu0 0
  %577 = vmatpush1.bf16.msra.mxu0 0
  %578 = vmatprep.subr.bf16.mxu0 0
  %579 = vmatpush1.bf16.msra.mxu0 0
  %580 = vmatprep.subr.bf16.mxu0 0
  %581 = vmatpush1.bf16.msra.mxu0 0
  %582 = vmatprep.subr.bf16.mxu0 0
  %583 = vmatpush1.bf16.msra.mxu0 0
  %584 = vmatprep.subr.bf16.mxu0 0
  %585 = vmatpush1.bf16.msra.mxu0 %v568
  %586 = vmatprep.subr.bf16.mxu0 0
  %587 = vmatpush2.bf16.msra.mxu0 0
  %588 = vmatprep.subr.bf16.mxu0 0
  %589 = vmatpush2.bf16.msra.mxu0 0
  %590 = vmatprep.subr.bf16.mxu0 0
  %591 = vmatpush2.bf16.msra.mxu0 0
  %592 = vmatprep.subr.bf16.mxu0 0
  %593 = vmatpush2.bf16.msra.mxu0 0
  %594 = vmatprep.subr.bf16.mxu0 0
  %595 = vmatpush2.bf16.msra.mxu0 0
  %596 = vmatprep.subr.bf16.mxu0 0
  %597 = vmatpush2.bf16.msra.mxu0 0
  %598 = vmatprep.subr.bf16.mxu0 0
  %599 = vmatpush2.bf16.msra.mxu0 0
  %600 = vmatprep.subr.bf16.mxu0 0
  %601 = vmatpush2.bf16.msra.mxu0 0
  %602 = vmatprep.mubr.bf16.mxu0 0
  %603 = vmatmul.mubr.bf16.gmra.mxu0 %v564
  %v604 = vpop.f32.mrf.mxu0
  %v605 = vadd.f32 0.0, %v604
  %v606 = vpop.f32.mrf.mxu0
  %v607 = vpop.f32.mrf.mxu0
  %v608 = vpop.f32.mrf.mxu0
  %609 = vdwg.mxu0
  %v610 = vmul.f32 %v605, %v542
  %v612 = vlaneseq
  %v613 = vshrl.u32 %v612, 7
  %v614 = vsub.s32 0, %v613
  %v615 = vrot.slane %v361, %v614
  %v617 = vadd.f32 %v610, %v615
  %v618 = vmax.f32 %v617, 0.0
  %v619 = vpack.c.bf16 %v618, %v618
  %v620 = vpack.c.bf16 %v363, %v362
  %v621 = vpack.c.bf16 %v365, %v364
  %v622 = vpack.c.bf16 %v367, %v366
  %v623 = vpack.c.bf16 %v369, %v368
  %v624 = vpack.c.bf16 %v371, %v370
  %v625 = vpack.c.bf16 %v373, %v372
  %v626 = vpack.c.bf16 %v375, %v374
  %v627 = vpack.c.bf16 %v377, %v376
  %628 = vmatprep.subr.bf16.mxu0 0
  %629 = vmatpush1.bf16.msra.mxu0 %v627
  %630 = vmatprep.subr.bf16.mxu0 0
  %631 = vmatpush1.bf16.msra.mxu0 %v626
  %632 = vmatprep.subr.bf16.mxu0 0
  %633 = vmatpush1.bf16.msra.mxu0 %v625
  %634 = vmatprep.subr.bf16.mxu0 0
  %635 = vmatpush1.bf16.msra.mxu0 %v624
  %636 = vmatprep.subr.bf16.mxu0 0
  %637 = vmatpush1.bf16.msra.mxu0 %v623
  %638 = vmatprep.subr.bf16.mxu0 0
  %639 = vmatpush1.bf16.msra.mxu0 %v622
  %640 = vmatprep.subr.bf16.mxu0 0
  %641 = vmatpush1.bf16.msra.mxu0 %v621
  %642 = vmatprep.subr.bf16.mxu0 0
  %643 = vmatpush1.bf16.msra.mxu0 %v620
  %644 = vmatprep.subr.bf16.mxu0 0
  %645 = vmatpush2.bf16.msra.mxu0 0
  %646 = vmatprep.subr.bf16.mxu0 0
  %647 = vmatpush2.bf16.msra.mxu0 0
  %648 = vmatprep.subr.bf16.mxu0 0
  %649 = vmatpush2.bf16.msra.mxu0 0
  %650 = vmatprep.subr.bf16.mxu0 0
  %651 = vmatpush2.bf16.msra.mxu0 0
  %652 = vmatprep.subr.bf16.mxu0 0
  %653 = vmatpush2.bf16.msra.mxu0 0
  %654 = vmatprep.subr.bf16.mxu0 0
  %655 = vmatpush2.bf16.msra.mxu0 0
  %656 = vmatprep.subr.bf16.mxu0 0
  %657 = vmatpush2.bf16.msra.mxu0 0
  %658 = vmatprep.subr.bf16.mxu0 0
  %659 = vmatpush2.bf16.msra.mxu0 0
  %660 = vmatprep.mubr.bf16.mxu0 0
  %661 = vmatmul.mubr.bf16.gmra.mxu0 %v619
  %v662 = vpop.f32.mrf.mxu0
  %v663 = vadd.f32 0.0, %v662
  %v664 = vpop.f32.mrf.mxu0
  %v665 = vpop.f32.mrf.mxu0
  %v666 = vpop.f32.mrf.mxu0
  %667 = vdwg.mxu0
  %v668 = vmul.f32 %v663, %v542
  %v669 = vpack.c.bf16 %v668, %v668
  %v671 = vsel %vm566, %v669, 0
  %673 = vmatprep.subr.bf16.mxu0 0
  %674 = vmatpush1.bf16.msra.mxu0 0
  %675 = vmatprep.subr.bf16.mxu0 0
  %676 = vmatpush1.bf16.msra.mxu0 0
  %677 = vmatprep.subr.bf16.mxu0 0
  %678 = vmatpush1.bf16.msra.mxu0 0
  %679 = vmatprep.subr.bf16.mxu0 0
  %680 = vmatpush1.bf16.msra.mxu0 0
  %681 = vmatprep.subr.bf16.mxu0 0
  %682 = vmatpush1.bf16.msra.mxu0 0
  %683 = vmatprep.subr.bf16.mxu0 0
  %684 = vmatpush1.bf16.msra.mxu0 0
  %685 = vmatprep.subr.bf16.mxu0 0
  %686 = vmatpush1.bf16.msra.mxu0 0
  %687 = vmatprep.subr.bf16.mxu0 0
  %688 = vmatpush1.bf16.msra.mxu0 %v671
  %689 = vmatprep.subr.bf16.mxu0 0
  %690 = vmatpush2.bf16.msra.mxu0 0
  %691 = vmatprep.subr.bf16.mxu0 0
  %692 = vmatpush2.bf16.msra.mxu0 0
  %693 = vmatprep.subr.bf16.mxu0 0
  %694 = vmatpush2.bf16.msra.mxu0 0
  %695 = vmatprep.subr.bf16.mxu0 0
  %696 = vmatpush2.bf16.msra.mxu0 0
  %697 = vmatprep.subr.bf16.mxu0 0
  %698 = vmatpush2.bf16.msra.mxu0 0
  %699 = vmatprep.subr.bf16.mxu0 0
  %700 = vmatpush2.bf16.msra.mxu0 0
  %701 = vmatprep.subr.bf16.mxu0 0
  %702 = vmatpush2.bf16.msra.mxu0 0
  %703 = vmatprep.subr.bf16.mxu0 0
  %704 = vmatpush2.bf16.msra.mxu0 0
  %705 = vmatprep.mubr.bf16.mxu0 0
  %706 = vmatmul.mubr.bf16.gmra.mxu0 %v564
  %v707 = vpop.f32.mrf.mxu0
  %v708 = vadd.f32 0.0, %v707
  %v709 = vpop.f32.mrf.mxu0
  %v710 = vpop.f32.mrf.mxu0
  %v711 = vpop.f32.mrf.mxu0
  %712 = vdwg.mxu0
  %v713 = vmul.f32 %v708, %v542
  %v715 = vlaneseq
  %v716 = vshrl.u32 %v715, 7
  %v717 = vsub.s32 0, %v716
  %v718 = vrot.slane %v378, %v717
  %v720 = vadd.f32 %v713, %v718
  %v721 = vmax.f32 %v720, 0.0
  %722 = vst [vmem:[%s9] sm:$0xff] %v721
  %v723 = vld [vmem:[%s8] sm:$0x1]
  %v724 = vmul.f32 %v723, %v723
  %vm725 = vcmask 1040384
  %v726 = vsel %vm725, %v724, 0.0
  %727 = vadd.xlane.f32.xlu0 %v726
  %v728 = vpop.xlane.xlu0 %727
  %v729 = vrsqrt.pop %v728
  %v731 = vlaneseq
  %v732 = vshrl.u32 %v731, 7
  %v733 = vsub.s32 0, %v732
  %v734 = vrot.slane %v723, %v733
  %v736 = vmul.f32 %v721, %v734
  %737 = vadd.xlane.f32.xlu0 %v736
  %v738 = vpop.xlane.xlu0 %737
  %v739 = vlaneseq
  %v740 = vshrl.u32 %v739, 7
  %v741 = vsub.s32 0, %v740
  %v742 = vrot.slane %v729, %v741
  %v743 = vmul.f32 %v738, %v742
  %v744 = vtanh.pop %v743
  %vm745 = vcmask 7168
  %746 = vst.msk [vmem:[%s11] sm:$0xff] %vm745, %v744
  // Predicated region
  $region38: #{graph_unet_v2_forward.6} parent=0 // pred_check
    _
  $region39: #{graph_unet_v2_forward.6} parent=0 // pred_check_branch
    %748 = sbr.rel (0) target = $region41
  $region40: #{graph_unet_v2_forward.6} parent=0 // pred_region
    _
  $region41: #{graph_unet_v2_forward.6} parent=0 // pred_fallthru
    _
  // Predicated region
  $region42: #{graph_unet_v2_forward.6} parent=0 // pred_check
    _
  $region43: #{graph_unet_v2_forward.6} parent=0 // pred_check_branch
    %750 = sbr.rel (0) target = $region45
  $region44: #{graph_unet_v2_forward.6} parent=0 // pred_region
    _
  $region45: #{graph_unet_v2_forward.6} parent=0 // pred_fallthru
    _
  // Predicated region
  $region46: #{graph_unet_v2_forward.6} parent=0 // pred_check
    _
  $region47: #{graph_unet_v2_forward.6} parent=0 // pred_check_branch
    %752 = sbr.rel (0) target = $region49
  $region48: #{graph_unet_v2_forward.6} parent=0 // pred_region
    _
  $region49: #{graph_unet_v2_forward.6} parent=0 // pred_fallthru
    _
  // Predicated region
  $region50: #{graph_unet_v2_forward.6} parent=0 // pred_check
    _
  $region51: #{graph_unet_v2_forward.6} parent=0 // pred_check_branch
    %754 = sbr.rel (0) target = $region53
  $region52: #{graph_unet_v2_forward.6} parent=0 // pred_region
    _
  $region53: #{graph_unet_v2_forward.6} parent=0 // pred_fallthru
    _
  // Predicated region
  $region54: #{graph_unet_v2_forward.6} parent=0 // pred_check
    _
  $region55: #{graph_unet_v2_forward.6} parent=0 // pred_check_branch
    %756 = sbr.rel (0) target = $region57
  $region56: #{graph_unet_v2_forward.6} parent=0 // pred_region
    _
  $region57: #{graph_unet_v2_forward.6} parent=0 // pred_fallthru
    _
  // Predicated region
  $region58: #{graph_unet_v2_forward.6} parent=0 // pred_check
    _
  $region59: #{graph_unet_v2_forward.6} parent=0 // pred_check_branch
    %758 = sbr.rel (0) target = $region61
  $region60: #{graph_unet_v2_forward.6} parent=0 // pred_region
    _
  $region61: #{graph_unet_v2_forward.6} parent=0 // pred_fallthru
    _

// kernel: graph_unet_v2_forward.7
$region0: #{graph_unet_v2_forward.7}
  #allocation0 [shape = 'u32[]', space=smem, size = 0x4, offset = 0x4, fixed_abs, tag = 'smem constant byte address 0x4 - core index']
  #allocation1 [shape = 'u32[144,128]{1,0:T(1,128)}', space=vmem, size = 0x12000, scoped, tag = 'internal scratch']
  %s0 = inlined_call_operand.vmem [shape: s32[4,1], index: 0, kind: input, shape index: {}]
  %s1 = inlined_call_operand.vmem [shape: f32[8,8], index: 1, kind: input, shape index: {}]
  %s2 = inlined_call_operand.vmem [shape: f32[8,128], index: 2, kind: input, shape index: {}]
  %s3 = inlined_call_operand.vmem [shape: f32[8,1], index: 3, kind: input, shape index: {}]
  %s4 = inlined_call_operand.vmem [shape: f32[128,128], index: 4, kind: input, shape index: {}]
  %s5 = inlined_call_operand.vmem [shape: f32[1,128], index: 5, kind: input, shape index: {}]
  %s6 = inlined_call_operand.vmem [shape: f32[128,128], index: 6, kind: input, shape index: {}]
  %s7 = inlined_call_operand.vmem [shape: f32[1,128], index: 7, kind: input, shape index: {}]
  %s8 = inlined_call_operand.vmem [shape: f32[1,128], index: 8, kind: input, shape index: {}]
  %s9 = inlined_call_operand.vmem [shape: f32[4,128], index: 9, kind: output, shape index: {0}]
  %s10 = inlined_call_operand.hbm [shape: f32[4,4], index: 10, kind: output, shape index: {1}]
  %s11 = inlined_call_operand.hbm [shape: f32[4,1], index: 11, kind: output, shape index: {2}]
  %12 = xla_tuple %s9, %s10, %s11
  %s13 = sld [smem:[#allocation0]]
  $region62: #{graph_unet_v2_forward.7} parent=0
    _
  %s15 = ssub.s32 1, %s13
  %s16 = scalar_select 0, %s15, %s13
  $region1: #{graph_unet_v2_forward.7} parent=0
    #allocation2 [shape = 'u8[2048]{0}', space=vmem, size = 0x800, scoped, tag = 'output window, operand 1, single buffered']
    #allocation3 [shape = 's32[1]{0}', space=sflag, size = 0x4, scoped, tag = 'scoped memory for graph_unet_v2_forward.7']
    #allocation4 [shape = 'u8[2048]{0}', space=vmem, size = 0x800, scoped, tag = 'output window, operand 2, single buffered']
    #allocation5 [shape = 's32[1]{0}', space=sflag, size = 0x4, scoped, tag = 'scoped memory for graph_unet_v2_forward.7']
    %17 = vsyncpa [#allocation3], 0
    %18 = vsyncpa [#allocation5], 0
    // Predicated region
    $region2: #{graph_unet_v2_forward.7} parent=1 // pred_check
      _
    $region3: #{graph_unet_v2_forward.7} parent=1 // pred_check_branch
      %20 = sbr.rel (0) target = $region5
    $region4: #{graph_unet_v2_forward.7} parent=1 // pred_region
      _
    $region5: #{graph_unet_v2_forward.7} parent=1 // pred_fallthru
      _
    // Predicated region
    $region6: #{graph_unet_v2_forward.7} parent=1 // pred_check
      _
    $region7: #{graph_unet_v2_forward.7} parent=1 // pred_check_branch
      %22 = sbr.rel (0) target = $region9
    $region8: #{graph_unet_v2_forward.7} parent=1 // pred_region
      _
    $region9: #{graph_unet_v2_forward.7} parent=1 // pred_fallthru
      _
    // Predicated region
    $region10: #{graph_unet_v2_forward.7} parent=1 // pred_check
      _
    $region11: #{graph_unet_v2_forward.7} parent=1 // pred_check_branch
      %24 = sbr.rel (0) target = $region13
    $region12: #{graph_unet_v2_forward.7} parent=1 // pred_region
      _
    $region13: #{graph_unet_v2_forward.7} parent=1 // pred_fallthru
      _
    // Predicated region
    $region14: #{graph_unet_v2_forward.7} parent=1 // pred_check
      _
    $region15: #{graph_unet_v2_forward.7} parent=1 // pred_check_branch
      %26 = sbr.rel (0) target = $region17
    $region16: #{graph_unet_v2_forward.7} parent=1 // pred_region
      _
    $region17: #{graph_unet_v2_forward.7} parent=1 // pred_fallthru
      _
    // Predicated region
    $region18: #{graph_unet_v2_forward.7} parent=1 // pred_check
      _
    $region19: #{graph_unet_v2_forward.7} parent=1 // pred_check_branch
      %28 = sbr.rel (0) target = $region21
    $region20: #{graph_unet_v2_forward.7} parent=1 // pred_region
      _
    $region21: #{graph_unet_v2_forward.7} parent=1 // pred_fallthru
      _
    // Predicated region
    $region22: #{graph_unet_v2_forward.7} parent=1 // pred_check
      _
    $region23: #{graph_unet_v2_forward.7} parent=1 // pred_check_branch
      %30 = sbr.rel (0) target = $region25
    $region24: #{graph_unet_v2_forward.7} parent=1 // pred_region
      _
    $region25: #{graph_unet_v2_forward.7} parent=1 // pred_fallthru
      _
    // Predicated region
    $region26: #{graph_unet_v2_forward.7} parent=1 // pred_check
      _
    $region27: #{graph_unet_v2_forward.7} parent=1 // pred_check_branch
      %32 = sbr.rel (0) target = $region29
    $region28: #{graph_unet_v2_forward.7} parent=1 // pred_region
      _
    $region29: #{graph_unet_v2_forward.7} parent=1 // pred_fallthru
      _
    // Predicated region
    $region30: #{graph_unet_v2_forward.7} parent=1 // pred_check
      _
    $region31: #{graph_unet_v2_forward.7} parent=1 // pred_check_branch
      %34 = sbr.rel (0) target = $region33
    $region32: #{graph_unet_v2_forward.7} parent=1 // pred_region
      _
    $region33: #{graph_unet_v2_forward.7} parent=1 // pred_fallthru
      _
    // Predicated region
    $region34: #{graph_unet_v2_forward.7} parent=1 // pred_check
      _
    $region35: #{graph_unet_v2_forward.7} parent=1 // pred_check_branch
      %36 = sbr.rel (0) target = $region37
    $region36: #{graph_unet_v2_forward.7} parent=1 // pred_region
      _
    $region37: #{graph_unet_v2_forward.7} parent=1 // pred_fallthru
      _
    %v38 = vld [vmem:[%s0] sm:$0xf]
    %v39 = vlaneseq
    %v40 = vand.u32 %v39, 127
    %41 = vset.pattern.permute.xlu0 0
    %42 = vperm.xlu0 %41, %v38
    %v43 = vpop.permute.xlu0 %42
    %vm44 = vcmp.eq.s32.totalorder %v40, %v43
    %v45 = vsel %vm44, 1, 0
    %v46 = vcvt.s32.f32 %v45
    %v47 = vld [vmem:[%s2] sm:$0xff]
    %vm48 = vcmask 64512
    %v50 = vsel %vm48, %v46, 0
    %52 = vmatprep.subr.mxu0 0.0
    %53 = vmatpush1.msra.mxu0 0.0
    %54 = vmatprep.subr.mxu0 0.0
    %55 = vmatpush1.msra.mxu0 0.0
    %56 = vmatprep.subr.mxu0 0.0
    %57 = vmatpush1.msra.mxu0 0.0
    %58 = vmatprep.subr.mxu0 0.0
    %59 = vmatpush1.msra.mxu0 0.0
    %60 = vmatprep.subr.mxu0 0.0
    %61 = vmatpush1.msra.mxu0 0.0
    %62 = vmatprep.subr.mxu0 0.0
    %63 = vmatpush1.msra.mxu0 0.0
    %64 = vmatprep.subr.mxu0 0.0
    %65 = vmatpush1.msra.mxu0 0.0
    %66 = vmatprep.subr.mxu0 0.0
    %67 = vmatpush1.msra.mxu0 0.0
    %68 = vmatprep.subr.mxu0 0.0
    %69 = vmatpush1.msra.mxu0 0.0
    %70 = vmatprep.subr.mxu0 0.0
    %71 = vmatpush1.msra.mxu0 0.0
    %72 = vmatprep.subr.mxu0 0.0
    %73 = vmatpush1.msra.mxu0 0.0
    %74 = vmatprep.subr.mxu0 0.0
    %75 = vmatpush1.msra.mxu0 0.0
    %76 = vmatprep.subr.mxu0 0.0
    %77 = vmatpush1.msra.mxu0 0.0
    %78 = vmatprep.subr.mxu0 0.0
    %79 = vmatpush1.msra.mxu0 0.0
    %80 = vmatprep.subr.mxu0 0.0
    %81 = vmatpush1.msra.mxu0 0.0
    %82 = vmatprep.subr.mxu0 0.0
    %83 = vmatpush1.msra.mxu0 %v47
    %84 = vmatprep.subr.mxu0 0.0
    %85 = vmatpush2.msra.mxu0 0.0
    %86 = vmatprep.subr.mxu0 0.0
    %87 = vmatpush2.msra.mxu0 0.0
    %88 = vmatprep.subr.mxu0 0.0
    %89 = vmatpush2.msra.mxu0 0.0
    %90 = vmatprep.subr.mxu0 0.0
    %91 = vmatpush2.msra.mxu0 0.0
    %92 = vmatprep.subr.mxu0 0.0
    %93 = vmatpush2.msra.mxu0 0.0
    %94 = vmatprep.subr.mxu0 0.0
    %95 = vmatpush2.msra.mxu0 0.0
    %96 = vmatprep.subr.mxu0 0.0
    %97 = vmatpush2.msra.mxu0 0.0
    %98 = vmatprep.subr.mxu0 0.0
    %99 = vmatpush2.msra.mxu0 0.0
    %100 = vmatprep.subr.mxu0 0.0
    %101 = vmatpush2.msra.mxu0 0.0
    %102 = vmatprep.subr.mxu0 0.0
    %103 = vmatpush2.msra.mxu0 0.0
    %104 = vmatprep.subr.mxu0 0.0
    %105 = vmatpush2.msra.mxu0 0.0
    %106 = vmatprep.subr.mxu0 0.0
    %107 = vmatpush2.msra.mxu0 0.0
    %108 = vmatprep.subr.mxu0 0.0
    %109 = vmatpush2.msra.mxu0 0.0
    %110 = vmatprep.subr.mxu0 0.0
    %111 = vmatpush2.msra.mxu0 0.0
    %112 = vmatprep.subr.mxu0 0.0
    %113 = vmatpush2.msra.mxu0 0.0
    %114 = vmatprep.subr.mxu0 0.0
    %115 = vmatpush2.msra.mxu0 0.0
    %116 = vmatprep.mubr.f32.mxu0 0.0
    %117 = vmatmul.mubr.f32.gmra.mxu0 %v50
    %v118 = vpop.f32.mrf.mxu0
    %v119 = vadd.f32 0.0, %v118
    %v120 = vpop.f32.mrf.mxu0
    %121 = vdwg.mxu0
    %v122 = vld [vmem:[%s3] sm:$0xff]
    %123 = vmatprep.subr.mxu0 0.0
    %124 = vmatpush1.msra.mxu0 0.0
    %125 = vmatprep.subr.mxu0 0.0
    %126 = vmatpush1.msra.mxu0 0.0
    %127 = vmatprep.subr.mxu0 0.0
    %128 = vmatpush1.msra.mxu0 0.0
    %129 = vmatprep.subr.mxu0 0.0
    %130 = vmatpush1.msra.mxu0 0.0
    %131 = vmatprep.subr.mxu0 0.0
    %132 = vmatpush1.msra.mxu0 0.0
    %133 = vmatprep.subr.mxu0 0.0
    %134 = vmatpush1.msra.mxu0 0.0
    %135 = vmatprep.subr.mxu0 0.0
    %136 = vmatpush1.msra.mxu0 0.0
    %137 = vmatprep.subr.mxu0 0.0
    %138 = vmatpush1.msra.mxu0 0.0
    %139 = vmatprep.subr.mxu0 0.0
    %140 = vmatpush1.msra.mxu0 0.0
    %141 = vmatprep.subr.mxu0 0.0
    %142 = vmatpush1.msra.mxu0 0.0
    %143 = vmatprep.subr.mxu0 0.0
    %144 = vmatpush1.msra.mxu0 0.0
    %145 = vmatprep.subr.mxu0 0.0
    %146 = vmatpush1.msra.mxu0 0.0
    %147 = vmatprep.subr.mxu0 0.0
    %148 = vmatpush1.msra.mxu0 0.0
    %149 = vmatprep.subr.mxu0 0.0
    %150 = vmatpush1.msra.mxu0 0.0
    %151 = vmatprep.subr.mxu0 0.0
    %152 = vmatpush1.msra.mxu0 0.0
    %153 = vmatprep.subr.mxu0 0.0
    %154 = vmatpush1.msra.mxu0 %v122
    %155 = vmatprep.subr.mxu0 0.0
    %156 = vmatpush2.msra.mxu0 0.0
    %157 = vmatprep.subr.mxu0 0.0
    %158 = vmatpush2.msra.mxu0 0.0
    %159 = vmatprep.subr.mxu0 0.0
    %160 = vmatpush2.msra.mxu0 0.0
    %161 = vmatprep.subr.mxu0 0.0
    %162 = vmatpush2.msra.mxu0 0.0
    %163 = vmatprep.subr.mxu0 0.0
    %164 = vmatpush2.msra.mxu0 0.0
    %165 = vmatprep.subr.mxu0 0.0
    %166 = vmatpush2.msra.mxu0 0.0
    %167 = vmatprep.subr.mxu0 0.0
    %168 = vmatpush2.msra.mxu0 0.0
    %169 = vmatprep.subr.mxu0 0.0
    %170 = vmatpush2.msra.mxu0 0.0
    %171 = vmatprep.subr.mxu0 0.0
    %172 = vmatpush2.msra.mxu0 0.0
    %173 = vmatprep.subr.mxu0 0.0
    %174 = vmatpush2.msra.mxu0 0.0
    %175 = vmatprep.subr.mxu0 0.0
    %176 = vmatpush2.msra.mxu0 0.0
    %177 = vmatprep.subr.mxu0 0.0
    %178 = vmatpush2.msra.mxu0 0.0
    %179 = vmatprep.subr.mxu0 0.0
    %180 = vmatpush2.msra.mxu0 0.0
    %181 = vmatprep.subr.mxu0 0.0
    %182 = vmatpush2.msra.mxu0 0.0
    %183 = vmatprep.subr.mxu0 0.0
    %184 = vmatpush2.msra.mxu0 0.0
    %185 = vmatprep.subr.mxu0 0.0
    %186 = vmatpush2.msra.mxu0 0.0
    %187 = vmatprep.mubr.f32.mxu0 0.0
    %188 = vmatmul.mubr.f32.gmra.mxu0 %v50
    %v189 = vpop.f32.mrf.mxu0
    %v190 = vadd.f32 0.0, %v189
    %v191 = vpop.f32.mrf.mxu0
    %192 = vdwg.mxu0
    %194 = vset.pattern.permute.xlu0 0
    %195 = vperm.xlu0 %194, %v190
    %v196 = vpop.permute.xlu0 %195
    %v198 = vmul.f32 %v119, %v196
    %v199 = vlaneseq
    %v200 = vshrl.u32 %v199, 7
    %vm201 = vcmp.eq.s32.totalorder %v200, %v40
    %v202 = vld [vmem:[%s1] sm:$0xff]
    %v203 = vsel %vm201, 1.0, %v202
    %v204 = vpack.c.bf16 %v46, %v46
    %v205 = vpack.c.bf16 %v203, %v203
    %v207 = vsel %vm48, %v204, 0
    %vm209 = vcmask 1043456
    %v211 = vsel %vm209, %v205, 0
    %213 = vmatprep.subr.bf16.mxu0 0
    %214 = vmatpush1.bf16.msra.mxu0 0
    %215 = vmatprep.subr.bf16.mxu0 0
    %216 = vmatpush1.bf16.msra.mxu0 0
    %217 = vmatprep.subr.bf16.mxu0 0
    %218 = vmatpush1.bf16.msra.mxu0 0
    %219 = vmatprep.subr.bf16.mxu0 0
    %220 = vmatpush1.bf16.msra.mxu0 0
    %221 = vmatprep.subr.bf16.mxu0 0
    %222 = vmatpush1.bf16.msra.mxu0 0
    %223 = vmatprep.subr.bf16.mxu0 0
    %224 = vmatpush1.bf16.msra.mxu0 0
    %225 = vmatprep.subr.bf16.mxu0 0
    %226 = vmatpush1.bf16.msra.mxu0 0
    %227 = vmatprep.subr.bf16.mxu0 0
    %228 = vmatpush1.bf16.msra.mxu0 %v211
    %229 = vmatprep.subr.bf16.mxu0 0
    %230 = vmatpush2.bf16.msra.mxu0 0
    %231 = vmatprep.subr.bf16.mxu0 0
    %232 = vmatpush2.bf16.msra.mxu0 0
    %233 = vmatprep.subr.bf16.mxu0 0
    %234 = vmatpush2.bf16.msra.mxu0 0
    %235 = vmatprep.subr.bf16.mxu0 0
    %236 = vmatpush2.bf16.msra.mxu0 0
    %237 = vmatprep.subr.bf16.mxu0 0
    %238 = vmatpush2.bf16.msra.mxu0 0
    %239 = vmatprep.subr.bf16.mxu0 0
    %240 = vmatpush2.bf16.msra.mxu0 0
    %241 = vmatprep.subr.bf16.mxu0 0
    %242 = vmatpush2.bf16.msra.mxu0 0
    %243 = vmatprep.subr.bf16.mxu0 0
    %244 = vmatpush2.bf16.msra.mxu0 0
    %245 = vmatprep.mubr.bf16.mxu0 0
    %246 = vmatmul.mubr.bf16.gmra.mxu0 %v207
    %v247 = vpop.f32.mrf.mxu0
    %v248 = vadd.f32 0.0, %v247
    %v249 = vpop.f32.mrf.mxu0
    %v250 = vpop.f32.mrf.mxu0
    %v251 = vpop.f32.mrf.mxu0
    %252 = vdwg.mxu0
    %v253 = vsel %vm48, %v205, 0
    %255 = vmatprep.subr.bf16.mxu0 0
    %256 = vmatpush1.bf16.xpose.msra.mxu0 0
    %257 = vmatprep.subr.bf16.mxu0 0
    %258 = vmatpush1.bf16.xpose.msra.mxu0 0
    %259 = vmatprep.subr.bf16.mxu0 0
    %260 = vmatpush1.bf16.xpose.msra.mxu0 0
    %261 = vmatprep.subr.bf16.mxu0 0
    %262 = vmatpush1.bf16.xpose.msra.mxu0 0
    %263 = vmatprep.subr.bf16.mxu0 0
    %264 = vmatpush1.bf16.xpose.msra.mxu0 0
    %265 = vmatprep.subr.bf16.mxu0 0
    %266 = vmatpush1.bf16.xpose.msra.mxu0 0
    %267 = vmatprep.subr.bf16.mxu0 0
    %268 = vmatpush1.bf16.xpose.msra.mxu0 0
    %269 = vmatprep.subr.bf16.mxu0 0
    %270 = vmatpush1.bf16.xpose.msra.mxu0 %v207
    %271 = vmatprep.subr.bf16.mxu0 0
    %272 = vmatpush2.bf16.xpose.msra.mxu0 0
    %273 = vmatprep.subr.bf16.mxu0 0
    %274 = vmatpush2.bf16.xpose.msra.mxu0 0
    %275 = vmatprep.subr.bf16.mxu0 0
    %276 = vmatpush2.bf16.xpose.msra.mxu0 0
    %277 = vmatprep.subr.bf16.mxu0 0
    %278 = vmatpush2.bf16.xpose.msra.mxu0 0
    %279 = vmatprep.subr.bf16.mxu0 0
    %280 = vmatpush2.bf16.xpose.msra.mxu0 0
    %281 = vmatprep.subr.bf16.mxu0 0
    %282 = vmatpush2.bf16.xpose.msra.mxu0 0
    %283 = vmatprep.subr.bf16.mxu0 0
    %284 = vmatpush2.bf16.xpose.msra.mxu0 0
    %285 = vmatprep.subr.bf16.mxu0 0
    %286 = vmatpush2.bf16.xpose.msra.mxu0 0
    %287 = vmatprep.mubr.bf16.mxu0 0
    %288 = vmatmul.mubr.bf16.gmra.mxu0 %v253
    %v289 = vpop.f32.mrf.mxu0
    %v290 = vadd.f32 0.0, %v289
    %v291 = vpop.f32.mrf.mxu0
    %v292 = vpop.f32.mrf.mxu0
    %v293 = vpop.f32.mrf.mxu0
    %294 = vdwg.mxu0
    %v295 = vpack.c.bf16 %v248, %v248
    %v296 = vpack.c.bf16 %v290, %v290
    %v298 = vsel %vm48, %v295, 0
    %v301 = vsel %vm209, %v296, 0
    %303 = vmatprep.subr.bf16.mxu0 0
    %304 = vmatpush1.bf16.msra.mxu0 0
    %305 = vmatprep.subr.bf16.mxu0 0
    %306 = vmatpush1.bf16.msra.mxu0 0
    %307 = vmatprep.subr.bf16.mxu0 0
    %308 = vmatpush1.bf16.msra.mxu0 0
    %309 = vmatprep.subr.bf16.mxu0 0
    %310 = vmatpush1.bf16.msra.mxu0 0
    %311 = vmatprep.subr.bf16.mxu0 0
    %312 = vmatpush1.bf16.msra.mxu0 0
    %313 = vmatprep.subr.bf16.mxu0 0
    %314 = vmatpush1.bf16.msra.mxu0 0
    %315 = vmatprep.subr.bf16.mxu0 0
    %316 = vmatpush1.bf16.msra.mxu0 0
    %317 = vmatprep.subr.bf16.mxu0 0
    %318 = vmatpush1.bf16.msra.mxu0 %v301
    %319 = vmatprep.subr.bf16.mxu0 0
    %320 = vmatpush2.bf16.msra.mxu0 0
    %321 = vmatprep.subr.bf16.mxu0 0
    %322 = vmatpush2.bf16.msra.mxu0 0
    %323 = vmatprep.subr.bf16.mxu0 0
    %324 = vmatpush2.bf16.msra.mxu0 0
    %325 = vmatprep.subr.bf16.mxu0 0
    %326 = vmatpush2.bf16.msra.mxu0 0
    %327 = vmatprep.subr.bf16.mxu0 0
    %328 = vmatpush2.bf16.msra.mxu0 0
    %329 = vmatprep.subr.bf16.mxu0 0
    %330 = vmatpush2.bf16.msra.mxu0 0
    %331 = vmatprep.subr.bf16.mxu0 0
    %332 = vmatpush2.bf16.msra.mxu0 0
    %333 = vmatprep.subr.bf16.mxu0 0
    %334 = vmatpush2.bf16.msra.mxu0 0
    %335 = vmatprep.mubr.bf16.mxu0 0
    %336 = vmatmul.mubr.bf16.gmra.mxu0 %v298
    %v337 = vpop.f32.mrf.mxu0
    %v338 = vadd.f32 0.0, %v337
    %v339 = vpop.f32.mrf.mxu0
    %v340 = vpop.f32.mrf.mxu0
    %v341 = vpop.f32.mrf.mxu0
    %342 = vdwg.mxu0
    %v343 = vsel %vm201, 0.0, %v338
    %vm344 = vcmask 27648
    %345 = vst.msk [vmem:[#allocation2] sm:$0xf] %vm344, %v343
    %v346 = vld [vmem:[%s4] sm:$0xff]
    %v347 = vld [vmem:[%s4 + $0x8] sm:$0xff]
    %v348 = vld [vmem:[%s4 + $0x10] sm:$0xff]
    %v349 = vld [vmem:[%s4 + $0x18] sm:$0xff]
    %v350 = vld [vmem:[%s4 + $0x20] sm:$0xff]
    %v351 = vld [vmem:[%s4 + $0x28] sm:$0xff]
    %v352 = vld [vmem:[%s4 + $0x30] sm:$0xff]
    %v353 = vld [vmem:[%s4 + $0x38] sm:$0xff]
    %v354 = vld [vmem:[%s4 + $0x40] sm:$0xff]
    %v355 = vld [vmem:[%s4 + $0x48] sm:$0xff]
    %v356 = vld [vmem:[%s4 + $0x50] sm:$0xff]
    %v357 = vld [vmem:[%s4 + $0x58] sm:$0xff]
    %v358 = vld [vmem:[%s4 + $0x60] sm:$0xff]
    %v359 = vld [vmem:[%s4 + $0x68] sm:$0xff]
    %v360 = vld [vmem:[%s4 + $0x70] sm:$0xff]
    %v361 = vld [vmem:[%s4 + $0x78] sm:$0xff]
    %v362 = vld [vmem:[%s5] sm:$0x1]
    %v363 = vld [vmem:[%s6] sm:$0xff]
    %v364 = vld [vmem:[%s6 + $0x8] sm:$0xff]
    %v365 = vld [vmem:[%s6 + $0x10] sm:$0xff]
    %v366 = vld [vmem:[%s6 + $0x18] sm:$0xff]
    %v367 = vld [vmem:[%s6 + $0x20] sm:$0xff]
    %v368 = vld [vmem:[%s6 + $0x28] sm:$0xff]
    %v369 = vld [vmem:[%s6 + $0x30] sm:$0xff]
    %v370 = vld [vmem:[%s6 + $0x38] sm:$0xff]
    %v371 = vld [vmem:[%s6 + $0x40] sm:$0xff]
    %v372 = vld [vmem:[%s6 + $0x48] sm:$0xff]
    %v373 = vld [vmem:[%s6 + $0x50] sm:$0xff]
    %v374 = vld [vmem:[%s6 + $0x58] sm:$0xff]
    %v375 = vld [vmem:[%s6 + $0x60] sm:$0xff]
    %v376 = vld [vmem:[%s6 + $0x68] sm:$0xff]
    %v377 = vld [vmem:[%s6 + $0x70] sm:$0xff]
    %v378 = vld [vmem:[%s6 + $0x78] sm:$0xff]
    %v379 = vld [vmem:[%s7] sm:$0x1]
    %vm380 = vcmp.eq.f32.partialorder %v343, 0.0
    %vm381 = vmand %vm201, %vm380
    %v382 = vsel %vm381, 1.0, %v343
    %383 = vxpose.xlu0.b32.start [1/16] %v382, 128
    %384 = vxpose.xlu0.b32.cont [2/16] 0.0, 128
    %385 = vxpose.xlu0.b32.cont [3/16] 0.0, 128
    %386 = vxpose.xlu0.b32.cont [4/16] 0.0, 128
    %387 = vxpose.xlu0.b32.cont [5/16] 0.0, 128
    %388 = vxpose.xlu0.b32.cont [6/16] 0.0, 128
    %389 = vxpose.xlu0.b32.cont [7/16] 0.0, 128
    %390 = vxpose.xlu0.b32.cont [8/16] 0.0, 128
    %391 = vxpose.xlu0.b32.cont [9/16] 0.0, 128
    %392 = vxpose.xlu0.b32.cont [10/16] 0.0, 128
    %393 = vxpose.xlu0.b32.cont [11/16] 0.0, 128
    %394 = vxpose.xlu0.b32.cont [12/16] 0.0, 128
    %395 = vxpose.xlu0.b32.cont [13/16] 0.0, 128
    %396 = vxpose.xlu0.b32.cont [14/16] 0.0, 128
    %397 = vxpose.xlu0.b32.cont [15/16] 0.0, 128
    %398 = vxpose.xlu0.b32.end [16/16] 0.0, 128
    %v399 = vpop.trf.xlu0
    %v400 = vpop.trf.xlu0
    %v401 = vpop.trf.xlu0
    %v402 = vpop.trf.xlu0
    %v403 = vpop.trf.xlu0
    %v404 = vpop.trf.xlu0
    %v405 = vpop.trf.xlu0
    %v406 = vpop.trf.xlu0
    %v407 = vpop.trf.xlu0
    %v408 = vpop.trf.xlu0
    %v409 = vpop.trf.xlu0
    %v410 = vpop.trf.xlu0
    %v411 = vpop.trf.xlu0
    %v412 = vpop.trf.xlu0
    %v413 = vpop.trf.xlu0
    %v414 = vpop.trf.xlu0
    %vm415 = vcmask 31744
    %v417 = vsel %vm415, %v399, 0
    %v420 = vsel %vm209, 1.0, 0
    %422 = vmatprep.subr.mxu0 0.0
    %423 = vmatpush1.msra.mxu0 0.0
    %424 = vmatprep.subr.mxu0 0.0
    %425 = vmatpush1.msra.mxu0 0.0
    %426 = vmatprep.subr.mxu0 0.0
    %427 = vmatpush1.msra.mxu0 0.0
    %428 = vmatprep.subr.mxu0 0.0
    %429 = vmatpush1.msra.mxu0 0.0
    %430 = vmatprep.subr.mxu0 0.0
    %431 = vmatpush1.msra.mxu0 0.0
    %432 = vmatprep.subr.mxu0 0.0
    %433 = vmatpush1.msra.mxu0 0.0
    %434 = vmatprep.subr.mxu0 0.0
    %435 = vmatpush1.msra.mxu0 0.0
    %436 = vmatprep.subr.mxu0 0.0
    %437 = vmatpush1.msra.mxu0 0.0
    %438 = vmatprep.subr.mxu0 0.0
    %439 = vmatpush1.msra.mxu0 0.0
    %440 = vmatprep.subr.mxu0 0.0
    %441 = vmatpush1.msra.mxu0 0.0
    %442 = vmatprep.subr.mxu0 0.0
    %443 = vmatpush1.msra.mxu0 0.0
    %444 = vmatprep.subr.mxu0 0.0
    %445 = vmatpush1.msra.mxu0 0.0
    %446 = vmatprep.subr.mxu0 0.0
    %447 = vmatpush1.msra.mxu0 0.0
    %448 = vmatprep.subr.mxu0 0.0
    %449 = vmatpush1.msra.mxu0 0.0
    %450 = vmatprep.subr.mxu0 0.0
    %451 = vmatpush1.msra.mxu0 0.0
    %452 = vmatprep.subr.mxu0 0.0
    %453 = vmatpush1.msra.mxu0 %v420
    %454 = vmatprep.subr.mxu0 0.0
    %455 = vmatpush2.msra.mxu0 0.0
    %456 = vmatprep.subr.mxu0 0.0
    %457 = vmatpush2.msra.mxu0 0.0
    %458 = vmatprep.subr.mxu0 0.0
    %459 = vmatpush2.msra.mxu0 0.0
    %460 = vmatprep.subr.mxu0 0.0
    %461 = vmatpush2.msra.mxu0 0.0
    %462 = vmatprep.subr.mxu0 0.0
    %463 = vmatpush2.msra.mxu0 0.0
    %464 = vmatprep.subr.mxu0 0.0
    %465 = vmatpush2.msra.mxu0 0.0
    %466 = vmatprep.subr.mxu0 0.0
    %467 = vmatpush2.msra.mxu0 0.0
    %468 = vmatprep.subr.mxu0 0.0
    %469 = vmatpush2.msra.mxu0 0.0
    %470 = vmatprep.subr.mxu0 0.0
    %471 = vmatpush2.msra.mxu0 0.0
    %472 = vmatprep.subr.mxu0 0.0
    %473 = vmatpush2.msra.mxu0 0.0
    %474 = vmatprep.subr.mxu0 0.0
    %475 = vmatpush2.msra.mxu0 0.0
    %476 = vmatprep.subr.mxu0 0.0
    %477 = vmatpush2.msra.mxu0 0.0
    %478 = vmatprep.subr.mxu0 0.0
    %479 = vmatpush2.msra.mxu0 0.0
    %480 = vmatprep.subr.mxu0 0.0
    %481 = vmatpush2.msra.mxu0 0.0
    %482 = vmatprep.subr.mxu0 0.0
    %483 = vmatpush2.msra.mxu0 0.0
    %484 = vmatprep.subr.mxu0 0.0
    %485 = vmatpush2.msra.mxu0 0.0
    %486 = vmatprep.mubr.f32.mxu0 0.0
    %487 = vmatmul.mubr.f32.gmra.mxu0 %v417
    %v488 = vpop.f32.mrf.mxu0
    %v489 = vadd.f32 0.0, %v488
    %v490 = vpop.f32.mrf.mxu0
    %491 = vdwg.mxu0
    %vm492 = vcmp.gt.f32.partialorder %v489, 0.0
    %v493 = vrsqrt.pop %v489
    %v494 = vsel %vm492, %v493, 0.0
    %v495 = vpack.c.bf16 %v198, %v198
    %v496 = vpack.c.bf16 %v347, %v346
    %v497 = vpack.c.bf16 %v349, %v348
    %v498 = vpack.c.bf16 %v351, %v350
    %v499 = vpack.c.bf16 %v353, %v352
    %v500 = vpack.c.bf16 %v355, %v354
    %v501 = vpack.c.bf16 %v357, %v356
    %v502 = vpack.c.bf16 %v359, %v358
    %v503 = vpack.c.bf16 %v361, %v360
    %504 = vmatprep.subr.bf16.mxu0 0
    %505 = vmatpush1.bf16.msra.mxu0 %v503
    %506 = vmatprep.subr.bf16.mxu0 0
    %507 = vmatpush1.bf16.msra.mxu0 %v502
    %508 = vmatprep.subr.bf16.mxu0 0
    %509 = vmatpush1.bf16.msra.mxu0 %v501
    %510 = vmatprep.subr.bf16.mxu0 0
    %511 = vmatpush1.bf16.msra.mxu0 %v500
    %512 = vmatprep.subr.bf16.mxu0 0
    %513 = vmatpush1.bf16.msra.mxu0 %v499
    %514 = vmatprep.subr.bf16.mxu0 0
    %515 = vmatpush1.bf16.msra.mxu0 %v498
    %516 = vmatprep.subr.bf16.mxu0 0
    %517 = vmatpush1.bf16.msra.mxu0 %v497
    %518 = vmatprep.subr.bf16.mxu0 0
    %519 = vmatpush1.bf16.msra.mxu0 %v496
    %520 = vmatprep.subr.bf16.mxu0 0
    %521 = vmatpush2.bf16.msra.mxu0 0
    %522 = vmatprep.subr.bf16.mxu0 0
    %523 = vmatpush2.bf16.msra.mxu0 0
    %524 = vmatprep.subr.bf16.mxu0 0
    %525 = vmatpush2.bf16.msra.mxu0 0
    %526 = vmatprep.subr.bf16.mxu0 0
    %527 = vmatpush2.bf16.msra.mxu0 0
    %528 = vmatprep.subr.bf16.mxu0 0
    %529 = vmatpush2.bf16.msra.mxu0 0
    %530 = vmatprep.subr.bf16.mxu0 0
    %531 = vmatpush2.bf16.msra.mxu0 0
    %532 = vmatprep.subr.bf16.mxu0 0
    %533 = vmatpush2.bf16.msra.mxu0 0
    %534 = vmatprep.subr.bf16.mxu0 0
    %535 = vmatpush2.bf16.msra.mxu0 0
    %536 = vmatprep.mubr.bf16.mxu0 0
    %537 = vmatmul.mubr.bf16.gmra.mxu0 %v495
    %v538 = vpop.f32.mrf.mxu0
    %v539 = vadd.f32 0.0, %v538
    %v540 = vpop.f32.mrf.mxu0
    %v541 = vpop.f32.mrf.mxu0
    %v542 = vpop.f32.mrf.mxu0
    %543 = vdwg.mxu0
    %545 = vset.pattern.permute.xlu0 0
    %546 = vperm.xlu0 %545, %v494
    %v547 = vpop.permute.xlu0 %546
    %v549 = vmul.f32 %v539, %v547
    %v550 = vpack.c.bf16 %v382, %v382
    %v551 = vpack.c.bf16 %v549, %v549
    %552 = vxpose.xlu0.c.b16.start [1/8] %v550, 128
    %553 = vxpose.xlu0.c.b16.cont [2/8] 0, 128
    %554 = vxpose.xlu0.c.b16.cont [3/8] 0, 128
    %555 = vxpose.xlu0.c.b16.cont [4/8] 0, 128
    %556 = vxpose.xlu0.c.b16.cont [5/8] 0, 128
    %557 = vxpose.xlu0.c.b16.cont [6/8] 0, 128
    %558 = vxpose.xlu0.c.b16.cont [7/8] 0, 128
    %559 = vxpose.xlu0.c.b16.end [8/8] 0, 128
    %v560 = vpop.trf.xlu0
    %v561 = vpop.trf.xlu0
    %v562 = vpop.trf.xlu0
    %v563 = vpop.trf.xlu0
    %v564 = vpop.trf.xlu0
    %v565 = vpop.trf.xlu0
    %v566 = vpop.trf.xlu0
    %v567 = vpop.trf.xlu0
    %v569 = vsel %vm415, %v560, 0
    %vm571 = vcmask 1041408
    %v573 = vsel %vm571, %v551, 0
    %575 = vmatprep.subr.bf16.mxu0 0
    %576 = vmatpush1.bf16.msra.mxu0 0
    %577 = vmatprep.subr.bf16.mxu0 0
    %578 = vmatpush1.bf16.msra.mxu0 0
    %579 = vmatprep.subr.bf16.mxu0 0
    %580 = vmatpush1.bf16.msra.mxu0 0
    %581 = vmatprep.subr.bf16.mxu0 0
    %582 = vmatpush1.bf16.msra.mxu0 0
    %583 = vmatprep.subr.bf16.mxu0 0
    %584 = vmatpush1.bf16.msra.mxu0 0
    %585 = vmatprep.subr.bf16.mxu0 0
    %586 = vmatpush1.bf16.msra.mxu0 0
    %587 = vmatprep.subr.bf16.mxu0 0
    %588 = vmatpush1.bf16.msra.mxu0 0
    %589 = vmatprep.subr.bf16.mxu0 0
    %590 = vmatpush1.bf16.msra.mxu0 %v573
    %591 = vmatprep.subr.bf16.mxu0 0
    %592 = vmatpush2.bf16.msra.mxu0 0
    %593 = vmatprep.subr.bf16.mxu0 0
    %594 = vmatpush2.bf16.msra.mxu0 0
    %595 = vmatprep.subr.bf16.mxu0 0
    %596 = vmatpush2.bf16.msra.mxu0 0
    %597 = vmatprep.subr.bf16.mxu0 0
    %598 = vmatpush2.bf16.msra.mxu0 0
    %599 = vmatprep.subr.bf16.mxu0 0
    %600 = vmatpush2.bf16.msra.mxu0 0
    %601 = vmatprep.subr.bf16.mxu0 0
    %602 = vmatpush2.bf16.msra.mxu0 0
    %603 = vmatprep.subr.bf16.mxu0 0
    %604 = vmatpush2.bf16.msra.mxu0 0
    %605 = vmatprep.subr.bf16.mxu0 0
    %606 = vmatpush2.bf16.msra.mxu0 0
    %607 = vmatprep.mubr.bf16.mxu0 0
    %608 = vmatmul.mubr.bf16.gmra.mxu0 %v569
    %v609 = vpop.f32.mrf.mxu0
    %v610 = vadd.f32 0.0, %v609
    %v611 = vpop.f32.mrf.mxu0
    %v612 = vpop.f32.mrf.mxu0
    %v613 = vpop.f32.mrf.mxu0
    %614 = vdwg.mxu0
    %v615 = vmul.f32 %v610, %v547
    %v617 = vlaneseq
    %v618 = vshrl.u32 %v617, 7
    %v619 = vsub.s32 0, %v618
    %v620 = vrot.slane %v362, %v619
    %v622 = vadd.f32 %v615, %v620
    %v623 = vmax.f32 %v622, 0.0
    %v624 = vpack.c.bf16 %v623, %v623
    %v625 = vpack.c.bf16 %v364, %v363
    %v626 = vpack.c.bf16 %v366, %v365
    %v627 = vpack.c.bf16 %v368, %v367
    %v628 = vpack.c.bf16 %v370, %v369
    %v629 = vpack.c.bf16 %v372, %v371
    %v630 = vpack.c.bf16 %v374, %v373
    %v631 = vpack.c.bf16 %v376, %v375
    %v632 = vpack.c.bf16 %v378, %v377
    %633 = vmatprep.subr.bf16.mxu0 0
    %634 = vmatpush1.bf16.msra.mxu0 %v632
    %635 = vmatprep.subr.bf16.mxu0 0
    %636 = vmatpush1.bf16.msra.mxu0 %v631
    %637 = vmatprep.subr.bf16.mxu0 0
    %638 = vmatpush1.bf16.msra.mxu0 %v630
    %639 = vmatprep.subr.bf16.mxu0 0
    %640 = vmatpush1.bf16.msra.mxu0 %v629
    %641 = vmatprep.subr.bf16.mxu0 0
    %642 = vmatpush1.bf16.msra.mxu0 %v628
    %643 = vmatprep.subr.bf16.mxu0 0
    %644 = vmatpush1.bf16.msra.mxu0 %v627
    %645 = vmatprep.subr.bf16.mxu0 0
    %646 = vmatpush1.bf16.msra.mxu0 %v626
    %647 = vmatprep.subr.bf16.mxu0 0
    %648 = vmatpush1.bf16.msra.mxu0 %v625
    %649 = vmatprep.subr.bf16.mxu0 0
    %650 = vmatpush2.bf16.msra.mxu0 0
    %651 = vmatprep.subr.bf16.mxu0 0
    %652 = vmatpush2.bf16.msra.mxu0 0
    %653 = vmatprep.subr.bf16.mxu0 0
    %654 = vmatpush2.bf16.msra.mxu0 0
    %655 = vmatprep.subr.bf16.mxu0 0
    %656 = vmatpush2.bf16.msra.mxu0 0
    %657 = vmatprep.subr.bf16.mxu0 0
    %658 = vmatpush2.bf16.msra.mxu0 0
    %659 = vmatprep.subr.bf16.mxu0 0
    %660 = vmatpush2.bf16.msra.mxu0 0
    %661 = vmatprep.subr.bf16.mxu0 0
    %662 = vmatpush2.bf16.msra.mxu0 0
    %663 = vmatprep.subr.bf16.mxu0 0
    %664 = vmatpush2.bf16.msra.mxu0 0
    %665 = vmatprep.mubr.bf16.mxu0 0
    %666 = vmatmul.mubr.bf16.gmra.mxu0 %v624
    %v667 = vpop.f32.mrf.mxu0
    %v668 = vadd.f32 0.0, %v667
    %v669 = vpop.f32.mrf.mxu0
    %v670 = vpop.f32.mrf.mxu0
    %v671 = vpop.f32.mrf.mxu0
    %672 = vdwg.mxu0
    %v673 = vmul.f32 %v668, %v547
    %v674 = vpack.c.bf16 %v673, %v673
    %v676 = vsel %vm571, %v674, 0
    %678 = vmatprep.subr.bf16.mxu0 0
    %679 = vmatpush1.bf16.msra.mxu0 0
    %680 = vmatprep.subr.bf16.mxu0 0
    %681 = vmatpush1.bf16.msra.mxu0 0
    %682 = vmatprep.subr.bf16.mxu0 0
    %683 = vmatpush1.bf16.msra.mxu0 0
    %684 = vmatprep.subr.bf16.mxu0 0
    %685 = vmatpush1.bf16.msra.mxu0 0
    %686 = vmatprep.subr.bf16.mxu0 0
    %687 = vmatpush1.bf16.msra.mxu0 0
    %688 = vmatprep.subr.bf16.mxu0 0
    %689 = vmatpush1.bf16.msra.mxu0 0
    %690 = vmatprep.subr.bf16.mxu0 0
    %691 = vmatpush1.bf16.msra.mxu0 0
    %692 = vmatprep.subr.bf16.mxu0 0
    %693 = vmatpush1.bf16.msra.mxu0 %v676
    %694 = vmatprep.subr.bf16.mxu0 0
    %695 = vmatpush2.bf16.msra.mxu0 0
    %696 = vmatprep.subr.bf16.mxu0 0
    %697 = vmatpush2.bf16.msra.mxu0 0
    %698 = vmatprep.subr.bf16.mxu0 0
    %699 = vmatpush2.bf16.msra.mxu0 0
    %700 = vmatprep.subr.bf16.mxu0 0
    %701 = vmatpush2.bf16.msra.mxu0 0
    %702 = vmatprep.subr.bf16.mxu0 0
    %703 = vmatpush2.bf16.msra.mxu0 0
    %704 = vmatprep.subr.bf16.mxu0 0
    %705 = vmatpush2.bf16.msra.mxu0 0
    %706 = vmatprep.subr.bf16.mxu0 0
    %707 = vmatpush2.bf16.msra.mxu0 0
    %708 = vmatprep.subr.bf16.mxu0 0
    %709 = vmatpush2.bf16.msra.mxu0 0
    %710 = vmatprep.mubr.bf16.mxu0 0
    %711 = vmatmul.mubr.bf16.gmra.mxu0 %v569
    %v712 = vpop.f32.mrf.mxu0
    %v713 = vadd.f32 0.0, %v712
    %v714 = vpop.f32.mrf.mxu0
    %v715 = vpop.f32.mrf.mxu0
    %v716 = vpop.f32.mrf.mxu0
    %717 = vdwg.mxu0
    %v718 = vmul.f32 %v713, %v547
    %v720 = vlaneseq
    %v721 = vshrl.u32 %v720, 7
    %v722 = vsub.s32 0, %v721
    %v723 = vrot.slane %v379, %v722
    %v725 = vadd.f32 %v718, %v723
    %v726 = vmax.f32 %v725, 0.0
    %727 = vst [vmem:[%s9] sm:$0xf] %v726
    %v728 = vld [vmem:[%s8] sm:$0x1]
    %v729 = vmul.f32 %v728, %v728
    %vm730 = vcmask 1040384
    %v731 = vsel %vm730, %v729, 0.0
    %732 = vadd.xlane.f32.xlu0 %v731
    %v733 = vpop.xlane.xlu0 %732
    %v734 = vrsqrt.pop %v733
    %v736 = vlaneseq
    %v737 = vshrl.u32 %v736, 7
    %v738 = vsub.s32 0, %v737
    %v739 = vrot.slane %v728, %v738
    %v741 = vmul.f32 %v726, %v739
    %v742 = vsel %vm209, %v741, 0.0
    %743 = vadd.xlane.f32.xlu0 %v742
    %v744 = vpop.xlane.xlu0 %743
    %v745 = vlaneseq
    %v746 = vshrl.u32 %v745, 7
    %v747 = vsub.s32 0, %v746
    %v748 = vrot.slane %v734, %v747
    %v749 = vmul.f32 %v744, %v748
    %v750 = vtanh.pop %v749
    %vm751 = vcmask 3072
    %752 = vst.msk [vmem:[#allocation4] sm:$0xf] %vm751, %v750
    // Predicated region
    $region38: #{graph_unet_v2_forward.7} parent=1 // pred_check
      _
    $region39: #{graph_unet_v2_forward.7} parent=1 // pred_check_branch
      %754 = sbr.rel (0) target = $region41
    $region40: #{graph_unet_v2_forward.7} parent=1 // pred_region
      _
    $region41: #{graph_unet_v2_forward.7} parent=1 // pred_fallthru
      _
    // Predicated region
    $region42: #{graph_unet_v2_forward.7} parent=1 // pred_check
      _
    $region43: #{graph_unet_v2_forward.7} parent=1 // pred_check_branch
      %756 = sbr.rel (0) target = $region45
    $region44: #{graph_unet_v2_forward.7} parent=1 // pred_region
      %s758 = ssub.s32 64, 64
      %759 = vsyncadd [#allocation3], %s758
      %s761 = sshll.u32 [#allocation2], 4
      %s762 = int_to_ptr.vmem [resolvable:$true] %s761
      %764 = dma.vmem_to_hbm [thread:$0]  %s762, 64, %s10, [#allocation3]
    $region45: #{graph_unet_v2_forward.7} parent=1 // pred_fallthru
      _
    // Predicated region
    $region46: #{graph_unet_v2_forward.7} parent=1 // pred_check
      _
    $region47: #{graph_unet_v2_forward.7} parent=1 // pred_check_branch
      %766 = sbr.rel (0) target = $region49
    $region48: #{graph_unet_v2_forward.7} parent=1 // pred_region
      %s768 = ssub.s32 64, 64
      %769 = vsyncadd [#allocation5], %s768
      %s771 = sshll.u32 [#allocation4], 4
      %s772 = int_to_ptr.vmem [resolvable:$true] %s771
      %774 = dma.vmem_to_hbm [thread:$0]  %s772, 64, %s11, [#allocation5]
    $region49: #{graph_unet_v2_forward.7} parent=1 // pred_fallthru
      _
    // Predicated region
    $region50: #{graph_unet_v2_forward.7} parent=1 // pred_check
      _
    $region51: #{graph_unet_v2_forward.7} parent=1 // pred_check_branch
      %776 = sbr.rel (0) target = $region53
    $region52: #{graph_unet_v2_forward.7} parent=1 // pred_region
      _
    $region53: #{graph_unet_v2_forward.7} parent=1 // pred_fallthru
      _
    // Predicated region
    $region54: #{graph_unet_v2_forward.7} parent=1 // pred_check
      _
    $region55: #{graph_unet_v2_forward.7} parent=1 // pred_check_branch
      %778 = sbr.rel (0) target = $region57
    $region56: #{graph_unet_v2_forward.7} parent=1 // pred_region
      %779 = dma.done [#allocation3], 64
    $region57: #{graph_unet_v2_forward.7} parent=1 // pred_fallthru
      _
    // Predicated region
    $region58: #{graph_unet_v2_forward.7} parent=1 // pred_check
      _
    $region59: #{graph_unet_v2_forward.7} parent=1 // pred_check_branch
      %781 = sbr.rel (0) target = $region61
    $region60: #{graph_unet_v2_forward.7} parent=1 // pred_region
      %782 = dma.done [#allocation5], 64
    $region61: #{graph_unet_v2_forward.7} parent=1 // pred_fallthru
      _
    %783 = vsyncpa [#allocation3], 1
    %784 = vsyncpa [#allocation5], 1

// kernel: graph_unet_v2_forward.8
$region0: #{graph_unet_v2_forward.8}
  #allocation0 [shape = 'u32[]', space=smem, size = 0x4, offset = 0x4, fixed_abs, tag = 'smem constant byte address 0x4 - core index']
  #allocation1 [shape = 'u32[144,128]{1,0:T(1,128)}', space=vmem, size = 0x12000, scoped, tag = 'internal scratch']
  %s0 = inlined_call_operand.vmem [shape: s32[4,1], index: 0, kind: input, shape index: {}]
  %s1 = inlined_call_operand.vmem [shape: f32[8,8], index: 1, kind: input, shape index: {}]
  %s2 = inlined_call_operand.vmem [shape: f32[8,128], index: 2, kind: input, shape index: {}]
  %s3 = inlined_call_operand.vmem [shape: f32[4,128], index: 3, kind: input, shape index: {}]
  %s4 = inlined_call_operand.vmem [shape: f32[128,128], index: 4, kind: input, shape index: {}]
  %s5 = inlined_call_operand.vmem [shape: f32[1,128], index: 5, kind: input, shape index: {}]
  %s6 = inlined_call_operand.vmem [shape: f32[128,128], index: 6, kind: input, shape index: {}]
  %s7 = inlined_call_operand.vmem [shape: f32[1,128], index: 7, kind: input, shape index: {}]
  %s8 = inlined_call_operand.vmem [shape: f32[8,128], index: 8, kind: output, shape index: {}]
  %s9 = sld [smem:[#allocation0]]
  $region42: #{graph_unet_v2_forward.8} parent=0
    _
  %s11 = ssub.s32 1, %s9
  %s12 = scalar_select 0, %s11, %s9
  // Predicated region
  $region2: #{graph_unet_v2_forward.8} parent=0 // pred_check
    _
  $region3: #{graph_unet_v2_forward.8} parent=0 // pred_check_branch
    %14 = sbr.rel (0) target = $region5
  $region4: #{graph_unet_v2_forward.8} parent=0 // pred_region
    _
  $region5: #{graph_unet_v2_forward.8} parent=0 // pred_fallthru
    _
  // Predicated region
  $region6: #{graph_unet_v2_forward.8} parent=0 // pred_check
    _
  $region7: #{graph_unet_v2_forward.8} parent=0 // pred_check_branch
    %16 = sbr.rel (0) target = $region9
  $region8: #{graph_unet_v2_forward.8} parent=0 // pred_region
    _
  $region9: #{graph_unet_v2_forward.8} parent=0 // pred_fallthru
    _
  // Predicated region
  $region10: #{graph_unet_v2_forward.8} parent=0 // pred_check
    _
  $region11: #{graph_unet_v2_forward.8} parent=0 // pred_check_branch
    %18 = sbr.rel (0) target = $region13
  $region12: #{graph_unet_v2_forward.8} parent=0 // pred_region
    _
  $region13: #{graph_unet_v2_forward.8} parent=0 // pred_fallthru
    _
  // Predicated region
  $region14: #{graph_unet_v2_forward.8} parent=0 // pred_check
    _
  $region15: #{graph_unet_v2_forward.8} parent=0 // pred_check_branch
    %20 = sbr.rel (0) target = $region17
  $region16: #{graph_unet_v2_forward.8} parent=0 // pred_region
    _
  $region17: #{graph_unet_v2_forward.8} parent=0 // pred_fallthru
    _
  // Predicated region
  $region18: #{graph_unet_v2_forward.8} parent=0 // pred_check
    _
  $region19: #{graph_unet_v2_forward.8} parent=0 // pred_check_branch
    %22 = sbr.rel (0) target = $region21
  $region20: #{graph_unet_v2_forward.8} parent=0 // pred_region
    _
  $region21: #{graph_unet_v2_forward.8} parent=0 // pred_fallthru
    _
  // Predicated region
  $region22: #{graph_unet_v2_forward.8} parent=0 // pred_check
    _
  $region23: #{graph_unet_v2_forward.8} parent=0 // pred_check_branch
    %24 = sbr.rel (0) target = $region25
  $region24: #{graph_unet_v2_forward.8} parent=0 // pred_region
    _
  $region25: #{graph_unet_v2_forward.8} parent=0 // pred_fallthru
    _
  // Predicated region
  $region26: #{graph_unet_v2_forward.8} parent=0 // pred_check
    _
  $region27: #{graph_unet_v2_forward.8} parent=0 // pred_check_branch
    %26 = sbr.rel (0) target = $region29
  $region28: #{graph_unet_v2_forward.8} parent=0 // pred_region
    _
  $region29: #{graph_unet_v2_forward.8} parent=0 // pred_fallthru
    _
  // Predicated region
  $region30: #{graph_unet_v2_forward.8} parent=0 // pred_check
    _
  $region31: #{graph_unet_v2_forward.8} parent=0 // pred_check_branch
    %28 = sbr.rel (0) target = $region33
  $region32: #{graph_unet_v2_forward.8} parent=0 // pred_region
    _
  $region33: #{graph_unet_v2_forward.8} parent=0 // pred_fallthru
    _
  %v30 = vld [vmem:[%s0] sm:$0xf]
  %v31 = vlaneseq
  %v32 = vand.u32 %v31, 127
  %33 = vset.pattern.permute.xlu0 0
  %34 = vperm.xlu0 %33, %v30
  %v35 = vpop.permute.xlu0 %34
  %vm36 = vcmp.eq.s32.totalorder %v32, %v35
  %v37 = vsel %vm36, 1, 0
  %v38 = vcvt.s32.f32 %v37
  %v39 = vld [vmem:[%s3] sm:$0xf]
  %40 = vxpose.xlu0.b32.start [1/16] %v38, 128
  %41 = vxpose.xlu0.b32.cont [2/16] 0.0, 128
  %42 = vxpose.xlu0.b32.cont [3/16] 0.0, 128
  %43 = vxpose.xlu0.b32.cont [4/16] 0.0, 128
  %44 = vxpose.xlu0.b32.cont [5/16] 0.0, 128
  %45 = vxpose.xlu0.b32.cont [6/16] 0.0, 128
  %46 = vxpose.xlu0.b32.cont [7/16] 0.0, 128
  %47 = vxpose.xlu0.b32.cont [8/16] 0.0, 128
  %48 = vxpose.xlu0.b32.cont [9/16] 0.0, 128
  %49 = vxpose.xlu0.b32.cont [10/16] 0.0, 128
  %50 = vxpose.xlu0.b32.cont [11/16] 0.0, 128
  %51 = vxpose.xlu0.b32.cont [12/16] 0.0, 128
  %52 = vxpose.xlu0.b32.cont [13/16] 0.0, 128
  %53 = vxpose.xlu0.b32.cont [14/16] 0.0, 128
  %54 = vxpose.xlu0.b32.cont [15/16] 0.0, 128
  %55 = vxpose.xlu0.b32.end [16/16] 0.0, 128
  %v56 = vpop.trf.xlu0
  %v57 = vpop.trf.xlu0
  %v58 = vpop.trf.xlu0
  %v59 = vpop.trf.xlu0
  %v60 = vpop.trf.xlu0
  %v61 = vpop.trf.xlu0
  %v62 = vpop.trf.xlu0
  %v63 = vpop.trf.xlu0
  %v64 = vpop.trf.xlu0
  %v65 = vpop.trf.xlu0
  %v66 = vpop.trf.xlu0
  %v67 = vpop.trf.xlu0
  %v68 = vpop.trf.xlu0
  %v69 = vpop.trf.xlu0
  %v70 = vpop.trf.xlu0
  %v71 = vpop.trf.xlu0
  %vm72 = vcmask 31744
  %v74 = vsel %vm72, %v56, 0
  %vm76 = vcmask 1043456
  %v78 = vsel %vm76, %v39, 0
  %80 = vmatprep.subr.mxu0 0.0
  %81 = vmatpush1.msra.mxu0 0.0
  %82 = vmatprep.subr.mxu0 0.0
  %83 = vmatpush1.msra.mxu0 0.0
  %84 = vmatprep.subr.mxu0 0.0
  %85 = vmatpush1.msra.mxu0 0.0
  %86 = vmatprep.subr.mxu0 0.0
  %87 = vmatpush1.msra.mxu0 0.0
  %88 = vmatprep.subr.mxu0 0.0
  %89 = vmatpush1.msra.mxu0 0.0
  %90 = vmatprep.subr.mxu0 0.0
  %91 = vmatpush1.msra.mxu0 0.0
  %92 = vmatprep.subr.mxu0 0.0
  %93 = vmatpush1.msra.mxu0 0.0
  %94 = vmatprep.subr.mxu0 0.0
  %95 = vmatpush1.msra.mxu0 0.0
  %96 = vmatprep.subr.mxu0 0.0
  %97 = vmatpush1.msra.mxu0 0.0
  %98 = vmatprep.subr.mxu0 0.0
  %99 = vmatpush1.msra.mxu0 0.0
  %100 = vmatprep.subr.mxu0 0.0
  %101 = vmatpush1.msra.mxu0 0.0
  %102 = vmatprep.subr.mxu0 0.0
  %103 = vmatpush1.msra.mxu0 0.0
  %104 = vmatprep.subr.mxu0 0.0
  %105 = vmatpush1.msra.mxu0 0.0
  %106 = vmatprep.subr.mxu0 0.0
  %107 = vmatpush1.msra.mxu0 0.0
  %108 = vmatprep.subr.mxu0 0.0
  %109 = vmatpush1.msra.mxu0 0.0
  %110 = vmatprep.subr.mxu0 0.0
  %111 = vmatpush1.msra.mxu0 %v78
  %112 = vmatprep.subr.mxu0 0.0
  %113 = vmatpush2.msra.mxu0 0.0
  %114 = vmatprep.subr.mxu0 0.0
  %115 = vmatpush2.msra.mxu0 0.0
  %116 = vmatprep.subr.mxu0 0.0
  %117 = vmatpush2.msra.mxu0 0.0
  %118 = vmatprep.subr.mxu0 0.0
  %119 = vmatpush2.msra.mxu0 0.0
  %120 = vmatprep.subr.mxu0 0.0
  %121 = vmatpush2.msra.mxu0 0.0
  %122 = vmatprep.subr.mxu0 0.0
  %123 = vmatpush2.msra.mxu0 0.0
  %124 = vmatprep.subr.mxu0 0.0
  %125 = vmatpush2.msra.mxu0 0.0
  %126 = vmatprep.subr.mxu0 0.0
  %127 = vmatpush2.msra.mxu0 0.0
  %128 = vmatprep.subr.mxu0 0.0
  %129 = vmatpush2.msra.mxu0 0.0
  %130 = vmatprep.subr.mxu0 0.0
  %131 = vmatpush2.msra.mxu0 0.0
  %132 = vmatprep.subr.mxu0 0.0
  %133 = vmatpush2.msra.mxu0 0.0
  %134 = vmatprep.subr.mxu0 0.0
  %135 = vmatpush2.msra.mxu0 0.0
  %136 = vmatprep.subr.mxu0 0.0
  %137 = vmatpush2.msra.mxu0 0.0
  %138 = vmatprep.subr.mxu0 0.0
  %139 = vmatpush2.msra.mxu0 0.0
  %140 = vmatprep.subr.mxu0 0.0
  %141 = vmatpush2.msra.mxu0 0.0
  %142 = vmatprep.subr.mxu0 0.0
  %143 = vmatpush2.msra.mxu0 0.0
  %144 = vmatprep.mubr.f32.mxu0 0.0
  %145 = vmatmul.mubr.f32.gmra.mxu0 %v74
  %v146 = vpop.f32.mrf.mxu0
  %v147 = vadd.f32 0.0, %v146
  %v148 = vpop.f32.mrf.mxu0
  %149 = vdwg.mxu0
  %v150 = vld [vmem:[%s2] sm:$0xff]
  %v151 = vadd.f32 %v150, %v147
  %v152 = vld [vmem:[%s1] sm:$0xff]
  %v153 = vlaneseq
  %v154 = vshrl.u32 %v153, 7
  %vm155 = vcmp.eq.s32.totalorder %v154, %v32
  %v156 = vld [vmem:[%s4] sm:$0xff]
  %v157 = vld [vmem:[%s4 + $0x8] sm:$0xff]
  %v158 = vld [vmem:[%s4 + $0x10] sm:$0xff]
  %v159 = vld [vmem:[%s4 + $0x18] sm:$0xff]
  %v160 = vld [vmem:[%s4 + $0x20] sm:$0xff]
  %v161 = vld [vmem:[%s4 + $0x28] sm:$0xff]
  %v162 = vld [vmem:[%s4 + $0x30] sm:$0xff]
  %v163 = vld [vmem:[%s4 + $0x38] sm:$0xff]
  %v164 = vld [vmem:[%s4 + $0x40] sm:$0xff]
  %v165 = vld [vmem:[%s4 + $0x48] sm:$0xff]
  %v166 = vld [vmem:[%s4 + $0x50] sm:$0xff]
  %v167 = vld [vmem:[%s4 + $0x58] sm:$0xff]
  %v168 = vld [vmem:[%s4 + $0x60] sm:$0xff]
  %v169 = vld [vmem:[%s4 + $0x68] sm:$0xff]
  %v170 = vld [vmem:[%s4 + $0x70] sm:$0xff]
  %v171 = vld [vmem:[%s4 + $0x78] sm:$0xff]
  %v172 = vld [vmem:[%s5] sm:$0x1]
  %v173 = vld [vmem:[%s6] sm:$0xff]
  %v174 = vld [vmem:[%s6 + $0x8] sm:$0xff]
  %v175 = vld [vmem:[%s6 + $0x10] sm:$0xff]
  %v176 = vld [vmem:[%s6 + $0x18] sm:$0xff]
  %v177 = vld [vmem:[%s6 + $0x20] sm:$0xff]
  %v178 = vld [vmem:[%s6 + $0x28] sm:$0xff]
  %v179 = vld [vmem:[%s6 + $0x30] sm:$0xff]
  %v180 = vld [vmem:[%s6 + $0x38] sm:$0xff]
  %v181 = vld [vmem:[%s6 + $0x40] sm:$0xff]
  %v182 = vld [vmem:[%s6 + $0x48] sm:$0xff]
  %v183 = vld [vmem:[%s6 + $0x50] sm:$0xff]
  %v184 = vld [vmem:[%s6 + $0x58] sm:$0xff]
  %v185 = vld [vmem:[%s6 + $0x60] sm:$0xff]
  %v186 = vld [vmem:[%s6 + $0x68] sm:$0xff]
  %v187 = vld [vmem:[%s6 + $0x70] sm:$0xff]
  %v188 = vld [vmem:[%s6 + $0x78] sm:$0xff]
  %v189 = vld [vmem:[%s7] sm:$0x1]
  %vm190 = vcmp.eq.f32.partialorder %v152, 0.0
  %vm191 = vmand %vm155, %vm190
  %v192 = vsel %vm191, 1.0, %v152
  %193 = vxpose.xlu0.b32.start [1/16] %v192, 128
  %194 = vxpose.xlu0.b32.cont [2/16] 0.0, 128
  %195 = vxpose.xlu0.b32.cont [3/16] 0.0, 128
  %196 = vxpose.xlu0.b32.cont [4/16] 0.0, 128
  %197 = vxpose.xlu0.b32.cont [5/16] 0.0, 128
  %198 = vxpose.xlu0.b32.cont [6/16] 0.0, 128
  %199 = vxpose.xlu0.b32.cont [7/16] 0.0, 128
  %200 = vxpose.xlu0.b32.cont [8/16] 0.0, 128
  %201 = vxpose.xlu0.b32.cont [9/16] 0.0, 128
  %202 = vxpose.xlu0.b32.cont [10/16] 0.0, 128
  %203 = vxpose.xlu0.b32.cont [11/16] 0.0, 128
  %204 = vxpose.xlu0.b32.cont [12/16] 0.0, 128
  %205 = vxpose.xlu0.b32.cont [13/16] 0.0, 128
  %206 = vxpose.xlu0.b32.cont [14/16] 0.0, 128
  %207 = vxpose.xlu0.b32.cont [15/16] 0.0, 128
  %208 = vxpose.xlu0.b32.end [16/16] 0.0, 128
  %v209 = vpop.trf.xlu0
  %v210 = vpop.trf.xlu0
  %v211 = vpop.trf.xlu0
  %v212 = vpop.trf.xlu0
  %v213 = vpop.trf.xlu0
  %v214 = vpop.trf.xlu0
  %v215 = vpop.trf.xlu0
  %v216 = vpop.trf.xlu0
  %v217 = vpop.trf.xlu0
  %v218 = vpop.trf.xlu0
  %v219 = vpop.trf.xlu0
  %v220 = vpop.trf.xlu0
  %v221 = vpop.trf.xlu0
  %v222 = vpop.trf.xlu0
  %v223 = vpop.trf.xlu0
  %v224 = vpop.trf.xlu0
  %vm225 = vcmask 64512
  %v227 = vsel %vm225, %v209, 0
  %229 = vmatprep.subr.mxu0 0.0
  %230 = vmatpush1.msra.mxu0 0.0
  %231 = vmatprep.subr.mxu0 0.0
  %232 = vmatpush1.msra.mxu0 0.0
  %233 = vmatprep.subr.mxu0 0.0
  %234 = vmatpush1.msra.mxu0 0.0
  %235 = vmatprep.subr.mxu0 0.0
  %236 = vmatpush1.msra.mxu0 0.0
  %237 = vmatprep.subr.mxu0 0.0
  %238 = vmatpush1.msra.mxu0 0.0
  %239 = vmatprep.subr.mxu0 0.0
  %240 = vmatpush1.msra.mxu0 0.0
  %241 = vmatprep.subr.mxu0 0.0
  %242 = vmatpush1.msra.mxu0 0.0
  %243 = vmatprep.subr.mxu0 0.0
  %244 = vmatpush1.msra.mxu0 0.0
  %245 = vmatprep.subr.mxu0 0.0
  %246 = vmatpush1.msra.mxu0 0.0
  %247 = vmatprep.subr.mxu0 0.0
  %248 = vmatpush1.msra.mxu0 0.0
  %249 = vmatprep.subr.mxu0 0.0
  %250 = vmatpush1.msra.mxu0 0.0
  %251 = vmatprep.subr.mxu0 0.0
  %252 = vmatpush1.msra.mxu0 0.0
  %253 = vmatprep.subr.mxu0 0.0
  %254 = vmatpush1.msra.mxu0 0.0
  %255 = vmatprep.subr.mxu0 0.0
  %256 = vmatpush1.msra.mxu0 0.0
  %257 = vmatprep.subr.mxu0 0.0
  %258 = vmatpush1.msra.mxu0 0.0
  %259 = vmatprep.subr.mxu0 0.0
  %260 = vmatpush1.msra.mxu0 1.0
  %261 = vmatprep.subr.mxu0 0.0
  %262 = vmatpush2.msra.mxu0 0.0
  %263 = vmatprep.subr.mxu0 0.0
  %264 = vmatpush2.msra.mxu0 0.0
  %265 = vmatprep.subr.mxu0 0.0
  %266 = vmatpush2.msra.mxu0 0.0
  %267 = vmatprep.subr.mxu0 0.0
  %268 = vmatpush2.msra.mxu0 0.0
  %269 = vmatprep.subr.mxu0 0.0
  %270 = vmatpush2.msra.mxu0 0.0
  %271 = vmatprep.subr.mxu0 0.0
  %272 = vmatpush2.msra.mxu0 0.0
  %273 = vmatprep.subr.mxu0 0.0
  %274 = vmatpush2.msra.mxu0 0.0
  %275 = vmatprep.subr.mxu0 0.0
  %276 = vmatpush2.msra.mxu0 0.0
  %277 = vmatprep.subr.mxu0 0.0
  %278 = vmatpush2.msra.mxu0 0.0
  %279 = vmatprep.subr.mxu0 0.0
  %280 = vmatpush2.msra.mxu0 0.0
  %281 = vmatprep.subr.mxu0 0.0
  %282 = vmatpush2.msra.mxu0 0.0
  %283 = vmatprep.subr.mxu0 0.0
  %284 = vmatpush2.msra.mxu0 0.0
  %285 = vmatprep.subr.mxu0 0.0
  %286 = vmatpush2.msra.mxu0 0.0
  %287 = vmatprep.subr.mxu0 0.0
  %288 = vmatpush2.msra.mxu0 0.0
  %289 = vmatprep.subr.mxu0 0.0
  %290 = vmatpush2.msra.mxu0 0.0
  %291 = vmatprep.subr.mxu0 0.0
  %292 = vmatpush2.msra.mxu0 0.0
  %293 = vmatprep.mubr.f32.mxu0 0.0
  %294 = vmatmul.mubr.f32.gmra.mxu0 %v227
  %v295 = vpop.f32.mrf.mxu0
  %v296 = vadd.f32 0.0, %v295
  %v297 = vpop.f32.mrf.mxu0
  %298 = vdwg.mxu0
  %vm299 = vcmp.gt.f32.partialorder %v296, 0.0
  %v300 = vrsqrt.pop %v296
  %v301 = vsel %vm299, %v300, 0.0
  %v302 = vpack.c.bf16 %v151, %v151
  %v303 = vpack.c.bf16 %v157, %v156
  %v304 = vpack.c.bf16 %v159, %v158
  %v305 = vpack.c.bf16 %v161, %v160
  %v306 = vpack.c.bf16 %v163, %v162
  %v307 = vpack.c.bf16 %v165, %v164
  %v308 = vpack.c.bf16 %v167, %v166
  %v309 = vpack.c.bf16 %v169, %v168
  %v310 = vpack.c.bf16 %v171, %v170
  %311 = vmatprep.subr.bf16.mxu0 0
  %312 = vmatpush1.bf16.msra.mxu0 %v310
  %313 = vmatprep.subr.bf16.mxu0 0
  %314 = vmatpush1.bf16.msra.mxu0 %v309
  %315 = vmatprep.subr.bf16.mxu0 0
  %316 = vmatpush1.bf16.msra.mxu0 %v308
  %317 = vmatprep.subr.bf16.mxu0 0
  %318 = vmatpush1.bf16.msra.mxu0 %v307
  %319 = vmatprep.subr.bf16.mxu0 0
  %320 = vmatpush1.bf16.msra.mxu0 %v306
  %321 = vmatprep.subr.bf16.mxu0 0
  %322 = vmatpush1.bf16.msra.mxu0 %v305
  %323 = vmatprep.subr.bf16.mxu0 0
  %324 = vmatpush1.bf16.msra.mxu0 %v304
  %325 = vmatprep.subr.bf16.mxu0 0
  %326 = vmatpush1.bf16.msra.mxu0 %v303
  %327 = vmatprep.subr.bf16.mxu0 0
  %328 = vmatpush2.bf16.msra.mxu0 0
  %329 = vmatprep.subr.bf16.mxu0 0
  %330 = vmatpush2.bf16.msra.mxu0 0
  %331 = vmatprep.subr.bf16.mxu0 0
  %332 = vmatpush2.bf16.msra.mxu0 0
  %333 = vmatprep.subr.bf16.mxu0 0
  %334 = vmatpush2.bf16.msra.mxu0 0
  %335 = vmatprep.subr.bf16.mxu0 0
  %336 = vmatpush2.bf16.msra.mxu0 0
  %337 = vmatprep.subr.bf16.mxu0 0
  %338 = vmatpush2.bf16.msra.mxu0 0
  %339 = vmatprep.subr.bf16.mxu0 0
  %340 = vmatpush2.bf16.msra.mxu0 0
  %341 = vmatprep.subr.bf16.mxu0 0
  %342 = vmatpush2.bf16.msra.mxu0 0
  %343 = vmatprep.mubr.bf16.mxu0 0
  %344 = vmatmul.mubr.bf16.gmra.mxu0 %v302
  %v345 = vpop.f32.mrf.mxu0
  %v346 = vadd.f32 0.0, %v345
  %v347 = vpop.f32.mrf.mxu0
  %v348 = vpop.f32.mrf.mxu0
  %v349 = vpop.f32.mrf.mxu0
  %350 = vdwg.mxu0
  %352 = vset.pattern.permute.xlu0 0
  %353 = vperm.xlu0 %352, %v301
  %v354 = vpop.permute.xlu0 %353
  %v356 = vmul.f32 %v346, %v354
  %v357 = vpack.c.bf16 %v192, %v192
  %v358 = vpack.c.bf16 %v356, %v356
  %359 = vxpose.xlu0.c.b16.start [1/8] %v357, 128
  %360 = vxpose.xlu0.c.b16.cont [2/8] 0, 128
  %361 = vxpose.xlu0.c.b16.cont [3/8] 0, 128
  %362 = vxpose.xlu0.c.b16.cont [4/8] 0, 128
  %363 = vxpose.xlu0.c.b16.cont [5/8] 0, 128
  %364 = vxpose.xlu0.c.b16.cont [6/8] 0, 128
  %365 = vxpose.xlu0.c.b16.cont [7/8] 0, 128
  %366 = vxpose.xlu0.c.b16.end [8/8] 0, 128
  %v367 = vpop.trf.xlu0
  %v368 = vpop.trf.xlu0
  %v369 = vpop.trf.xlu0
  %v370 = vpop.trf.xlu0
  %v371 = vpop.trf.xlu0
  %v372 = vpop.trf.xlu0
  %v373 = vpop.trf.xlu0
  %v374 = vpop.trf.xlu0
  %v376 = vsel %vm225, %v367, 0
  %v379 = vsel %vm76, %v358, 0
  %381 = vmatprep.subr.bf16.mxu0 0
  %382 = vmatpush1.bf16.msra.mxu0 0
  %383 = vmatprep.subr.bf16.mxu0 0
  %384 = vmatpush1.bf16.msra.mxu0 0
  %385 = vmatprep.subr.bf16.mxu0 0
  %386 = vmatpush1.bf16.msra.mxu0 0
  %387 = vmatprep.subr.bf16.mxu0 0
  %388 = vmatpush1.bf16.msra.mxu0 0
  %389 = vmatprep.subr.bf16.mxu0 0
  %390 = vmatpush1.bf16.msra.mxu0 0
  %391 = vmatprep.subr.bf16.mxu0 0
  %392 = vmatpush1.bf16.msra.mxu0 0
  %393 = vmatprep.subr.bf16.mxu0 0
  %394 = vmatpush1.bf16.msra.mxu0 0
  %395 = vmatprep.subr.bf16.mxu0 0
  %396 = vmatpush1.bf16.msra.mxu0 %v379
  %397 = vmatprep.subr.bf16.mxu0 0
  %398 = vmatpush2.bf16.msra.mxu0 0
  %399 = vmatprep.subr.bf16.mxu0 0
  %400 = vmatpush2.bf16.msra.mxu0 0
  %401 = vmatprep.subr.bf16.mxu0 0
  %402 = vmatpush2.bf16.msra.mxu0 0
  %403 = vmatprep.subr.bf16.mxu0 0
  %404 = vmatpush2.bf16.msra.mxu0 0
  %405 = vmatprep.subr.bf16.mxu0 0
  %406 = vmatpush2.bf16.msra.mxu0 0
  %407 = vmatprep.subr.bf16.mxu0 0
  %408 = vmatpush2.bf16.msra.mxu0 0
  %409 = vmatprep.subr.bf16.mxu0 0
  %410 = vmatpush2.bf16.msra.mxu0 0
  %411 = vmatprep.subr.bf16.mxu0 0
  %412 = vmatpush2.bf16.msra.mxu0 0
  %413 = vmatprep.mubr.bf16.mxu0 0
  %414 = vmatmul.mubr.bf16.gmra.mxu0 %v376
  %v415 = vpop.f32.mrf.mxu0
  %v416 = vadd.f32 0.0, %v415
  %v417 = vpop.f32.mrf.mxu0
  %v418 = vpop.f32.mrf.mxu0
  %v419 = vpop.f32.mrf.mxu0
  %420 = vdwg.mxu0
  %v421 = vmul.f32 %v416, %v354
  %v423 = vlaneseq
  %v424 = vshrl.u32 %v423, 7
  %v425 = vsub.s32 0, %v424
  %v426 = vrot.slane %v172, %v425
  %v428 = vadd.f32 %v421, %v426
  %v429 = vmax.f32 %v428, 0.0
  %v430 = vpack.c.bf16 %v429, %v429
  %v431 = vpack.c.bf16 %v174, %v173
  %v432 = vpack.c.bf16 %v176, %v175
  %v433 = vpack.c.bf16 %v178, %v177
  %v434 = vpack.c.bf16 %v180, %v179
  %v435 = vpack.c.bf16 %v182, %v181
  %v436 = vpack.c.bf16 %v184, %v183
  %v437 = vpack.c.bf16 %v186, %v185
  %v438 = vpack.c.bf16 %v188, %v187
  %439 = vmatprep.subr.bf16.mxu0 0
  %440 = vmatpush1.bf16.msra.mxu0 %v438
  %441 = vmatprep.subr.bf16.mxu0 0
  %442 = vmatpush1.bf16.msra.mxu0 %v437
  %443 = vmatprep.subr.bf16.mxu0 0
  %444 = vmatpush1.bf16.msra.mxu0 %v436
  %445 = vmatprep.subr.bf16.mxu0 0
  %446 = vmatpush1.bf16.msra.mxu0 %v435
  %447 = vmatprep.subr.bf16.mxu0 0
  %448 = vmatpush1.bf16.msra.mxu0 %v434
  %449 = vmatprep.subr.bf16.mxu0 0
  %450 = vmatpush1.bf16.msra.mxu0 %v433
  %451 = vmatprep.subr.bf16.mxu0 0
  %452 = vmatpush1.bf16.msra.mxu0 %v432
  %453 = vmatprep.subr.bf16.mxu0 0
  %454 = vmatpush1.bf16.msra.mxu0 %v431
  %455 = vmatprep.subr.bf16.mxu0 0
  %456 = vmatpush2.bf16.msra.mxu0 0
  %457 = vmatprep.subr.bf16.mxu0 0
  %458 = vmatpush2.bf16.msra.mxu0 0
  %459 = vmatprep.subr.bf16.mxu0 0
  %460 = vmatpush2.bf16.msra.mxu0 0
  %461 = vmatprep.subr.bf16.mxu0 0
  %462 = vmatpush2.bf16.msra.mxu0 0
  %463 = vmatprep.subr.bf16.mxu0 0
  %464 = vmatpush2.bf16.msra.mxu0 0
  %465 = vmatprep.subr.bf16.mxu0 0
  %466 = vmatpush2.bf16.msra.mxu0 0
  %467 = vmatprep.subr.bf16.mxu0 0
  %468 = vmatpush2.bf16.msra.mxu0 0
  %469 = vmatprep.subr.bf16.mxu0 0
  %470 = vmatpush2.bf16.msra.mxu0 0
  %471 = vmatprep.mubr.bf16.mxu0 0
  %472 = vmatmul.mubr.bf16.gmra.mxu0 %v430
  %v473 = vpop.f32.mrf.mxu0
  %v474 = vadd.f32 0.0, %v473
  %v475 = vpop.f32.mrf.mxu0
  %v476 = vpop.f32.mrf.mxu0
  %v477 = vpop.f32.mrf.mxu0
  %478 = vdwg.mxu0
  %v479 = vmul.f32 %v474, %v354
  %v480 = vpack.c.bf16 %v479, %v479
  %v482 = vsel %vm76, %v480, 0
  %484 = vmatprep.subr.bf16.mxu0 0
  %485 = vmatpush1.bf16.msra.mxu0 0
  %486 = vmatprep.subr.bf16.mxu0 0
  %487 = vmatpush1.bf16.msra.mxu0 0
  %488 = vmatprep.subr.bf16.mxu0 0
  %489 = vmatpush1.bf16.msra.mxu0 0
  %490 = vmatprep.subr.bf16.mxu0 0
  %491 = vmatpush1.bf16.msra.mxu0 0
  %492 = vmatprep.subr.bf16.mxu0 0
  %493 = vmatpush1.bf16.msra.mxu0 0
  %494 = vmatprep.subr.bf16.mxu0 0
  %495 = vmatpush1.bf16.msra.mxu0 0
  %496 = vmatprep.subr.bf16.mxu0 0
  %497 = vmatpush1.bf16.msra.mxu0 0
  %498 = vmatprep.subr.bf16.mxu0 0
  %499 = vmatpush1.bf16.msra.mxu0 %v482
  %500 = vmatprep.subr.bf16.mxu0 0
  %501 = vmatpush2.bf16.msra.mxu0 0
  %502 = vmatprep.subr.bf16.mxu0 0
  %503 = vmatpush2.bf16.msra.mxu0 0
  %504 = vmatprep.subr.bf16.mxu0 0
  %505 = vmatpush2.bf16.msra.mxu0 0
  %506 = vmatprep.subr.bf16.mxu0 0
  %507 = vmatpush2.bf16.msra.mxu0 0
  %508 = vmatprep.subr.bf16.mxu0 0
  %509 = vmatpush2.bf16.msra.mxu0 0
  %510 = vmatprep.subr.bf16.mxu0 0
  %511 = vmatpush2.bf16.msra.mxu0 0
  %512 = vmatprep.subr.bf16.mxu0 0
  %513 = vmatpush2.bf16.msra.mxu0 0
  %514 = vmatprep.subr.bf16.mxu0 0
  %515 = vmatpush2.bf16.msra.mxu0 0
  %516 = vmatprep.mubr.bf16.mxu0 0
  %517 = vmatmul.mubr.bf16.gmra.mxu0 %v376
  %v518 = vpop.f32.mrf.mxu0
  %v519 = vadd.f32 0.0, %v518
  %v520 = vpop.f32.mrf.mxu0
  %v521 = vpop.f32.mrf.mxu0
  %v522 = vpop.f32.mrf.mxu0
  %523 = vdwg.mxu0
  %v524 = vmul.f32 %v519, %v354
  %v526 = vlaneseq
  %v527 = vshrl.u32 %v526, 7
  %v528 = vsub.s32 0, %v527
  %v529 = vrot.slane %v189, %v528
  %v531 = vadd.f32 %v524, %v529
  %v532 = vmax.f32 %v531, 0.0
  %533 = vst [vmem:[%s8] sm:$0xff] %v532
  // Predicated region
  $region34: #{graph_unet_v2_forward.8} parent=0 // pred_check
    _
  $region35: #{graph_unet_v2_forward.8} parent=0 // pred_check_branch
    %535 = sbr.rel (0) target = $region37
  $region36: #{graph_unet_v2_forward.8} parent=0 // pred_region
    _
  $region37: #{graph_unet_v2_forward.8} parent=0 // pred_fallthru
    _
  // Predicated region
  $region38: #{graph_unet_v2_forward.8} parent=0 // pred_check
    _
  $region39: #{graph_unet_v2_forward.8} parent=0 // pred_check_branch
    %537 = sbr.rel (0) target = $region41
  $region40: #{graph_unet_v2_forward.8} parent=0 // pred_region
    _
  $region41: #{graph_unet_v2_forward.8} parent=0 // pred_fallthru
    _

// kernel: graph_unet_v2_forward.9
$region0: #{graph_unet_v2_forward.9}
  #allocation0 [shape = 'u32[]', space=smem, size = 0x4, offset = 0x4, fixed_abs, tag = 'smem constant byte address 0x4 - core index']
  #allocation1 [shape = 'u32[144,128]{1,0:T(1,128)}', space=vmem, size = 0x12000, scoped, tag = 'internal scratch']
  %s0 = inlined_call_operand.vmem [shape: s32[8,1], index: 0, kind: input, shape index: {}]
  %s1 = inlined_call_operand.vmem [shape: f32[16,16], index: 1, kind: input, shape index: {}]
  %s2 = inlined_call_operand.vmem [shape: f32[16,128], index: 2, kind: input, shape index: {}]
  %s3 = inlined_call_operand.vmem [shape: f32[8,128], index: 3, kind: input, shape index: {}]
  %s4 = inlined_call_operand.vmem [shape: f32[128,128], index: 4, kind: input, shape index: {}]
  %s5 = inlined_call_operand.vmem [shape: f32[1,128], index: 5, kind: input, shape index: {}]
  %s6 = inlined_call_operand.vmem [shape: f32[128,128], index: 6, kind: input, shape index: {}]
  %s7 = inlined_call_operand.vmem [shape: f32[1,128], index: 7, kind: input, shape index: {}]
  %s8 = inlined_call_operand.hbm [shape: f32[16,128], index: 8, kind: output, shape index: {}]
  %s9 = sld [smem:[#allocation0]]
  $region42: #{graph_unet_v2_forward.9} parent=0
    _
  %s11 = ssub.s32 1, %s9
  %s12 = scalar_select 0, %s11, %s9
  $region1: #{graph_unet_v2_forward.9} parent=0
    #allocation2 [shape = 'u8[8192]{0}', space=vmem, size = 0x2000, scoped, tag = 'output window, operand 0, single buffered']
    #allocation3 [shape = 's32[1]{0}', space=sflag, size = 0x4, scoped, tag = 'scoped memory for graph_unet_v2_forward.9']
    %13 = vsyncpa [#allocation3], 0
    // Predicated region
    $region2: #{graph_unet_v2_forward.9} parent=1 // pred_check
      _
    $region3: #{graph_unet_v2_forward.9} parent=1 // pred_check_branch
      %15 = sbr.rel (0) target = $region5
    $region4: #{graph_unet_v2_forward.9} parent=1 // pred_region
      _
    $region5: #{graph_unet_v2_forward.9} parent=1 // pred_fallthru
      _
    // Predicated region
    $region6: #{graph_unet_v2_forward.9} parent=1 // pred_check
      _
    $region7: #{graph_unet_v2_forward.9} parent=1 // pred_check_branch
      %17 = sbr.rel (0) target = $region9
    $region8: #{graph_unet_v2_forward.9} parent=1 // pred_region
      _
    $region9: #{graph_unet_v2_forward.9} parent=1 // pred_fallthru
      _
    // Predicated region
    $region10: #{graph_unet_v2_forward.9} parent=1 // pred_check
      _
    $region11: #{graph_unet_v2_forward.9} parent=1 // pred_check_branch
      %19 = sbr.rel (0) target = $region13
    $region12: #{graph_unet_v2_forward.9} parent=1 // pred_region
      _
    $region13: #{graph_unet_v2_forward.9} parent=1 // pred_fallthru
      _
    // Predicated region
    $region14: #{graph_unet_v2_forward.9} parent=1 // pred_check
      _
    $region15: #{graph_unet_v2_forward.9} parent=1 // pred_check_branch
      %21 = sbr.rel (0) target = $region17
    $region16: #{graph_unet_v2_forward.9} parent=1 // pred_region
      _
    $region17: #{graph_unet_v2_forward.9} parent=1 // pred_fallthru
      _
    // Predicated region
    $region18: #{graph_unet_v2_forward.9} parent=1 // pred_check
      _
    $region19: #{graph_unet_v2_forward.9} parent=1 // pred_check_branch
      %23 = sbr.rel (0) target = $region21
    $region20: #{graph_unet_v2_forward.9} parent=1 // pred_region
      _
    $region21: #{graph_unet_v2_forward.9} parent=1 // pred_fallthru
      _
    // Predicated region
    $region22: #{graph_unet_v2_forward.9} parent=1 // pred_check
      _
    $region23: #{graph_unet_v2_forward.9} parent=1 // pred_check_branch
      %25 = sbr.rel (0) target = $region25
    $region24: #{graph_unet_v2_forward.9} parent=1 // pred_region
      _
    $region25: #{graph_unet_v2_forward.9} parent=1 // pred_fallthru
      _
    // Predicated region
    $region26: #{graph_unet_v2_forward.9} parent=1 // pred_check
      _
    $region27: #{graph_unet_v2_forward.9} parent=1 // pred_check_branch
      %27 = sbr.rel (0) target = $region29
    $region28: #{graph_unet_v2_forward.9} parent=1 // pred_region
      _
    $region29: #{graph_unet_v2_forward.9} parent=1 // pred_fallthru
      _
    // Predicated region
    $region30: #{graph_unet_v2_forward.9} parent=1 // pred_check
      _
    $region31: #{graph_unet_v2_forward.9} parent=1 // pred_check_branch
      %29 = sbr.rel (0) target = $region33
    $region32: #{graph_unet_v2_forward.9} parent=1 // pred_region
      _
    $region33: #{graph_unet_v2_forward.9} parent=1 // pred_fallthru
      _
    %v31 = vld [vmem:[%s0] sm:$0xff]
    %v32 = vlaneseq
    %v33 = vand.u32 %v32, 127
    %34 = vset.pattern.permute.xlu0 0
    %35 = vperm.xlu0 %34, %v31
    %v36 = vpop.permute.xlu0 %35
    %vm37 = vcmp.eq.s32.totalorder %v33, %v36
    %v38 = vsel %vm37, 1, 0
    %v39 = vcvt.s32.f32 %v38
    %v40 = vld [vmem:[%s3] sm:$0xff]
    %41 = vxpose.xlu0.b32.start [1/16] %v39, 128
    %42 = vxpose.xlu0.b32.cont [2/16] 0.0, 128
    %43 = vxpose.xlu0.b32.cont [3/16] 0.0, 128
    %44 = vxpose.xlu0.b32.cont [4/16] 0.0, 128
    %45 = vxpose.xlu0.b32.cont [5/16] 0.0, 128
    %46 = vxpose.xlu0.b32.cont [6/16] 0.0, 128
    %47 = vxpose.xlu0.b32.cont [7/16] 0.0, 128
    %48 = vxpose.xlu0.b32.cont [8/16] 0.0, 128
    %49 = vxpose.xlu0.b32.cont [9/16] 0.0, 128
    %50 = vxpose.xlu0.b32.cont [10/16] 0.0, 128
    %51 = vxpose.xlu0.b32.cont [11/16] 0.0, 128
    %52 = vxpose.xlu0.b32.cont [12/16] 0.0, 128
    %53 = vxpose.xlu0.b32.cont [13/16] 0.0, 128
    %54 = vxpose.xlu0.b32.cont [14/16] 0.0, 128
    %55 = vxpose.xlu0.b32.cont [15/16] 0.0, 128
    %56 = vxpose.xlu0.b32.end [16/16] 0.0, 128
    %v57 = vpop.trf.xlu0
    %v58 = vpop.trf.xlu0
    %v59 = vpop.trf.xlu0
    %v60 = vpop.trf.xlu0
    %v61 = vpop.trf.xlu0
    %v62 = vpop.trf.xlu0
    %v63 = vpop.trf.xlu0
    %v64 = vpop.trf.xlu0
    %v65 = vpop.trf.xlu0
    %v66 = vpop.trf.xlu0
    %v67 = vpop.trf.xlu0
    %v68 = vpop.trf.xlu0
    %v69 = vpop.trf.xlu0
    %v70 = vpop.trf.xlu0
    %v71 = vpop.trf.xlu0
    %v72 = vpop.trf.xlu0
    %vm73 = vcmask 64512
    %v75 = vsel %vm73, %v57, 0
    %v78 = vsel %vm73, %v58, 0
    %80 = vmatprep.subr.mxu0 0.0
    %81 = vmatpush1.msra.mxu0 0.0
    %82 = vmatprep.subr.mxu0 0.0
    %83 = vmatpush1.msra.mxu0 0.0
    %84 = vmatprep.subr.mxu0 0.0
    %85 = vmatpush1.msra.mxu0 0.0
    %86 = vmatprep.subr.mxu0 0.0
    %87 = vmatpush1.msra.mxu0 0.0
    %88 = vmatprep.subr.mxu0 0.0
    %89 = vmatpush1.msra.mxu0 0.0
    %90 = vmatprep.subr.mxu0 0.0
    %91 = vmatpush1.msra.mxu0 0.0
    %92 = vmatprep.subr.mxu0 0.0
    %93 = vmatpush1.msra.mxu0 0.0
    %94 = vmatprep.subr.mxu0 0.0
    %95 = vmatpush1.msra.mxu0 0.0
    %96 = vmatprep.subr.mxu0 0.0
    %97 = vmatpush1.msra.mxu0 0.0
    %98 = vmatprep.subr.mxu0 0.0
    %99 = vmatpush1.msra.mxu0 0.0
    %100 = vmatprep.subr.mxu0 0.0
    %101 = vmatpush1.msra.mxu0 0.0
    %102 = vmatprep.subr.mxu0 0.0
    %103 = vmatpush1.msra.mxu0 0.0
    %104 = vmatprep.subr.mxu0 0.0
    %105 = vmatpush1.msra.mxu0 0.0
    %106 = vmatprep.subr.mxu0 0.0
    %107 = vmatpush1.msra.mxu0 0.0
    %108 = vmatprep.subr.mxu0 0.0
    %109 = vmatpush1.msra.mxu0 0.0
    %110 = vmatprep.subr.mxu0 0.0
    %111 = vmatpush1.msra.mxu0 %v40
    %112 = vmatprep.subr.mxu0 0.0
    %113 = vmatpush2.msra.mxu0 0.0
    %114 = vmatprep.subr.mxu0 0.0
    %115 = vmatpush2.msra.mxu0 0.0
    %116 = vmatprep.subr.mxu0 0.0
    %117 = vmatpush2.msra.mxu0 0.0
    %118 = vmatprep.subr.mxu0 0.0
    %119 = vmatpush2.msra.mxu0 0.0
    %120 = vmatprep.subr.mxu0 0.0
    %121 = vmatpush2.msra.mxu0 0.0
    %122 = vmatprep.subr.mxu0 0.0
    %123 = vmatpush2.msra.mxu0 0.0
    %124 = vmatprep.subr.mxu0 0.0
    %125 = vmatpush2.msra.mxu0 0.0
    %126 = vmatprep.subr.mxu0 0.0
    %127 = vmatpush2.msra.mxu0 0.0
    %128 = vmatprep.subr.mxu0 0.0
    %129 = vmatpush2.msra.mxu0 0.0
    %130 = vmatprep.subr.mxu0 0.0
    %131 = vmatpush2.msra.mxu0 0.0
    %132 = vmatprep.subr.mxu0 0.0
    %133 = vmatpush2.msra.mxu0 0.0
    %134 = vmatprep.subr.mxu0 0.0
    %135 = vmatpush2.msra.mxu0 0.0
    %136 = vmatprep.subr.mxu0 0.0
    %137 = vmatpush2.msra.mxu0 0.0
    %138 = vmatprep.subr.mxu0 0.0
    %139 = vmatpush2.msra.mxu0 0.0
    %140 = vmatprep.subr.mxu0 0.0
    %141 = vmatpush2.msra.mxu0 0.0
    %142 = vmatprep.subr.mxu0 0.0
    %143 = vmatpush2.msra.mxu0 0.0
    %144 = vmatprep.mubr.f32.mxu0 0.0
    %145 = vmatmul.mubr.f32.gmra.mxu0 %v75
    %v146 = vpop.f32.mrf.mxu0
    %v147 = vadd.f32 0.0, %v146
    %v148 = vpop.f32.mrf.mxu0
    %149 = vmatprep.mubr.f32.mxu0 0.0
    %150 = vmatmul.mubr.f32.gmra.mxu0 %v78
    %v151 = vpop.f32.mrf.mxu0
    %v152 = vadd.f32 0.0, %v151
    %v153 = vpop.f32.mrf.mxu0
    %154 = vdwg.mxu0
    %v155 = vld [vmem:[%s2] sm:$0xff]
    %v156 = vld [vmem:[%s2 + $0x8] sm:$0xff]
    %v157 = vadd.f32 %v155, %v147
    %v158 = vadd.f32 %v156, %v152
    %v159 = vld [vmem:[%s1] sm:$0xff]
    %v160 = vld [vmem:[%s1 + $0x8] sm:$0xff]
    %v161 = vlaneseq
    %v162 = vshrl.u32 %v161, 7
    %v163 = vadd.s32 %v162, 8
    %vm164 = vcmp.eq.s32.totalorder %v162, %v33
    %vm165 = vcmp.eq.s32.totalorder %v163, %v33
    %v166 = vld [vmem:[%s4] sm:$0xff]
    %v167 = vld [vmem:[%s4 + $0x8] sm:$0xff]
    %v168 = vld [vmem:[%s4 + $0x10] sm:$0xff]
    %v169 = vld [vmem:[%s4 + $0x18] sm:$0xff]
    %v170 = vld [vmem:[%s4 + $0x20] sm:$0xff]
    %v171 = vld [vmem:[%s4 + $0x28] sm:$0xff]
    %v172 = vld [vmem:[%s4 + $0x30] sm:$0xff]
    %v173 = vld [vmem:[%s4 + $0x38] sm:$0xff]
    %v174 = vld [vmem:[%s4 + $0x40] sm:$0xff]
    %v175 = vld [vmem:[%s4 + $0x48] sm:$0xff]
    %v176 = vld [vmem:[%s4 + $0x50] sm:$0xff]
    %v177 = vld [vmem:[%s4 + $0x58] sm:$0xff]
    %v178 = vld [vmem:[%s4 + $0x60] sm:$0xff]
    %v179 = vld [vmem:[%s4 + $0x68] sm:$0xff]
    %v180 = vld [vmem:[%s4 + $0x70] sm:$0xff]
    %v181 = vld [vmem:[%s4 + $0x78] sm:$0xff]
    %v182 = vld [vmem:[%s5] sm:$0x1]
    %v183 = vld [vmem:[%s6] sm:$0xff]
    %v184 = vld [vmem:[%s6 + $0x8] sm:$0xff]
    %v185 = vld [vmem:[%s6 + $0x10] sm:$0xff]
    %v186 = vld [vmem:[%s6 + $0x18] sm:$0xff]
    %v187 = vld [vmem:[%s6 + $0x20] sm:$0xff]
    %v188 = vld [vmem:[%s6 + $0x28] sm:$0xff]
    %v189 = vld [vmem:[%s6 + $0x30] sm:$0xff]
    %v190 = vld [vmem:[%s6 + $0x38] sm:$0xff]
    %v191 = vld [vmem:[%s6 + $0x40] sm:$0xff]
    %v192 = vld [vmem:[%s6 + $0x48] sm:$0xff]
    %v193 = vld [vmem:[%s6 + $0x50] sm:$0xff]
    %v194 = vld [vmem:[%s6 + $0x58] sm:$0xff]
    %v195 = vld [vmem:[%s6 + $0x60] sm:$0xff]
    %v196 = vld [vmem:[%s6 + $0x68] sm:$0xff]
    %v197 = vld [vmem:[%s6 + $0x70] sm:$0xff]
    %v198 = vld [vmem:[%s6 + $0x78] sm:$0xff]
    %v199 = vld [vmem:[%s7] sm:$0x1]
    %vm200 = vcmp.eq.f32.partialorder %v159, 0.0
    %vm201 = vcmp.eq.f32.partialorder %v160, 0.0
    %vm202 = vmand %vm164, %vm200
    %vm203 = vmand %vm165, %vm201
    %v204 = vsel %vm202, 1.0, %v159
    %v205 = vsel %vm203, 1.0, %v160
    %206 = vxpose.xlu0.b32.start [1/16] %v204, 128
    %207 = vxpose.xlu0.b32.cont [2/16] %v205, 128
    %208 = vxpose.xlu0.b32.cont [3/16] 0.0, 128
    %209 = vxpose.xlu0.b32.cont [4/16] 0.0, 128
    %210 = vxpose.xlu0.b32.cont [5/16] 0.0, 128
    %211 = vxpose.xlu0.b32.cont [6/16] 0.0, 128
    %212 = vxpose.xlu0.b32.cont [7/16] 0.0, 128
    %213 = vxpose.xlu0.b32.cont [8/16] 0.0, 128
    %214 = vxpose.xlu0.b32.cont [9/16] 0.0, 128
    %215 = vxpose.xlu0.b32.cont [10/16] 0.0, 128
    %216 = vxpose.xlu0.b32.cont [11/16] 0.0, 128
    %217 = vxpose.xlu0.b32.cont [12/16] 0.0, 128
    %218 = vxpose.xlu0.b32.cont [13/16] 0.0, 128
    %219 = vxpose.xlu0.b32.cont [14/16] 0.0, 128
    %220 = vxpose.xlu0.b32.cont [15/16] 0.0, 128
    %221 = vxpose.xlu0.b32.end [16/16] 0.0, 128
    %v222 = vpop.trf.xlu0
    %v223 = vpop.trf.xlu0
    %v224 = vpop.trf.xlu0
    %v225 = vpop.trf.xlu0
    %v226 = vpop.trf.xlu0
    %v227 = vpop.trf.xlu0
    %v228 = vpop.trf.xlu0
    %v229 = vpop.trf.xlu0
    %v230 = vpop.trf.xlu0
    %v231 = vpop.trf.xlu0
    %v232 = vpop.trf.xlu0
    %v233 = vpop.trf.xlu0
    %v234 = vpop.trf.xlu0
    %v235 = vpop.trf.xlu0
    %v236 = vpop.trf.xlu0
    %v237 = vpop.trf.xlu0
    %vm238 = vcmask 130048
    %v240 = vsel %vm238, %v222, 0
    %v243 = vsel %vm238, %v223, 0
    %245 = vmatprep.subr.mxu0 0.0
    %246 = vmatpush1.msra.mxu0 0.0
    %247 = vmatprep.subr.mxu0 0.0
    %248 = vmatpush1.msra.mxu0 0.0
    %249 = vmatprep.subr.mxu0 0.0
    %250 = vmatpush1.msra.mxu0 0.0
    %251 = vmatprep.subr.mxu0 0.0
    %252 = vmatpush1.msra.mxu0 0.0
    %253 = vmatprep.subr.mxu0 0.0
    %254 = vmatpush1.msra.mxu0 0.0
    %255 = vmatprep.subr.mxu0 0.0
    %256 = vmatpush1.msra.mxu0 0.0
    %257 = vmatprep.subr.mxu0 0.0
    %258 = vmatpush1.msra.mxu0 0.0
    %259 = vmatprep.subr.mxu0 0.0
    %260 = vmatpush1.msra.mxu0 0.0
    %261 = vmatprep.subr.mxu0 0.0
    %262 = vmatpush1.msra.mxu0 0.0
    %263 = vmatprep.subr.mxu0 0.0
    %264 = vmatpush1.msra.mxu0 0.0
    %265 = vmatprep.subr.mxu0 0.0
    %266 = vmatpush1.msra.mxu0 0.0
    %267 = vmatprep.subr.mxu0 0.0
    %268 = vmatpush1.msra.mxu0 0.0
    %269 = vmatprep.subr.mxu0 0.0
    %270 = vmatpush1.msra.mxu0 0.0
    %271 = vmatprep.subr.mxu0 0.0
    %272 = vmatpush1.msra.mxu0 0.0
    %273 = vmatprep.subr.mxu0 0.0
    %274 = vmatpush1.msra.mxu0 1.0
    %275 = vmatprep.subr.mxu0 0.0
    %276 = vmatpush1.msra.mxu0 1.0
    %277 = vmatprep.subr.mxu0 0.0
    %278 = vmatpush2.msra.mxu0 0.0
    %279 = vmatprep.subr.mxu0 0.0
    %280 = vmatpush2.msra.mxu0 0.0
    %281 = vmatprep.subr.mxu0 0.0
    %282 = vmatpush2.msra.mxu0 0.0
    %283 = vmatprep.subr.mxu0 0.0
    %284 = vmatpush2.msra.mxu0 0.0
    %285 = vmatprep.subr.mxu0 0.0
    %286 = vmatpush2.msra.mxu0 0.0
    %287 = vmatprep.subr.mxu0 0.0
    %288 = vmatpush2.msra.mxu0 0.0
    %289 = vmatprep.subr.mxu0 0.0
    %290 = vmatpush2.msra.mxu0 0.0
    %291 = vmatprep.subr.mxu0 0.0
    %292 = vmatpush2.msra.mxu0 0.0
    %293 = vmatprep.subr.mxu0 0.0
    %294 = vmatpush2.msra.mxu0 0.0
    %295 = vmatprep.subr.mxu0 0.0
    %296 = vmatpush2.msra.mxu0 0.0
    %297 = vmatprep.subr.mxu0 0.0
    %298 = vmatpush2.msra.mxu0 0.0
    %299 = vmatprep.subr.mxu0 0.0
    %300 = vmatpush2.msra.mxu0 0.0
    %301 = vmatprep.subr.mxu0 0.0
    %302 = vmatpush2.msra.mxu0 0.0
    %303 = vmatprep.subr.mxu0 0.0
    %304 = vmatpush2.msra.mxu0 0.0
    %305 = vmatprep.subr.mxu0 0.0
    %306 = vmatpush2.msra.mxu0 0.0
    %307 = vmatprep.subr.mxu0 0.0
    %308 = vmatpush2.msra.mxu0 0.0
    %309 = vmatprep.mubr.f32.mxu0 0.0
    %310 = vmatmul.mubr.f32.gmra.mxu0 %v240
    %v311 = vpop.f32.mrf.mxu0
    %v312 = vadd.f32 0.0, %v311
    %v313 = vpop.f32.mrf.mxu0
    %314 = vmatprep.mubr.f32.mxu0 0.0
    %315 = vmatmul.mubr.f32.gmra.mxu0 %v243
    %v316 = vpop.f32.mrf.mxu0
    %v317 = vadd.f32 0.0, %v316
    %v318 = vpop.f32.mrf.mxu0
    %319 = vdwg.mxu0
    %vm320 = vcmp.gt.f32.partialorder %v312, 0.0
    %vm321 = vcmp.gt.f32.partialorder %v317, 0.0
    %v322 = vrsqrt.pop %v312
    %v323 = vrsqrt.pop %v317
    %v324 = vsel %vm320, %v322, 0.0
    %v325 = vsel %vm321, %v323, 0.0
    %v326 = vpack.c.bf16 %v158, %v157
    %v327 = vpack.c.bf16 %v167, %v166
    %v328 = vpack.c.bf16 %v169, %v168
    %v329 = vpack.c.bf16 %v171, %v170
    %v330 = vpack.c.bf16 %v173, %v172
    %v331 = vpack.c.bf16 %v175, %v174
    %v332 = vpack.c.bf16 %v177, %v176
    %v333 = vpack.c.bf16 %v179, %v178
    %v334 = vpack.c.bf16 %v181, %v180
    %335 = vmatprep.subr.bf16.mxu0 0
    %336 = vmatpush1.bf16.msra.mxu0 %v334
    %337 = vmatprep.subr.bf16.mxu0 0
    %338 = vmatpush1.bf16.msra.mxu0 %v333
    %339 = vmatprep.subr.bf16.mxu0 0
    %340 = vmatpush1.bf16.msra.mxu0 %v332
    %341 = vmatprep.subr.bf16.mxu0 0
    %342 = vmatpush1.bf16.msra.mxu0 %v331
    %343 = vmatprep.subr.bf16.mxu0 0
    %344 = vmatpush1.bf16.msra.mxu0 %v330
    %345 = vmatprep.subr.bf16.mxu0 0
    %346 = vmatpush1.bf16.msra.mxu0 %v329
    %347 = vmatprep.subr.bf16.mxu0 0
    %348 = vmatpush1.bf16.msra.mxu0 %v328
    %349 = vmatprep.subr.bf16.mxu0 0
    %350 = vmatpush1.bf16.msra.mxu0 %v327
    %351 = vmatprep.subr.bf16.mxu0 0
    %352 = vmatpush2.bf16.msra.mxu0 0
    %353 = vmatprep.subr.bf16.mxu0 0
    %354 = vmatpush2.bf16.msra.mxu0 0
    %355 = vmatprep.subr.bf16.mxu0 0
    %356 = vmatpush2.bf16.msra.mxu0 0
    %357 = vmatprep.subr.bf16.mxu0 0
    %358 = vmatpush2.bf16.msra.mxu0 0
    %359 = vmatprep.subr.bf16.mxu0 0
    %360 = vmatpush2.bf16.msra.mxu0 0
    %361 = vmatprep.subr.bf16.mxu0 0
    %362 = vmatpush2.bf16.msra.mxu0 0
    %363 = vmatprep.subr.bf16.mxu0 0
    %364 = vmatpush2.bf16.msra.mxu0 0
    %365 = vmatprep.subr.bf16.mxu0 0
    %366 = vmatpush2.bf16.msra.mxu0 0
    %367 = vmatprep.mubr.bf16.mxu0 0
    %368 = vmatmul.mubr.bf16.gmra.mxu0 %v326
    %v369 = vpop.f32.mrf.mxu0
    %v370 = vadd.f32 0.0, %v369
    %v371 = vpop.f32.mrf.mxu0
    %v372 = vpop.f32.mrf.mxu0
    %v373 = vadd.f32 0.0, %v372
    %v374 = vpop.f32.mrf.mxu0
    %375 = vdwg.mxu0
    %377 = vset.pattern.permute.xlu0 0
    %378 = vperm.xlu0 %377, %v324
    %v379 = vpop.permute.xlu0 %378
    %382 = vset.pattern.permute.xlu0 0
    %383 = vperm.xlu0 %382, %v325
    %v384 = vpop.permute.xlu0 %383
    %v386 = vmul.f32 %v370, %v379
    %v387 = vmul.f32 %v373, %v384
    %v388 = vpack.c.bf16 %v205, %v204
    %v389 = vpack.c.bf16 %v387, %v386
    %390 = vxpose.xlu0.c.b16.start [1/8] %v388, 128
    %391 = vxpose.xlu0.c.b16.cont [2/8] 0, 128
    %392 = vxpose.xlu0.c.b16.cont [3/8] 0, 128
    %393 = vxpose.xlu0.c.b16.cont [4/8] 0, 128
    %394 = vxpose.xlu0.c.b16.cont [5/8] 0, 128
    %395 = vxpose.xlu0.c.b16.cont [6/8] 0, 128
    %396 = vxpose.xlu0.c.b16.cont [7/8] 0, 128
    %397 = vxpose.xlu0.c.b16.end [8/8] 0, 128
    %v398 = vpop.trf.xlu0
    %v399 = vpop.trf.xlu0
    %v400 = vpop.trf.xlu0
    %v401 = vpop.trf.xlu0
    %v402 = vpop.trf.xlu0
    %v403 = vpop.trf.xlu0
    %v404 = vpop.trf.xlu0
    %v405 = vpop.trf.xlu0
    %v407 = vsel %vm238, %v398, 0
    %409 = vmatprep.subr.bf16.mxu0 0
    %410 = vmatpush1.bf16.msra.mxu0 0
    %411 = vmatprep.subr.bf16.mxu0 0
    %412 = vmatpush1.bf16.msra.mxu0 0
    %413 = vmatprep.subr.bf16.mxu0 0
    %414 = vmatpush1.bf16.msra.mxu0 0
    %415 = vmatprep.subr.bf16.mxu0 0
    %416 = vmatpush1.bf16.msra.mxu0 0
    %417 = vmatprep.subr.bf16.mxu0 0
    %418 = vmatpush1.bf16.msra.mxu0 0
    %419 = vmatprep.subr.bf16.mxu0 0
    %420 = vmatpush1.bf16.msra.mxu0 0
    %421 = vmatprep.subr.bf16.mxu0 0
    %422 = vmatpush1.bf16.msra.mxu0 0
    %423 = vmatprep.subr.bf16.mxu0 0
    %424 = vmatpush1.bf16.msra.mxu0 %v389
    %425 = vmatprep.subr.bf16.mxu0 0
    %426 = vmatpush2.bf16.msra.mxu0 0
    %427 = vmatprep.subr.bf16.mxu0 0
    %428 = vmatpush2.bf16.msra.mxu0 0
    %429 = vmatprep.subr.bf16.mxu0 0
    %430 = vmatpush2.bf16.msra.mxu0 0
    %431 = vmatprep.subr.bf16.mxu0 0
    %432 = vmatpush2.bf16.msra.mxu0 0
    %433 = vmatprep.subr.bf16.mxu0 0
    %434 = vmatpush2.bf16.msra.mxu0 0
    %435 = vmatprep.subr.bf16.mxu0 0
    %436 = vmatpush2.bf16.msra.mxu0 0
    %437 = vmatprep.subr.bf16.mxu0 0
    %438 = vmatpush2.bf16.msra.mxu0 0
    %439 = vmatprep.subr.bf16.mxu0 0
    %440 = vmatpush2.bf16.msra.mxu0 0
    %441 = vmatprep.mubr.bf16.mxu0 0
    %442 = vmatmul.mubr.bf16.gmra.mxu0 %v407
    %v443 = vpop.f32.mrf.mxu0
    %v444 = vadd.f32 0.0, %v443
    %v445 = vpop.f32.mrf.mxu0
    %v446 = vpop.f32.mrf.mxu0
    %v447 = vadd.f32 0.0, %v446
    %v448 = vpop.f32.mrf.mxu0
    %449 = vdwg.mxu0
    %v450 = vmul.f32 %v444, %v379
    %v451 = vmul.f32 %v447, %v384
    %v453 = vlaneseq
    %v454 = vshrl.u32 %v453, 7
    %v455 = vsub.s32 0, %v454
    %v456 = vrot.slane %v182, %v455
    %v458 = vadd.f32 %v450, %v456
    %v459 = vadd.f32 %v451, %v456
    %v460 = vmax.f32 %v458, 0.0
    %v461 = vmax.f32 %v459, 0.0
    %v462 = vpack.c.bf16 %v461, %v460
    %v463 = vpack.c.bf16 %v184, %v183
    %v464 = vpack.c.bf16 %v186, %v185
    %v465 = vpack.c.bf16 %v188, %v187
    %v466 = vpack.c.bf16 %v190, %v189
    %v467 = vpack.c.bf16 %v192, %v191
    %v468 = vpack.c.bf16 %v194, %v193
    %v469 = vpack.c.bf16 %v196, %v195
    %v470 = vpack.c.bf16 %v198, %v197
    %471 = vmatprep.subr.bf16.mxu0 0
    %472 = vmatpush1.bf16.msra.mxu0 %v470
    %473 = vmatprep.subr.bf16.mxu0 0
    %474 = vmatpush1.bf16.msra.mxu0 %v469
    %475 = vmatprep.subr.bf16.mxu0 0
    %476 = vmatpush1.bf16.msra.mxu0 %v468
    %477 = vmatprep.subr.bf16.mxu0 0
    %478 = vmatpush1.bf16.msra.mxu0 %v467
    %479 = vmatprep.subr.bf16.mxu0 0
    %480 = vmatpush1.bf16.msra.mxu0 %v466
    %481 = vmatprep.subr.bf16.mxu0 0
    %482 = vmatpush1.bf16.msra.mxu0 %v465
    %483 = vmatprep.subr.bf16.mxu0 0
    %484 = vmatpush1.bf16.msra.mxu0 %v464
    %485 = vmatprep.subr.bf16.mxu0 0
    %486 = vmatpush1.bf16.msra.mxu0 %v463
    %487 = vmatprep.subr.bf16.mxu0 0
    %488 = vmatpush2.bf16.msra.mxu0 0
    %489 = vmatprep.subr.bf16.mxu0 0
    %490 = vmatpush2.bf16.msra.mxu0 0
    %491 = vmatprep.subr.bf16.mxu0 0
    %492 = vmatpush2.bf16.msra.mxu0 0
    %493 = vmatprep.subr.bf16.mxu0 0
    %494 = vmatpush2.bf16.msra.mxu0 0
    %495 = vmatprep.subr.bf16.mxu0 0
    %496 = vmatpush2.bf16.msra.mxu0 0
    %497 = vmatprep.subr.bf16.mxu0 0
    %498 = vmatpush2.bf16.msra.mxu0 0
    %499 = vmatprep.subr.bf16.mxu0 0
    %500 = vmatpush2.bf16.msra.mxu0 0
    %501 = vmatprep.subr.bf16.mxu0 0
    %502 = vmatpush2.bf16.msra.mxu0 0
    %503 = vmatprep.mubr.bf16.mxu0 0
    %504 = vmatmul.mubr.bf16.gmra.mxu0 %v462
    %v505 = vpop.f32.mrf.mxu0
    %v506 = vadd.f32 0.0, %v505
    %v507 = vpop.f32.mrf.mxu0
    %v508 = vpop.f32.mrf.mxu0
    %v509 = vadd.f32 0.0, %v508
    %v510 = vpop.f32.mrf.mxu0
    %511 = vdwg.mxu0
    %v512 = vmul.f32 %v506, %v379
    %v513 = vmul.f32 %v509, %v384
    %v514 = vpack.c.bf16 %v513, %v512
    %515 = vmatprep.subr.bf16.mxu0 0
    %516 = vmatpush1.bf16.msra.mxu0 0
    %517 = vmatprep.subr.bf16.mxu0 0
    %518 = vmatpush1.bf16.msra.mxu0 0
    %519 = vmatprep.subr.bf16.mxu0 0
    %520 = vmatpush1.bf16.msra.mxu0 0
    %521 = vmatprep.subr.bf16.mxu0 0
    %522 = vmatpush1.bf16.msra.mxu0 0
    %523 = vmatprep.subr.bf16.mxu0 0
    %524 = vmatpush1.bf16.msra.mxu0 0
    %525 = vmatprep.subr.bf16.mxu0 0
    %526 = vmatpush1.bf16.msra.mxu0 0
    %527 = vmatprep.subr.bf16.mxu0 0
    %528 = vmatpush1.bf16.msra.mxu0 0
    %529 = vmatprep.subr.bf16.mxu0 0
    %530 = vmatpush1.bf16.msra.mxu0 %v514
    %531 = vmatprep.subr.bf16.mxu0 0
    %532 = vmatpush2.bf16.msra.mxu0 0
    %533 = vmatprep.subr.bf16.mxu0 0
    %534 = vmatpush2.bf16.msra.mxu0 0
    %535 = vmatprep.subr.bf16.mxu0 0
    %536 = vmatpush2.bf16.msra.mxu0 0
    %537 = vmatprep.subr.bf16.mxu0 0
    %538 = vmatpush2.bf16.msra.mxu0 0
    %539 = vmatprep.subr.bf16.mxu0 0
    %540 = vmatpush2.bf16.msra.mxu0 0
    %541 = vmatprep.subr.bf16.mxu0 0
    %542 = vmatpush2.bf16.msra.mxu0 0
    %543 = vmatprep.subr.bf16.mxu0 0
    %544 = vmatpush2.bf16.msra.mxu0 0
    %545 = vmatprep.subr.bf16.mxu0 0
    %546 = vmatpush2.bf16.msra.mxu0 0
    %547 = vmatprep.mubr.bf16.mxu0 0
    %548 = vmatmul.mubr.bf16.gmra.mxu0 %v407
    %v549 = vpop.f32.mrf.mxu0
    %v550 = vadd.f32 0.0, %v549
    %v551 = vpop.f32.mrf.mxu0
    %v552 = vpop.f32.mrf.mxu0
    %v553 = vadd.f32 0.0, %v552
    %v554 = vpop.f32.mrf.mxu0
    %555 = vdwg.mxu0
    %v556 = vmul.f32 %v550, %v379
    %v557 = vmul.f32 %v553, %v384
    %v559 = vlaneseq
    %v560 = vshrl.u32 %v559, 7
    %v561 = vsub.s32 0, %v560
    %v562 = vrot.slane %v199, %v561
    %v564 = vadd.f32 %v556, %v562
    %v565 = vadd.f32 %v557, %v562
    %566 = vst [vmem:[#allocation2] sm:$0xff] %v564
    %567 = vst [vmem:[#allocation2 + $0x8] sm:$0xff] %v565
    // Predicated region
    $region34: #{graph_unet_v2_forward.9} parent=1 // pred_check
      _
    $region35: #{graph_unet_v2_forward.9} parent=1 // pred_check_branch
      %569 = sbr.rel (0) target = $region37
    $region36: #{graph_unet_v2_forward.9} parent=1 // pred_region
      %s571 = ssub.s32 256, 256
      %572 = vsyncadd [#allocation3], %s571
      %s573 = sshll.u32 [#allocation2], 4
      %s574 = int_to_ptr.vmem [resolvable:$true] %s573
      %579 = dma.vmem_to_hbm [thread:$0]  %s574, 256, %s8, [#allocation3], 128, 128, 8
    $region37: #{graph_unet_v2_forward.9} parent=1 // pred_fallthru
      _
    // Predicated region
    $region38: #{graph_unet_v2_forward.9} parent=1 // pred_check
      _
    $region39: #{graph_unet_v2_forward.9} parent=1 // pred_check_branch
      %581 = sbr.rel (0) target = $region41
    $region40: #{graph_unet_v2_forward.9} parent=1 // pred_region
      %582 = dma.done [#allocation3], 256
    $region41: #{graph_unet_v2_forward.9} parent=1 // pred_fallthru
      _
    %583 = vsyncpa [#allocation3], 1

</llo_original>
